<compile_context>
chip_gen: v5e
topology: v5e:2x2
jax: 0.10.0
libtpu: 0.0.40
codegen_flags: <defaults>
</compile_context>

<pallas_src>
import functools

import jax
import jax.numpy as jnp
from jax import lax
from jax.experimental import pallas as pl
from jax.experimental.pallas import tpu as pltpu

_OBJ_TILE = 128       # obj particles per grid block (sublane axis of d2)
_FLOOR_CHUNK = 1024   # floor particles processed per in-kernel chunk (lane axis)


def _min_dist2_kernel(o_ref, f_ref, out_ref):
    """out[i, 0] = min_j || obj[i] - floor[:, j] ||^2 for one obj tile.

    obj tile : (TN, 3)  -- particles on sublanes, xyz = full last dim
    floor    : (3, M)   -- lane-dense: xyz on sublanes, particles on lanes
    out tile : (TN, 1)
    """
    o = o_ref[...]                                  # (TN, 3)
    f = f_ref[...]                                  # (3, M)
    tn = o.shape[0]
    m = f.shape[1]

    ox = o[:, 0:1]                                  # (TN, 1)
    oy = o[:, 1:2]
    oz = o[:, 2:3]

    best = jnp.full((tn, 1), jnp.inf, dtype=jnp.float32)
    fc = min(m, _FLOOR_CHUNK)
    # static (unrolled) chunk loop over the floor lanes; all bounds are
    # multiples of 128 except possibly the final ragged chunk (still x128).
    for s in range(0, m, fc):
        e = min(s + fc, m)
        dx = ox - f[0:1, s:e]                       # (TN, e-s)  VPU broadcast-sub
        dy = oy - f[1:2, s:e]
        dz = oz - f[2:3, s:e]
        d2 = dx * dx + dy * dy + dz * dz
        best = jnp.minimum(best, jnp.min(d2, axis=1, keepdims=True))
    out_ref[...] = best


@functools.lru_cache(maxsize=None)
def _make_min_dist2(n_pad, m_pad):
    """Cached pallas_call: (n_pad,3) obj x (3,m_pad) floor -> (n_pad,1) min d^2."""
    tn = min(n_pad, _OBJ_TILE)
    assert n_pad % tn == 0 and m_pad % 128 == 0
    return pl.pallas_call(
        _min_dist2_kernel,
        out_shape=jax.ShapeDtypeStruct((n_pad, 1), jnp.float32),
        grid_spec=pltpu.PrefetchScalarGridSpec(
            num_scalar_prefetch=0,
            grid=(n_pad // tn,),                               # no reduction axis
            in_specs=[
                pl.BlockSpec((tn, 3), lambda i: (i, 0)),       # obj tile
                pl.BlockSpec((3, m_pad), lambda i: (0, 0)),    # whole floor, lane-dense
            ],
            out_specs=pl.BlockSpec((tn, 1), lambda i: (i, 0)),
        ),
        compiler_params=pltpu.CompilerParams(
            dimension_semantics=("parallel",)),                # v7x: 2 TCs when n_pad > 128
    )


@functools.lru_cache(maxsize=None)
def _make_sim_fn(n_pad, m_pad, steps, dt, radius, sleep_thresh, gravity):
    """Whole simulation as one jitted device program (no host round trips)."""
    prox = _make_min_dist2(n_pad, m_pad)
    r_contact = 2.0 * radius
    r2 = r_contact * r_contact
    max_resolve = 150

    def sim(obj_padded, floor_t):
        g_dt = jnp.array(gravity, jnp.float32) * dt
        z_unit = jnp.array([0.0, 0.0, 1.0], jnp.float32)

        def contact_state(x):
            min_d2 = prox(x, floor_t)                      # (n_pad, 1)
            contact = min_d2 < r2                          # padded rows never contact
            n_contact = jnp.sum(contact.astype(jnp.int32))
            return min_d2, contact, n_contact

        # ---- inner contact-resolution loop (was a host `while True`) ----
        def resolve_cond(c):
            nc, cnt = c[7], c[8]
            return jnp.logical_and(nc > 0, cnt <= max_resolve)

        def resolve_body(c):
            x, v, fp, col, _had, d2, ct, _nc, cnt = c
            newly = jnp.logical_and(ct, jnp.logical_not(col))
            fp = jnp.where(newly, x, fp)
            col = jnp.logical_or(col, ct)
            # simple rigid contact resolution: push the body out of penetration
            # along +z and kill the rigid velocity (inelastic).
            pen = jnp.where(ct, r_contact - jnp.sqrt(d2), 0.0)
            push = jnp.max(pen) + 1e-6
            x = x + z_unit * push
            v = jnp.zeros((3,), jnp.float32)
            d2, ct, nc = contact_state(x)
            return (x, v, fp, col, jnp.asarray(True), d2, ct, nc, cnt + 1)

        # ---- outer step loop (was a host `for step_idx in range(steps)`) ----
        def step_cond(c):
            step, sleep = c[0], c[1]
            return jnp.logical_and(step < steps, jnp.logical_not(sleep))

        def step_body(c):
            step, sleep, x, v, fp, col = c
            # compute_rigid_motion_wo_contact + update_particles_state
            # TODO(synk): angular motion / inertia-tensor update of the Taichi
            # RigidBody is not reproduced (translation-only rigid integrator).
            v = v + g_dt
            x = x + v * dt
            d2, ct, nc = contact_state(x)
            inner0 = (x, v, fp, col, jnp.asarray(False), d2, ct, nc,
                      jnp.asarray(1, dtype=jnp.int32))
            x, v, fp, col, had, _d2, _ct, _nc, _cnt = lax.while_loop(
                resolve_cond, resolve_body, inner0)
            # check_sleep(sleepThreshold)
            sleep = jnp.logical_and(had, jnp.linalg.norm(v) < sleep_thresh)
            return (step + 1, sleep, x, v, fp, col)

        outer0 = (jnp.asarray(0, dtype=jnp.int32), jnp.asarray(False),
                  obj_padded, jnp.zeros((3,), jnp.float32),
                  obj_padded, jnp.zeros((n_pad, 1), dtype=jnp.bool_))
        sim_step, sleep, _x, _v, first_pos, collided = lax.while_loop(
            step_cond, step_body, outer0)
        return first_pos, collided[:, 0], sleep, sim_step

    return jax.jit(sim)


class Simulator:
    """JAX/Pallas port of the forward pass of the Taichi-backed Simulator."""

    def __init__(self, use_simulator_thresh=False, use_sleepstop=False,
                 n_max=100000):
        self.particles_radius = 0.001
        # delta_thresh only feeds the original autograd backward (delta_mask);
        # the forward outputs do not depend on it.
        self.delta_thresh = 0.0001 if use_simulator_thresh else 0.0
        self.use_sleepstop = use_sleepstop
        self.dt = 0.01
        self.steps = 100
        self.sleepThreshold = self.dt * 9.8
        self.sleep_status = False
        self.pmass = 0.01                      # cancels in the rigid update
        self.gravity = (0.0, 0.0, -9.8)
        self.n_max = n_max

    def forward(self, obj_pc, floor_pc, iter_step=0, obj_idx=0):
        obj_pc = jnp.asarray(obj_pc, jnp.float32)
        floor_pc = jnp.asarray(floor_pc, jnp.float32)
        n = obj_pc.shape[0]
        m = floor_pc.shape[0]
        n_pad = pl.cdiv(n, _OBJ_TILE) * _OBJ_TILE
        m_pad = pl.cdiv(m, 128) * 128

        # pad like the original (far-away dummy particles), with opposite signs
        # so padded obj / padded floor particles can never "collide".
        obj_p = jnp.full((n_pad, 3), 1.0e4, jnp.float32).at[:n].set(obj_pc)
        # floor passed lane-dense (3, m_pad): particles on the lane axis.
        flo_t = jnp.full((3, m_pad), -1.0e4, jnp.float32).at[:, :m].set(floor_pc.T)

        sim_fn = _make_sim_fn(n_pad, m_pad, self.steps, self.dt,
                              self.particles_radius, self.sleepThreshold,
                              self.gravity)
        first_pos, collided, sleep, sim_step = sim_fn(obj_p, flo_t)

        # two scalar host reads at the end (not per-iteration).
        self.sleep_status = bool(sleep)
        if self.use_sleepstop and int(sim_step) == 1:
            self.sleep_status = True

        output_p_x = first_pos[:n]             # (n, 3) float32
        collision_mask = collided[:n]          # (n,)   bool
        return output_p_x, collision_mask

    __call__ = forward


if __name__ == "__main__":
    key = jax.random.PRNGKey(0)
    k_xy, k_z = jax.random.split(key)

    # object: 100 particles hovering a few mm above the floor
    n_obj = 100
    xy = jax.random.uniform(k_xy, (n_obj, 2), minval=-0.01, maxval=0.01)
    z = jax.random.uniform(k_z, (n_obj, 1), minval=0.003, maxval=0.013)
    obj_pc = jnp.concatenate([xy, z], axis=-1).astype(jnp.float32)

    # floor: dense 64x64 grid of fixed particles at z = 0
    side = 64
    xs = jnp.linspace(-0.02, 0.02, side)
    fx, fy = jnp.meshgrid(xs, xs, indexing="ij")
    floor_pc = jnp.stack(
        [fx.ravel(), fy.ravel(), jnp.zeros(side * side)], axis=-1
    ).astype(jnp.float32)

    sim = Simulator()
    out_p_x, collision_mask = sim(obj_pc, floor_pc, iter_step=0, obj_idx=0)
    out_p_x, collision_mask = jax.block_until_ready((out_p_x, collision_mask))

    assert out_p_x.shape == (n_obj, 3) and out_p_x.dtype == jnp.float32
    assert collision_mask.shape == (n_obj,) and collision_mask.dtype == jnp.bool_
    print("KERNEL_OK")
</pallas_src>

<mosaic_0001>
module attributes {stable_mosaic.version = 11 : i64} {
  func.func @_min_dist2_kernel(%arg0: i32, %arg1: memref<128x3xf32, #tpu.memory_space<vmem>>, %arg2: memref<3x4096xf32, #tpu.memory_space<vmem>>, %arg3: memref<128x1xf32, #tpu.memory_space<vmem>>) attributes {dimension_semantics = [#tpu.dimension_semantics<parallel>], iteration_bounds = array<i64: 1>, scalar_prefetch = 0 : i64, scratch_operands = 0 : i64, tpu.core_type = #tpu.core_type<tc>, window_params = [{transform_indices = @transform_0, window_bounds = array<i64: 128, 3>}, {pipeline_mode = #tpu.pipeline_mode<synchronous>, transform_indices = @transform_1, window_bounds = array<i64: 3, 4096>}, {transform_indices = @transform_2, window_bounds = array<i64: 128, 1>}]} {
    %c0 = arith.constant 0 : index
    %c0_0 = arith.constant 0 : index
    %0 = vector.load %arg1[%c0, %c0_0] : memref<128x3xf32, #tpu.memory_space<vmem>>, vector<128x3xf32>
    %c0_1 = arith.constant 0 : index
    %c0_2 = arith.constant 0 : index
    %1 = vector.load %arg2[%c0_1, %c0_2] : memref<3x4096xf32, #tpu.memory_space<vmem>>, vector<3x4096xf32>
    %2 = vector.extract_strided_slice %0 {offsets = [0, 0], sizes = [128, 1], strides = [1, 1]} : vector<128x3xf32> to vector<128x1xf32>
    %3 = vector.extract_strided_slice %0 {offsets = [0, 1], sizes = [128, 1], strides = [1, 1]} : vector<128x3xf32> to vector<128x1xf32>
    %4 = vector.extract_strided_slice %0 {offsets = [0, 2], sizes = [128, 1], strides = [1, 1]} : vector<128x3xf32> to vector<128x1xf32>
    %cst = arith.constant 0x7F800000 : f32
    %5 = vector.broadcast %cst : f32 to vector<128x1xf32>
    %6 = vector.extract_strided_slice %1 {offsets = [0, 0], sizes = [1, 1024], strides = [1, 1]} : vector<3x4096xf32> to vector<1x1024xf32>
    %7 = vector.broadcast %2 : vector<128x1xf32> to vector<128x1024xf32>
    %8 = vector.broadcast %6 : vector<1x1024xf32> to vector<128x1024xf32>
    %9 = arith.subf %7, %8 : vector<128x1024xf32>
    %10 = vector.extract_strided_slice %1 {offsets = [1, 0], sizes = [1, 1024], strides = [1, 1]} : vector<3x4096xf32> to vector<1x1024xf32>
    %11 = vector.broadcast %3 : vector<128x1xf32> to vector<128x1024xf32>
    %12 = vector.broadcast %10 : vector<1x1024xf32> to vector<128x1024xf32>
    %13 = arith.subf %11, %12 : vector<128x1024xf32>
    %14 = vector.extract_strided_slice %1 {offsets = [2, 0], sizes = [1, 1024], strides = [1, 1]} : vector<3x4096xf32> to vector<1x1024xf32>
    %15 = vector.broadcast %4 : vector<128x1xf32> to vector<128x1024xf32>
    %16 = vector.broadcast %14 : vector<1x1024xf32> to vector<128x1024xf32>
    %17 = arith.subf %15, %16 : vector<128x1024xf32>
    %18 = arith.mulf %9, %9 : vector<128x1024xf32>
    %19 = arith.mulf %13, %13 : vector<128x1024xf32>
    %20 = arith.addf %18, %19 : vector<128x1024xf32>
    %21 = arith.mulf %17, %17 : vector<128x1024xf32>
    %22 = arith.addf %20, %21 : vector<128x1024xf32>
    %cst_3 = arith.constant dense<0x7F800000> : vector<128xf32>
    %23 = vector.multi_reduction <minimumf>, %22, %cst_3 [1] : vector<128x1024xf32> to vector<128xf32>
    %24 = vector.shape_cast %23 : vector<128xf32> to vector<128x1xf32>
    %25 = arith.minimumf %5, %24 : vector<128x1xf32>
    %26 = vector.extract_strided_slice %1 {offsets = [0, 1024], sizes = [1, 1024], strides = [1, 1]} : vector<3x4096xf32> to vector<1x1024xf32>
    %27 = vector.broadcast %2 : vector<128x1xf32> to vector<128x1024xf32>
    %28 = vector.broadcast %26 : vector<1x1024xf32> to vector<128x1024xf32>
    %29 = arith.subf %27, %28 : vector<128x1024xf32>
    %30 = vector.extract_strided_slice %1 {offsets = [1, 1024], sizes = [1, 1024], strides = [1, 1]} : vector<3x4096xf32> to vector<1x1024xf32>
    %31 = vector.broadcast %3 : vector<128x1xf32> to vector<128x1024xf32>
    %32 = vector.broadcast %30 : vector<1x1024xf32> to vector<128x1024xf32>
    %33 = arith.subf %31, %32 : vector<128x1024xf32>
    %34 = vector.extract_strided_slice %1 {offsets = [2, 1024], sizes = [1, 1024], strides = [1, 1]} : vector<3x4096xf32> to vector<1x1024xf32>
    %35 = vector.broadcast %4 : vector<128x1xf32> to vector<128x1024xf32>
    %36 = vector.broadcast %34 : vector<1x1024xf32> to vector<128x1024xf32>
    %37 = arith.subf %35, %36 : vector<128x1024xf32>
    %38 = arith.mulf %29, %29 : vector<128x1024xf32>
    %39 = arith.mulf %33, %33 : vector<128x1024xf32>
    %40 = arith.addf %38, %39 : vector<128x1024xf32>
    %41 = arith.mulf %37, %37 : vector<128x1024xf32>
    %42 = arith.addf %40, %41 : vector<128x1024xf32>
    %cst_4 = arith.constant dense<0x7F800000> : vector<128xf32>
    %43 = vector.multi_reduction <minimumf>, %42, %cst_4 [1] : vector<128x1024xf32> to vector<128xf32>
    %44 = vector.shape_cast %43 : vector<128xf32> to vector<128x1xf32>
    %45 = arith.minimumf %25, %44 : vector<128x1xf32>
    %46 = vector.extract_strided_slice %1 {offsets = [0, 2048], sizes = [1, 1024], strides = [1, 1]} : vector<3x4096xf32> to vector<1x1024xf32>
    %47 = vector.broadcast %2 : vector<128x1xf32> to vector<128x1024xf32>
    %48 = vector.broadcast %46 : vector<1x1024xf32> to vector<128x1024xf32>
    %49 = arith.subf %47, %48 : vector<128x1024xf32>
    %50 = vector.extract_strided_slice %1 {offsets = [1, 2048], sizes = [1, 1024], strides = [1, 1]} : vector<3x4096xf32> to vector<1x1024xf32>
    %51 = vector.broadcast %3 : vector<128x1xf32> to vector<128x1024xf32>
    %52 = vector.broadcast %50 : vector<1x1024xf32> to vector<128x1024xf32>
    %53 = arith.subf %51, %52 : vector<128x1024xf32>
    %54 = vector.extract_strided_slice %1 {offsets = [2, 2048], sizes = [1, 1024], strides = [1, 1]} : vector<3x4096xf32> to vector<1x1024xf32>
    %55 = vector.broadcast %4 : vector<128x1xf32> to vector<128x1024xf32>
    %56 = vector.broadcast %54 : vector<1x1024xf32> to vector<128x1024xf32>
    %57 = arith.subf %55, %56 : vector<128x1024xf32>
    %58 = arith.mulf %49, %49 : vector<128x1024xf32>
    %59 = arith.mulf %53, %53 : vector<128x1024xf32>
    %60 = arith.addf %58, %59 : vector<128x1024xf32>
    %61 = arith.mulf %57, %57 : vector<128x1024xf32>
    %62 = arith.addf %60, %61 : vector<128x1024xf32>
    %cst_5 = arith.constant dense<0x7F800000> : vector<128xf32>
    %63 = vector.multi_reduction <minimumf>, %62, %cst_5 [1] : vector<128x1024xf32> to vector<128xf32>
    %64 = vector.shape_cast %63 : vector<128xf32> to vector<128x1xf32>
    %65 = arith.minimumf %45, %64 : vector<128x1xf32>
    %66 = vector.extract_strided_slice %1 {offsets = [0, 3072], sizes = [1, 1024], strides = [1, 1]} : vector<3x4096xf32> to vector<1x1024xf32>
    %67 = vector.broadcast %2 : vector<128x1xf32> to vector<128x1024xf32>
    %68 = vector.broadcast %66 : vector<1x1024xf32> to vector<128x1024xf32>
    %69 = arith.subf %67, %68 : vector<128x1024xf32>
    %70 = vector.extract_strided_slice %1 {offsets = [1, 3072], sizes = [1, 1024], strides = [1, 1]} : vector<3x4096xf32> to vector<1x1024xf32>
    %71 = vector.broadcast %3 : vector<128x1xf32> to vector<128x1024xf32>
    %72 = vector.broadcast %70 : vector<1x1024xf32> to vector<128x1024xf32>
    %73 = arith.subf %71, %72 : vector<128x1024xf32>
    %74 = vector.extract_strided_slice %1 {offsets = [2, 3072], sizes = [1, 1024], strides = [1, 1]} : vector<3x4096xf32> to vector<1x1024xf32>
    %75 = vector.broadcast %4 : vector<128x1xf32> to vector<128x1024xf32>
    %76 = vector.broadcast %74 : vector<1x1024xf32> to vector<128x1024xf32>
    %77 = arith.subf %75, %76 : vector<128x1024xf32>
    %78 = arith.mulf %69, %69 : vector<128x1024xf32>
    %79 = arith.mulf %73, %73 : vector<128x1024xf32>
    %80 = arith.addf %78, %79 : vector<128x1024xf32>
    %81 = arith.mulf %77, %77 : vector<128x1024xf32>
    %82 = arith.addf %80, %81 : vector<128x1024xf32>
    %cst_6 = arith.constant dense<0x7F800000> : vector<128xf32>
    %83 = vector.multi_reduction <minimumf>, %82, %cst_6 [1] : vector<128x1024xf32> to vector<128xf32>
    %84 = vector.shape_cast %83 : vector<128xf32> to vector<128x1xf32>
    %85 = arith.minimumf %65, %84 : vector<128x1xf32>
    %c0_7 = arith.constant 0 : index
    %c0_8 = arith.constant 0 : index
    %86 = vector.load %arg3[%c0_7, %c0_8] : memref<128x1xf32, #tpu.memory_space<vmem>>, vector<128x1xf32>
    tpu.vector_store %arg3[%c0_7, %c0_8], %85 {strides = array<i32>} : memref<128x1xf32, #tpu.memory_space<vmem>>, vector<128x1xf32>,
    return
  }
  func.func @transform_0(%arg0: i32) -> (i32, i32) {
    %c0_i32 = arith.constant 0 : i32
    %c0_i32_0 = arith.constant 0 : i32
    return %arg0, %c0_i32 : i32, i32
  }
  func.func @transform_1(%arg0: i32) -> (i32, i32) {
    %c0_i32 = arith.constant 0 : i32
    %c0_i32_0 = arith.constant 0 : i32
    %c0_i32_1 = arith.constant 0 : i32
    return %c0_i32, %c0_i32_0 : i32, i32
  }
  func.func @transform_2(%arg0: i32) -> (i32, i32) {
    %c0_i32 = arith.constant 0 : i32
    %c0_i32_0 = arith.constant 0 : i32
    return %arg0, %c0_i32 : i32, i32
  }
}

</mosaic_0001>

<llo_original>
// kernel: body.6
$region0: #{body.6}
  #allocation0 [shape = 'u32[]', space=smem, size = 0x4, offset = 0x4, fixed_abs, tag = 'smem constant byte address 0x4 - core index']
  #allocation1 [shape = 'u32[72,128]{1,0:T(1,128)}', space=vmem, size = 0x9000, scoped, tag = 'internal scratch']
  %s0 = inlined_call_operand.vmem [shape: f32[128,3], index: 0, kind: input, shape index: {}]
  %s1 = inlined_call_operand.vmem [shape: f32[3,4096], index: 1, kind: input, shape index: {}]
  %s2 = inlined_call_operand.vmem [shape: f32[128,1], index: 2, kind: output, shape index: {}]
  %s3 = sld [smem:[#allocation0]]
  $region18: #{body.6} parent=0
    _
  %s5 = ssub.s32 1, %s3
  %s6 = scalar_select 0, %s5, %s3
  // Predicated region
  $region2: #{body.6} parent=0 // pred_check
    _
  $region3: #{body.6} parent=0 // pred_check_branch
    %8 = sbr.rel (0) target = $region5
  $region4: #{body.6} parent=0 // pred_region
    _
  $region5: #{body.6} parent=0 // pred_fallthru
    _
  // Predicated region
  $region6: #{body.6} parent=0 // pred_check
    _
  $region7: #{body.6} parent=0 // pred_check_branch
    %10 = sbr.rel (0) target = $region9
  $region8: #{body.6} parent=0 // pred_region
    _
  $region9: #{body.6} parent=0 // pred_fallthru
    _
  %v11 = vld [vmem:[%s0] sm:$0xff]
  %v12 = vld [vmem:[%s0 + $0x8] sm:$0xff]
  %v13 = vld [vmem:[%s0 + $0x10] sm:$0xff]
  %v14 = vld [vmem:[%s0 + $0x18] sm:$0xff]
  %v15 = vld [vmem:[%s0 + $0x20] sm:$0xff]
  %v16 = vld [vmem:[%s0 + $0x28] sm:$0xff]
  %v17 = vld [vmem:[%s0 + $0x30] sm:$0xff]
  %v18 = vld [vmem:[%s0 + $0x38] sm:$0xff]
  %v19 = vld [vmem:[%s0 + $0x40] sm:$0xff]
  %v20 = vld [vmem:[%s0 + $0x48] sm:$0xff]
  %v21 = vld [vmem:[%s0 + $0x50] sm:$0xff]
  %v22 = vld [vmem:[%s0 + $0x58] sm:$0xff]
  %v23 = vld [vmem:[%s0 + $0x60] sm:$0xff]
  %v24 = vld [vmem:[%s0 + $0x68] sm:$0xff]
  %v25 = vld [vmem:[%s0 + $0x70] sm:$0xff]
  %v26 = vld [vmem:[%s0 + $0x78] sm:$0xff]
  %v27 = vld [vmem:[%s1] sm:$0x77]
  %v28 = vld [vmem:[%s1 + $0x8] sm:$0x77]
  %v29 = vld [vmem:[%s1 + $0x10] sm:$0x77]
  %v30 = vld [vmem:[%s1 + $0x18] sm:$0x77]
  %v31 = vld [vmem:[%s1 + $0x20] sm:$0x77]
  %v32 = vld [vmem:[%s1 + $0x28] sm:$0x77]
  %v33 = vld [vmem:[%s1 + $0x30] sm:$0x77]
  %v34 = vld [vmem:[%s1 + $0x38] sm:$0x77]
  %v35 = vld [vmem:[%s1 + $0x40] sm:$0x77]
  %v36 = vld [vmem:[%s1 + $0x48] sm:$0x77]
  %v37 = vld [vmem:[%s1 + $0x50] sm:$0x77]
  %v38 = vld [vmem:[%s1 + $0x58] sm:$0x77]
  %v39 = vld [vmem:[%s1 + $0x60] sm:$0x77]
  %v40 = vld [vmem:[%s1 + $0x68] sm:$0x77]
  %v41 = vld [vmem:[%s1 + $0x70] sm:$0x77]
  %v42 = vld [vmem:[%s1 + $0x78] sm:$0x77]
  %44 = vset.pattern.permute.xlu0 0
  %45 = vperm.xlu0 %44, %v11
  %v46 = vpop.permute.xlu0 %45
  %49 = vset.pattern.permute.xlu0 0
  %50 = vperm.xlu0 %49, %v12
  %v51 = vpop.permute.xlu0 %50
  %54 = vset.pattern.permute.xlu0 0
  %55 = vperm.xlu0 %54, %v13
  %v56 = vpop.permute.xlu0 %55
  %59 = vset.pattern.permute.xlu0 0
  %60 = vperm.xlu0 %59, %v14
  %v61 = vpop.permute.xlu0 %60
  %64 = vset.pattern.permute.xlu0 0
  %65 = vperm.xlu0 %64, %v15
  %v66 = vpop.permute.xlu0 %65
  %69 = vset.pattern.permute.xlu0 0
  %70 = vperm.xlu0 %69, %v16
  %v71 = vpop.permute.xlu0 %70
  %74 = vset.pattern.permute.xlu0 0
  %75 = vperm.xlu0 %74, %v17
  %v76 = vpop.permute.xlu0 %75
  %79 = vset.pattern.permute.xlu0 0
  %80 = vperm.xlu0 %79, %v18
  %v81 = vpop.permute.xlu0 %80
  %84 = vset.pattern.permute.xlu0 0
  %85 = vperm.xlu0 %84, %v19
  %v86 = vpop.permute.xlu0 %85
  %89 = vset.pattern.permute.xlu0 0
  %90 = vperm.xlu0 %89, %v20
  %v91 = vpop.permute.xlu0 %90
  %94 = vset.pattern.permute.xlu0 0
  %95 = vperm.xlu0 %94, %v21
  %v96 = vpop.permute.xlu0 %95
  %99 = vset.pattern.permute.xlu0 0
  %100 = vperm.xlu0 %99, %v22
  %v101 = vpop.permute.xlu0 %100
  %104 = vset.pattern.permute.xlu0 0
  %105 = vperm.xlu0 %104, %v23
  %v106 = vpop.permute.xlu0 %105
  %109 = vset.pattern.permute.xlu0 0
  %110 = vperm.xlu0 %109, %v24
  %v111 = vpop.permute.xlu0 %110
  %114 = vset.pattern.permute.xlu0 0
  %115 = vperm.xlu0 %114, %v25
  %v116 = vpop.permute.xlu0 %115
  %119 = vset.pattern.permute.xlu0 0
  %120 = vperm.xlu0 %119, %v26
  %v121 = vpop.permute.xlu0 %120
  %v127 = vperm.slane %v27, 0
  %v128 = vperm.slane %v27, 4
  %v129 = vperm.slane %v28, 0
  %v130 = vperm.slane %v28, 4
  %v131 = vperm.slane %v29, 0
  %v132 = vperm.slane %v29, 4
  %v133 = vperm.slane %v30, 0
  %v134 = vperm.slane %v30, 4
  %v143 = vperm.slane %v127, 0
  %v144 = vperm.slane %v128, 0
  %v145 = vperm.slane %v129, 0
  %v146 = vperm.slane %v130, 0
  %v147 = vperm.slane %v131, 0
  %v148 = vperm.slane %v132, 0
  %v149 = vperm.slane %v133, 0
  %v150 = vperm.slane %v134, 0
  %v151 = vsub.f32 %v46, %v143
  %v152 = vsub.f32 %v46, %v144
  %v153 = vsub.f32 %v46, %v145
  %v154 = vsub.f32 %v46, %v146
  %v155 = vsub.f32 %v46, %v147
  %v156 = vsub.f32 %v46, %v148
  %v157 = vsub.f32 %v46, %v149
  %v158 = vsub.f32 %v46, %v150
  %v159 = vsub.f32 %v51, %v143
  %v160 = vsub.f32 %v51, %v144
  %v161 = vsub.f32 %v51, %v145
  %v162 = vsub.f32 %v51, %v146
  %v163 = vsub.f32 %v51, %v147
  %v164 = vsub.f32 %v51, %v148
  %v165 = vsub.f32 %v51, %v149
  %v166 = vsub.f32 %v51, %v150
  %v167 = vsub.f32 %v56, %v143
  %v168 = vsub.f32 %v56, %v144
  %v169 = vsub.f32 %v56, %v145
  %v170 = vsub.f32 %v56, %v146
  %v171 = vsub.f32 %v56, %v147
  %v172 = vsub.f32 %v56, %v148
  %v173 = vsub.f32 %v56, %v149
  %v174 = vsub.f32 %v56, %v150
  %v175 = vsub.f32 %v61, %v143
  %v176 = vsub.f32 %v61, %v144
  %v177 = vsub.f32 %v61, %v145
  %v178 = vsub.f32 %v61, %v146
  %v179 = vsub.f32 %v61, %v147
  %v180 = vsub.f32 %v61, %v148
  %v181 = vsub.f32 %v61, %v149
  %v182 = vsub.f32 %v61, %v150
  %v183 = vsub.f32 %v66, %v143
  %v184 = vsub.f32 %v66, %v144
  %v185 = vsub.f32 %v66, %v145
  %v186 = vsub.f32 %v66, %v146
  %v187 = vsub.f32 %v66, %v147
  %v188 = vsub.f32 %v66, %v148
  %v189 = vsub.f32 %v66, %v149
  %v190 = vsub.f32 %v66, %v150
  %v191 = vsub.f32 %v71, %v143
  %v192 = vsub.f32 %v71, %v144
  %v193 = vsub.f32 %v71, %v145
  %v194 = vsub.f32 %v71, %v146
  %v195 = vsub.f32 %v71, %v147
  %v196 = vsub.f32 %v71, %v148
  %v197 = vsub.f32 %v71, %v149
  %v198 = vsub.f32 %v71, %v150
  %v199 = vsub.f32 %v76, %v143
  %v200 = vsub.f32 %v76, %v144
  %v201 = vsub.f32 %v76, %v145
  %v202 = vsub.f32 %v76, %v146
  %v203 = vsub.f32 %v76, %v147
  %v204 = vsub.f32 %v76, %v148
  %v205 = vsub.f32 %v76, %v149
  %v206 = vsub.f32 %v76, %v150
  %v207 = vsub.f32 %v81, %v143
  %v208 = vsub.f32 %v81, %v144
  %v209 = vsub.f32 %v81, %v145
  %v210 = vsub.f32 %v81, %v146
  %v211 = vsub.f32 %v81, %v147
  %v212 = vsub.f32 %v81, %v148
  %v213 = vsub.f32 %v81, %v149
  %v214 = vsub.f32 %v81, %v150
  %v215 = vsub.f32 %v86, %v143
  %v216 = vsub.f32 %v86, %v144
  %v217 = vsub.f32 %v86, %v145
  %v218 = vsub.f32 %v86, %v146
  %v219 = vsub.f32 %v86, %v147
  %v220 = vsub.f32 %v86, %v148
  %v221 = vsub.f32 %v86, %v149
  %v222 = vsub.f32 %v86, %v150
  %v223 = vsub.f32 %v91, %v143
  %v224 = vsub.f32 %v91, %v144
  %v225 = vsub.f32 %v91, %v145
  %v226 = vsub.f32 %v91, %v146
  %v227 = vsub.f32 %v91, %v147
  %v228 = vsub.f32 %v91, %v148
  %v229 = vsub.f32 %v91, %v149
  %v230 = vsub.f32 %v91, %v150
  %v231 = vsub.f32 %v96, %v143
  %v232 = vsub.f32 %v96, %v144
  %v233 = vsub.f32 %v96, %v145
  %v234 = vsub.f32 %v96, %v146
  %v235 = vsub.f32 %v96, %v147
  %v236 = vsub.f32 %v96, %v148
  %v237 = vsub.f32 %v96, %v149
  %v238 = vsub.f32 %v96, %v150
  %v239 = vsub.f32 %v101, %v143
  %v240 = vsub.f32 %v101, %v144
  %v241 = vsub.f32 %v101, %v145
  %v242 = vsub.f32 %v101, %v146
  %v243 = vsub.f32 %v101, %v147
  %v244 = vsub.f32 %v101, %v148
  %v245 = vsub.f32 %v101, %v149
  %v246 = vsub.f32 %v101, %v150
  %v247 = vsub.f32 %v106, %v143
  %v248 = vsub.f32 %v106, %v144
  %v249 = vsub.f32 %v106, %v145
  %v250 = vsub.f32 %v106, %v146
  %v251 = vsub.f32 %v106, %v147
  %v252 = vsub.f32 %v106, %v148
  %v253 = vsub.f32 %v106, %v149
  %v254 = vsub.f32 %v106, %v150
  %v255 = vsub.f32 %v111, %v143
  %v256 = vsub.f32 %v111, %v144
  %v257 = vsub.f32 %v111, %v145
  %v258 = vsub.f32 %v111, %v146
  %v259 = vsub.f32 %v111, %v147
  %v260 = vsub.f32 %v111, %v148
  %v261 = vsub.f32 %v111, %v149
  %v262 = vsub.f32 %v111, %v150
  %v263 = vsub.f32 %v116, %v143
  %v264 = vsub.f32 %v116, %v144
  %v265 = vsub.f32 %v116, %v145
  %v266 = vsub.f32 %v116, %v146
  %v267 = vsub.f32 %v116, %v147
  %v268 = vsub.f32 %v116, %v148
  %v269 = vsub.f32 %v116, %v149
  %v270 = vsub.f32 %v116, %v150
  %v271 = vsub.f32 %v121, %v143
  %v272 = vsub.f32 %v121, %v144
  %v273 = vsub.f32 %v121, %v145
  %v274 = vsub.f32 %v121, %v146
  %v275 = vsub.f32 %v121, %v147
  %v276 = vsub.f32 %v121, %v148
  %v277 = vsub.f32 %v121, %v149
  %v278 = vsub.f32 %v121, %v150
  %279 = vset.pattern.permute.xlu0 1
  %280 = vperm.xlu0 %279, %v11
  %v281 = vpop.permute.xlu0 %280
  %283 = vset.pattern.permute.xlu0 1
  %284 = vperm.xlu0 %283, %v12
  %v285 = vpop.permute.xlu0 %284
  %287 = vset.pattern.permute.xlu0 1
  %288 = vperm.xlu0 %287, %v13
  %v289 = vpop.permute.xlu0 %288
  %291 = vset.pattern.permute.xlu0 1
  %292 = vperm.xlu0 %291, %v14
  %v293 = vpop.permute.xlu0 %292
  %295 = vset.pattern.permute.xlu0 1
  %296 = vperm.xlu0 %295, %v15
  %v297 = vpop.permute.xlu0 %296
  %299 = vset.pattern.permute.xlu0 1
  %300 = vperm.xlu0 %299, %v16
  %v301 = vpop.permute.xlu0 %300
  %303 = vset.pattern.permute.xlu0 1
  %304 = vperm.xlu0 %303, %v17
  %v305 = vpop.permute.xlu0 %304
  %307 = vset.pattern.permute.xlu0 1
  %308 = vperm.xlu0 %307, %v18
  %v309 = vpop.permute.xlu0 %308
  %311 = vset.pattern.permute.xlu0 1
  %312 = vperm.xlu0 %311, %v19
  %v313 = vpop.permute.xlu0 %312
  %315 = vset.pattern.permute.xlu0 1
  %316 = vperm.xlu0 %315, %v20
  %v317 = vpop.permute.xlu0 %316
  %319 = vset.pattern.permute.xlu0 1
  %320 = vperm.xlu0 %319, %v21
  %v321 = vpop.permute.xlu0 %320
  %323 = vset.pattern.permute.xlu0 1
  %324 = vperm.xlu0 %323, %v22
  %v325 = vpop.permute.xlu0 %324
  %327 = vset.pattern.permute.xlu0 1
  %328 = vperm.xlu0 %327, %v23
  %v329 = vpop.permute.xlu0 %328
  %331 = vset.pattern.permute.xlu0 1
  %332 = vperm.xlu0 %331, %v24
  %v333 = vpop.permute.xlu0 %332
  %335 = vset.pattern.permute.xlu0 1
  %336 = vperm.xlu0 %335, %v25
  %v337 = vpop.permute.xlu0 %336
  %339 = vset.pattern.permute.xlu0 1
  %340 = vperm.xlu0 %339, %v26
  %v341 = vpop.permute.xlu0 %340
  %v343 = vperm.slane %v27, 1
  %v344 = vperm.slane %v27, 5
  %v345 = vperm.slane %v28, 1
  %v346 = vperm.slane %v28, 5
  %v347 = vperm.slane %v29, 1
  %v348 = vperm.slane %v29, 5
  %v349 = vperm.slane %v30, 1
  %v350 = vperm.slane %v30, 5
  %v359 = vperm.slane %v343, 1
  %v360 = vperm.slane %v344, 1
  %v361 = vperm.slane %v345, 1
  %v362 = vperm.slane %v346, 1
  %v363 = vperm.slane %v347, 1
  %v364 = vperm.slane %v348, 1
  %v365 = vperm.slane %v349, 1
  %v366 = vperm.slane %v350, 1
  %v367 = vsub.f32 %v281, %v359
  %v368 = vsub.f32 %v281, %v360
  %v369 = vsub.f32 %v281, %v361
  %v370 = vsub.f32 %v281, %v362
  %v371 = vsub.f32 %v281, %v363
  %v372 = vsub.f32 %v281, %v364
  %v373 = vsub.f32 %v281, %v365
  %v374 = vsub.f32 %v281, %v366
  %v375 = vsub.f32 %v285, %v359
  %v376 = vsub.f32 %v285, %v360
  %v377 = vsub.f32 %v285, %v361
  %v378 = vsub.f32 %v285, %v362
  %v379 = vsub.f32 %v285, %v363
  %v380 = vsub.f32 %v285, %v364
  %v381 = vsub.f32 %v285, %v365
  %v382 = vsub.f32 %v285, %v366
  %v383 = vsub.f32 %v289, %v359
  %v384 = vsub.f32 %v289, %v360
  %v385 = vsub.f32 %v289, %v361
  %v386 = vsub.f32 %v289, %v362
  %v387 = vsub.f32 %v289, %v363
  %v388 = vsub.f32 %v289, %v364
  %v389 = vsub.f32 %v289, %v365
  %v390 = vsub.f32 %v289, %v366
  %v391 = vsub.f32 %v293, %v359
  %v392 = vsub.f32 %v293, %v360
  %v393 = vsub.f32 %v293, %v361
  %v394 = vsub.f32 %v293, %v362
  %v395 = vsub.f32 %v293, %v363
  %v396 = vsub.f32 %v293, %v364
  %v397 = vsub.f32 %v293, %v365
  %v398 = vsub.f32 %v293, %v366
  %v399 = vsub.f32 %v297, %v359
  %v400 = vsub.f32 %v297, %v360
  %v401 = vsub.f32 %v297, %v361
  %v402 = vsub.f32 %v297, %v362
  %v403 = vsub.f32 %v297, %v363
  %v404 = vsub.f32 %v297, %v364
  %v405 = vsub.f32 %v297, %v365
  %v406 = vsub.f32 %v297, %v366
  %v407 = vsub.f32 %v301, %v359
  %v408 = vsub.f32 %v301, %v360
  %v409 = vsub.f32 %v301, %v361
  %v410 = vsub.f32 %v301, %v362
  %v411 = vsub.f32 %v301, %v363
  %v412 = vsub.f32 %v301, %v364
  %v413 = vsub.f32 %v301, %v365
  %v414 = vsub.f32 %v301, %v366
  %v415 = vsub.f32 %v305, %v359
  %v416 = vsub.f32 %v305, %v360
  %v417 = vsub.f32 %v305, %v361
  %v418 = vsub.f32 %v305, %v362
  %v419 = vsub.f32 %v305, %v363
  %v420 = vsub.f32 %v305, %v364
  %v421 = vsub.f32 %v305, %v365
  %v422 = vsub.f32 %v305, %v366
  %v423 = vsub.f32 %v309, %v359
  %v424 = vsub.f32 %v309, %v360
  %v425 = vsub.f32 %v309, %v361
  %v426 = vsub.f32 %v309, %v362
  %v427 = vsub.f32 %v309, %v363
  %v428 = vsub.f32 %v309, %v364
  %v429 = vsub.f32 %v309, %v365
  %v430 = vsub.f32 %v309, %v366
  %v431 = vsub.f32 %v313, %v359
  %v432 = vsub.f32 %v313, %v360
  %v433 = vsub.f32 %v313, %v361
  %v434 = vsub.f32 %v313, %v362
  %v435 = vsub.f32 %v313, %v363
  %v436 = vsub.f32 %v313, %v364
  %v437 = vsub.f32 %v313, %v365
  %v438 = vsub.f32 %v313, %v366
  %v439 = vsub.f32 %v317, %v359
  %v440 = vsub.f32 %v317, %v360
  %v441 = vsub.f32 %v317, %v361
  %v442 = vsub.f32 %v317, %v362
  %v443 = vsub.f32 %v317, %v363
  %v444 = vsub.f32 %v317, %v364
  %v445 = vsub.f32 %v317, %v365
  %v446 = vsub.f32 %v317, %v366
  %v447 = vsub.f32 %v321, %v359
  %v448 = vsub.f32 %v321, %v360
  %v449 = vsub.f32 %v321, %v361
  %v450 = vsub.f32 %v321, %v362
  %v451 = vsub.f32 %v321, %v363
  %v452 = vsub.f32 %v321, %v364
  %v453 = vsub.f32 %v321, %v365
  %v454 = vsub.f32 %v321, %v366
  %v455 = vsub.f32 %v325, %v359
  %v456 = vsub.f32 %v325, %v360
  %v457 = vsub.f32 %v325, %v361
  %v458 = vsub.f32 %v325, %v362
  %v459 = vsub.f32 %v325, %v363
  %v460 = vsub.f32 %v325, %v364
  %v461 = vsub.f32 %v325, %v365
  %v462 = vsub.f32 %v325, %v366
  %v463 = vsub.f32 %v329, %v359
  %v464 = vsub.f32 %v329, %v360
  %v465 = vsub.f32 %v329, %v361
  %v466 = vsub.f32 %v329, %v362
  %v467 = vsub.f32 %v329, %v363
  %v468 = vsub.f32 %v329, %v364
  %v469 = vsub.f32 %v329, %v365
  %v470 = vsub.f32 %v329, %v366
  %v471 = vsub.f32 %v333, %v359
  %v472 = vsub.f32 %v333, %v360
  %v473 = vsub.f32 %v333, %v361
  %v474 = vsub.f32 %v333, %v362
  %v475 = vsub.f32 %v333, %v363
  %v476 = vsub.f32 %v333, %v364
  %v477 = vsub.f32 %v333, %v365
  %v478 = vsub.f32 %v333, %v366
  %v479 = vsub.f32 %v337, %v359
  %v480 = vsub.f32 %v337, %v360
  %v481 = vsub.f32 %v337, %v361
  %v482 = vsub.f32 %v337, %v362
  %v483 = vsub.f32 %v337, %v363
  %v484 = vsub.f32 %v337, %v364
  %v485 = vsub.f32 %v337, %v365
  %v486 = vsub.f32 %v337, %v366
  %v487 = vsub.f32 %v341, %v359
  %v488 = vsub.f32 %v341, %v360
  %v489 = vsub.f32 %v341, %v361
  %v490 = vsub.f32 %v341, %v362
  %v491 = vsub.f32 %v341, %v363
  %v492 = vsub.f32 %v341, %v364
  %v493 = vsub.f32 %v341, %v365
  %v494 = vsub.f32 %v341, %v366
  %495 = vset.pattern.permute.xlu0 2
  %496 = vperm.xlu0 %495, %v11
  %v497 = vpop.permute.xlu0 %496
  %499 = vset.pattern.permute.xlu0 2
  %500 = vperm.xlu0 %499, %v12
  %v501 = vpop.permute.xlu0 %500
  %503 = vset.pattern.permute.xlu0 2
  %504 = vperm.xlu0 %503, %v13
  %v505 = vpop.permute.xlu0 %504
  %507 = vset.pattern.permute.xlu0 2
  %508 = vperm.xlu0 %507, %v14
  %v509 = vpop.permute.xlu0 %508
  %511 = vset.pattern.permute.xlu0 2
  %512 = vperm.xlu0 %511, %v15
  %v513 = vpop.permute.xlu0 %512
  %515 = vset.pattern.permute.xlu0 2
  %516 = vperm.xlu0 %515, %v16
  %v517 = vpop.permute.xlu0 %516
  %519 = vset.pattern.permute.xlu0 2
  %520 = vperm.xlu0 %519, %v17
  %v521 = vpop.permute.xlu0 %520
  %523 = vset.pattern.permute.xlu0 2
  %524 = vperm.xlu0 %523, %v18
  %v525 = vpop.permute.xlu0 %524
  %527 = vset.pattern.permute.xlu0 2
  %528 = vperm.xlu0 %527, %v19
  %v529 = vpop.permute.xlu0 %528
  %531 = vset.pattern.permute.xlu0 2
  %532 = vperm.xlu0 %531, %v20
  %v533 = vpop.permute.xlu0 %532
  %535 = vset.pattern.permute.xlu0 2
  %536 = vperm.xlu0 %535, %v21
  %v537 = vpop.permute.xlu0 %536
  %539 = vset.pattern.permute.xlu0 2
  %540 = vperm.xlu0 %539, %v22
  %v541 = vpop.permute.xlu0 %540
  %543 = vset.pattern.permute.xlu0 2
  %544 = vperm.xlu0 %543, %v23
  %v545 = vpop.permute.xlu0 %544
  %547 = vset.pattern.permute.xlu0 2
  %548 = vperm.xlu0 %547, %v24
  %v549 = vpop.permute.xlu0 %548
  %551 = vset.pattern.permute.xlu0 2
  %552 = vperm.xlu0 %551, %v25
  %v553 = vpop.permute.xlu0 %552
  %555 = vset.pattern.permute.xlu0 2
  %556 = vperm.xlu0 %555, %v26
  %v557 = vpop.permute.xlu0 %556
  %v559 = vperm.slane %v27, 2
  %v560 = vperm.slane %v27, 6
  %v561 = vperm.slane %v28, 2
  %v562 = vperm.slane %v28, 6
  %v563 = vperm.slane %v29, 2
  %v564 = vperm.slane %v29, 6
  %v565 = vperm.slane %v30, 2
  %v566 = vperm.slane %v30, 6
  %v575 = vperm.slane %v559, 2
  %v576 = vperm.slane %v560, 2
  %v577 = vperm.slane %v561, 2
  %v578 = vperm.slane %v562, 2
  %v579 = vperm.slane %v563, 2
  %v580 = vperm.slane %v564, 2
  %v581 = vperm.slane %v565, 2
  %v582 = vperm.slane %v566, 2
  %v583 = vsub.f32 %v497, %v575
  %v584 = vsub.f32 %v497, %v576
  %v585 = vsub.f32 %v497, %v577
  %v586 = vsub.f32 %v497, %v578
  %v587 = vsub.f32 %v497, %v579
  %v588 = vsub.f32 %v497, %v580
  %v589 = vsub.f32 %v497, %v581
  %v590 = vsub.f32 %v497, %v582
  %v591 = vsub.f32 %v501, %v575
  %v592 = vsub.f32 %v501, %v576
  %v593 = vsub.f32 %v501, %v577
  %v594 = vsub.f32 %v501, %v578
  %v595 = vsub.f32 %v501, %v579
  %v596 = vsub.f32 %v501, %v580
  %v597 = vsub.f32 %v501, %v581
  %v598 = vsub.f32 %v501, %v582
  %v599 = vsub.f32 %v505, %v575
  %v600 = vsub.f32 %v505, %v576
  %v601 = vsub.f32 %v505, %v577
  %v602 = vsub.f32 %v505, %v578
  %v603 = vsub.f32 %v505, %v579
  %v604 = vsub.f32 %v505, %v580
  %v605 = vsub.f32 %v505, %v581
  %v606 = vsub.f32 %v505, %v582
  %v607 = vsub.f32 %v509, %v575
  %v608 = vsub.f32 %v509, %v576
  %v609 = vsub.f32 %v509, %v577
  %v610 = vsub.f32 %v509, %v578
  %v611 = vsub.f32 %v509, %v579
  %v612 = vsub.f32 %v509, %v580
  %v613 = vsub.f32 %v509, %v581
  %v614 = vsub.f32 %v509, %v582
  %v615 = vsub.f32 %v513, %v575
  %v616 = vsub.f32 %v513, %v576
  %v617 = vsub.f32 %v513, %v577
  %v618 = vsub.f32 %v513, %v578
  %v619 = vsub.f32 %v513, %v579
  %v620 = vsub.f32 %v513, %v580
  %v621 = vsub.f32 %v513, %v581
  %v622 = vsub.f32 %v513, %v582
  %v623 = vsub.f32 %v517, %v575
  %v624 = vsub.f32 %v517, %v576
  %v625 = vsub.f32 %v517, %v577
  %v626 = vsub.f32 %v517, %v578
  %v627 = vsub.f32 %v517, %v579
  %v628 = vsub.f32 %v517, %v580
  %v629 = vsub.f32 %v517, %v581
  %v630 = vsub.f32 %v517, %v582
  %v631 = vsub.f32 %v521, %v575
  %v632 = vsub.f32 %v521, %v576
  %v633 = vsub.f32 %v521, %v577
  %v634 = vsub.f32 %v521, %v578
  %v635 = vsub.f32 %v521, %v579
  %v636 = vsub.f32 %v521, %v580
  %v637 = vsub.f32 %v521, %v581
  %v638 = vsub.f32 %v521, %v582
  %v639 = vsub.f32 %v525, %v575
  %v640 = vsub.f32 %v525, %v576
  %v641 = vsub.f32 %v525, %v577
  %v642 = vsub.f32 %v525, %v578
  %v643 = vsub.f32 %v525, %v579
  %v644 = vsub.f32 %v525, %v580
  %v645 = vsub.f32 %v525, %v581
  %v646 = vsub.f32 %v525, %v582
  %v647 = vsub.f32 %v529, %v575
  %v648 = vsub.f32 %v529, %v576
  %v649 = vsub.f32 %v529, %v577
  %v650 = vsub.f32 %v529, %v578
  %v651 = vsub.f32 %v529, %v579
  %v652 = vsub.f32 %v529, %v580
  %v653 = vsub.f32 %v529, %v581
  %v654 = vsub.f32 %v529, %v582
  %v655 = vsub.f32 %v533, %v575
  %v656 = vsub.f32 %v533, %v576
  %v657 = vsub.f32 %v533, %v577
  %v658 = vsub.f32 %v533, %v578
  %v659 = vsub.f32 %v533, %v579
  %v660 = vsub.f32 %v533, %v580
  %v661 = vsub.f32 %v533, %v581
  %v662 = vsub.f32 %v533, %v582
  %v663 = vsub.f32 %v537, %v575
  %v664 = vsub.f32 %v537, %v576
  %v665 = vsub.f32 %v537, %v577
  %v666 = vsub.f32 %v537, %v578
  %v667 = vsub.f32 %v537, %v579
  %v668 = vsub.f32 %v537, %v580
  %v669 = vsub.f32 %v537, %v581
  %v670 = vsub.f32 %v537, %v582
  %v671 = vsub.f32 %v541, %v575
  %v672 = vsub.f32 %v541, %v576
  %v673 = vsub.f32 %v541, %v577
  %v674 = vsub.f32 %v541, %v578
  %v675 = vsub.f32 %v541, %v579
  %v676 = vsub.f32 %v541, %v580
  %v677 = vsub.f32 %v541, %v581
  %v678 = vsub.f32 %v541, %v582
  %v679 = vsub.f32 %v545, %v575
  %v680 = vsub.f32 %v545, %v576
  %v681 = vsub.f32 %v545, %v577
  %v682 = vsub.f32 %v545, %v578
  %v683 = vsub.f32 %v545, %v579
  %v684 = vsub.f32 %v545, %v580
  %v685 = vsub.f32 %v545, %v581
  %v686 = vsub.f32 %v545, %v582
  %v687 = vsub.f32 %v549, %v575
  %v688 = vsub.f32 %v549, %v576
  %v689 = vsub.f32 %v549, %v577
  %v690 = vsub.f32 %v549, %v578
  %v691 = vsub.f32 %v549, %v579
  %v692 = vsub.f32 %v549, %v580
  %v693 = vsub.f32 %v549, %v581
  %v694 = vsub.f32 %v549, %v582
  %v695 = vsub.f32 %v553, %v575
  %v696 = vsub.f32 %v553, %v576
  %v697 = vsub.f32 %v553, %v577
  %v698 = vsub.f32 %v553, %v578
  %v699 = vsub.f32 %v553, %v579
  %v700 = vsub.f32 %v553, %v580
  %v701 = vsub.f32 %v553, %v581
  %v702 = vsub.f32 %v553, %v582
  %v703 = vsub.f32 %v557, %v575
  %v704 = vsub.f32 %v557, %v576
  %v705 = vsub.f32 %v557, %v577
  %v706 = vsub.f32 %v557, %v578
  %v707 = vsub.f32 %v557, %v579
  %v708 = vsub.f32 %v557, %v580
  %v709 = vsub.f32 %v557, %v581
  %v710 = vsub.f32 %v557, %v582
  %v711 = vmul.f32 %v151, %v151
  %v712 = vmul.f32 %v152, %v152
  %v713 = vmul.f32 %v153, %v153
  %v714 = vmul.f32 %v154, %v154
  %v715 = vmul.f32 %v155, %v155
  %v716 = vmul.f32 %v156, %v156
  %v717 = vmul.f32 %v157, %v157
  %v718 = vmul.f32 %v158, %v158
  %v719 = vmul.f32 %v159, %v159
  %v720 = vmul.f32 %v160, %v160
  %v721 = vmul.f32 %v161, %v161
  %v722 = vmul.f32 %v162, %v162
  %v723 = vmul.f32 %v163, %v163
  %v724 = vmul.f32 %v164, %v164
  %v725 = vmul.f32 %v165, %v165
  %v726 = vmul.f32 %v166, %v166
  %v727 = vmul.f32 %v167, %v167
  %v728 = vmul.f32 %v168, %v168
  %v729 = vmul.f32 %v169, %v169
  %v730 = vmul.f32 %v170, %v170
  %v731 = vmul.f32 %v171, %v171
  %v732 = vmul.f32 %v172, %v172
  %v733 = vmul.f32 %v173, %v173
  %v734 = vmul.f32 %v174, %v174
  %v735 = vmul.f32 %v175, %v175
  %v736 = vmul.f32 %v176, %v176
  %v737 = vmul.f32 %v177, %v177
  %v738 = vmul.f32 %v178, %v178
  %v739 = vmul.f32 %v179, %v179
  %v740 = vmul.f32 %v180, %v180
  %v741 = vmul.f32 %v181, %v181
  %v742 = vmul.f32 %v182, %v182
  %v743 = vmul.f32 %v183, %v183
  %v744 = vmul.f32 %v184, %v184
  %v745 = vmul.f32 %v185, %v185
  %v746 = vmul.f32 %v186, %v186
  %v747 = vmul.f32 %v187, %v187
  %v748 = vmul.f32 %v188, %v188
  %v749 = vmul.f32 %v189, %v189
  %v750 = vmul.f32 %v190, %v190
  %v751 = vmul.f32 %v191, %v191
  %v752 = vmul.f32 %v192, %v192
  %v753 = vmul.f32 %v193, %v193
  %v754 = vmul.f32 %v194, %v194
  %v755 = vmul.f32 %v195, %v195
  %v756 = vmul.f32 %v196, %v196
  %v757 = vmul.f32 %v197, %v197
  %v758 = vmul.f32 %v198, %v198
  %v759 = vmul.f32 %v199, %v199
  %v760 = vmul.f32 %v200, %v200
  %v761 = vmul.f32 %v201, %v201
  %v762 = vmul.f32 %v202, %v202
  %v763 = vmul.f32 %v203, %v203
  %v764 = vmul.f32 %v204, %v204
  %v765 = vmul.f32 %v205, %v205
  %v766 = vmul.f32 %v206, %v206
  %v767 = vmul.f32 %v207, %v207
  %v768 = vmul.f32 %v208, %v208
  %v769 = vmul.f32 %v209, %v209
  %v770 = vmul.f32 %v210, %v210
  %v771 = vmul.f32 %v211, %v211
  %v772 = vmul.f32 %v212, %v212
  %v773 = vmul.f32 %v213, %v213
  %v774 = vmul.f32 %v214, %v214
  %v775 = vmul.f32 %v215, %v215
  %v776 = vmul.f32 %v216, %v216
  %v777 = vmul.f32 %v217, %v217
  %v778 = vmul.f32 %v218, %v218
  %v779 = vmul.f32 %v219, %v219
  %v780 = vmul.f32 %v220, %v220
  %v781 = vmul.f32 %v221, %v221
  %v782 = vmul.f32 %v222, %v222
  %v783 = vmul.f32 %v223, %v223
  %v784 = vmul.f32 %v224, %v224
  %v785 = vmul.f32 %v225, %v225
  %v786 = vmul.f32 %v226, %v226
  %v787 = vmul.f32 %v227, %v227
  %v788 = vmul.f32 %v228, %v228
  %v789 = vmul.f32 %v229, %v229
  %v790 = vmul.f32 %v230, %v230
  %v791 = vmul.f32 %v231, %v231
  %v792 = vmul.f32 %v232, %v232
  %v793 = vmul.f32 %v233, %v233
  %v794 = vmul.f32 %v234, %v234
  %v795 = vmul.f32 %v235, %v235
  %v796 = vmul.f32 %v236, %v236
  %v797 = vmul.f32 %v237, %v237
  %v798 = vmul.f32 %v238, %v238
  %v799 = vmul.f32 %v239, %v239
  %v800 = vmul.f32 %v240, %v240
  %v801 = vmul.f32 %v241, %v241
  %v802 = vmul.f32 %v242, %v242
  %v803 = vmul.f32 %v243, %v243
  %v804 = vmul.f32 %v244, %v244
  %v805 = vmul.f32 %v245, %v245
  %v806 = vmul.f32 %v246, %v246
  %v807 = vmul.f32 %v247, %v247
  %v808 = vmul.f32 %v248, %v248
  %v809 = vmul.f32 %v249, %v249
  %v810 = vmul.f32 %v250, %v250
  %v811 = vmul.f32 %v251, %v251
  %v812 = vmul.f32 %v252, %v252
  %v813 = vmul.f32 %v253, %v253
  %v814 = vmul.f32 %v254, %v254
  %v815 = vmul.f32 %v255, %v255
  %v816 = vmul.f32 %v256, %v256
  %v817 = vmul.f32 %v257, %v257
  %v818 = vmul.f32 %v258, %v258
  %v819 = vmul.f32 %v259, %v259
  %v820 = vmul.f32 %v260, %v260
  %v821 = vmul.f32 %v261, %v261
  %v822 = vmul.f32 %v262, %v262
  %v823 = vmul.f32 %v263, %v263
  %v824 = vmul.f32 %v264, %v264
  %v825 = vmul.f32 %v265, %v265
  %v826 = vmul.f32 %v266, %v266
  %v827 = vmul.f32 %v267, %v267
  %v828 = vmul.f32 %v268, %v268
  %v829 = vmul.f32 %v269, %v269
  %v830 = vmul.f32 %v270, %v270
  %v831 = vmul.f32 %v271, %v271
  %v832 = vmul.f32 %v272, %v272
  %v833 = vmul.f32 %v273, %v273
  %v834 = vmul.f32 %v274, %v274
  %v835 = vmul.f32 %v275, %v275
  %v836 = vmul.f32 %v276, %v276
  %v837 = vmul.f32 %v277, %v277
  %v838 = vmul.f32 %v278, %v278
  %v839 = vmul.f32 %v367, %v367
  %v840 = vmul.f32 %v368, %v368
  %v841 = vmul.f32 %v369, %v369
  %v842 = vmul.f32 %v370, %v370
  %v843 = vmul.f32 %v371, %v371
  %v844 = vmul.f32 %v372, %v372
  %v845 = vmul.f32 %v373, %v373
  %v846 = vmul.f32 %v374, %v374
  %v847 = vmul.f32 %v375, %v375
  %v848 = vmul.f32 %v376, %v376
  %v849 = vmul.f32 %v377, %v377
  %v850 = vmul.f32 %v378, %v378
  %v851 = vmul.f32 %v379, %v379
  %v852 = vmul.f32 %v380, %v380
  %v853 = vmul.f32 %v381, %v381
  %v854 = vmul.f32 %v382, %v382
  %v855 = vmul.f32 %v383, %v383
  %v856 = vmul.f32 %v384, %v384
  %v857 = vmul.f32 %v385, %v385
  %v858 = vmul.f32 %v386, %v386
  %v859 = vmul.f32 %v387, %v387
  %v860 = vmul.f32 %v388, %v388
  %v861 = vmul.f32 %v389, %v389
  %v862 = vmul.f32 %v390, %v390
  %v863 = vmul.f32 %v391, %v391
  %v864 = vmul.f32 %v392, %v392
  %v865 = vmul.f32 %v393, %v393
  %v866 = vmul.f32 %v394, %v394
  %v867 = vmul.f32 %v395, %v395
  %v868 = vmul.f32 %v396, %v396
  %v869 = vmul.f32 %v397, %v397
  %v870 = vmul.f32 %v398, %v398
  %v871 = vmul.f32 %v399, %v399
  %v872 = vmul.f32 %v400, %v400
  %v873 = vmul.f32 %v401, %v401
  %v874 = vmul.f32 %v402, %v402
  %v875 = vmul.f32 %v403, %v403
  %v876 = vmul.f32 %v404, %v404
  %v877 = vmul.f32 %v405, %v405
  %v878 = vmul.f32 %v406, %v406
  %v879 = vmul.f32 %v407, %v407
  %v880 = vmul.f32 %v408, %v408
  %v881 = vmul.f32 %v409, %v409
  %v882 = vmul.f32 %v410, %v410
  %v883 = vmul.f32 %v411, %v411
  %v884 = vmul.f32 %v412, %v412
  %v885 = vmul.f32 %v413, %v413
  %v886 = vmul.f32 %v414, %v414
  %v887 = vmul.f32 %v415, %v415
  %v888 = vmul.f32 %v416, %v416
  %v889 = vmul.f32 %v417, %v417
  %v890 = vmul.f32 %v418, %v418
  %v891 = vmul.f32 %v419, %v419
  %v892 = vmul.f32 %v420, %v420
  %v893 = vmul.f32 %v421, %v421
  %v894 = vmul.f32 %v422, %v422
  %v895 = vmul.f32 %v423, %v423
  %v896 = vmul.f32 %v424, %v424
  %v897 = vmul.f32 %v425, %v425
  %v898 = vmul.f32 %v426, %v426
  %v899 = vmul.f32 %v427, %v427
  %v900 = vmul.f32 %v428, %v428
  %v901 = vmul.f32 %v429, %v429
  %v902 = vmul.f32 %v430, %v430
  %v903 = vmul.f32 %v431, %v431
  %v904 = vmul.f32 %v432, %v432
  %v905 = vmul.f32 %v433, %v433
  %v906 = vmul.f32 %v434, %v434
  %v907 = vmul.f32 %v435, %v435
  %v908 = vmul.f32 %v436, %v436
  %v909 = vmul.f32 %v437, %v437
  %v910 = vmul.f32 %v438, %v438
  %v911 = vmul.f32 %v439, %v439
  %v912 = vmul.f32 %v440, %v440
  %v913 = vmul.f32 %v441, %v441
  %v914 = vmul.f32 %v442, %v442
  %v915 = vmul.f32 %v443, %v443
  %v916 = vmul.f32 %v444, %v444
  %v917 = vmul.f32 %v445, %v445
  %v918 = vmul.f32 %v446, %v446
  %v919 = vmul.f32 %v447, %v447
  %v920 = vmul.f32 %v448, %v448
  %v921 = vmul.f32 %v449, %v449
  %v922 = vmul.f32 %v450, %v450
  %v923 = vmul.f32 %v451, %v451
  %v924 = vmul.f32 %v452, %v452
  %v925 = vmul.f32 %v453, %v453
  %v926 = vmul.f32 %v454, %v454
  %v927 = vmul.f32 %v455, %v455
  %v928 = vmul.f32 %v456, %v456
  %v929 = vmul.f32 %v457, %v457
  %v930 = vmul.f32 %v458, %v458
  %v931 = vmul.f32 %v459, %v459
  %v932 = vmul.f32 %v460, %v460
  %v933 = vmul.f32 %v461, %v461
  %v934 = vmul.f32 %v462, %v462
  %v935 = vmul.f32 %v463, %v463
  %v936 = vmul.f32 %v464, %v464
  %v937 = vmul.f32 %v465, %v465
  %v938 = vmul.f32 %v466, %v466
  %v939 = vmul.f32 %v467, %v467
  %v940 = vmul.f32 %v468, %v468
  %v941 = vmul.f32 %v469, %v469
  %v942 = vmul.f32 %v470, %v470
  %v943 = vmul.f32 %v471, %v471
  %v944 = vmul.f32 %v472, %v472
  %v945 = vmul.f32 %v473, %v473
  %v946 = vmul.f32 %v474, %v474
  %v947 = vmul.f32 %v475, %v475
  %v948 = vmul.f32 %v476, %v476
  %v949 = vmul.f32 %v477, %v477
  %v950 = vmul.f32 %v478, %v478
  %v951 = vmul.f32 %v479, %v479
  %v952 = vmul.f32 %v480, %v480
  %v953 = vmul.f32 %v481, %v481
  %v954 = vmul.f32 %v482, %v482
  %v955 = vmul.f32 %v483, %v483
  %v956 = vmul.f32 %v484, %v484
  %v957 = vmul.f32 %v485, %v485
  %v958 = vmul.f32 %v486, %v486
  %v959 = vmul.f32 %v487, %v487
  %v960 = vmul.f32 %v488, %v488
  %v961 = vmul.f32 %v489, %v489
  %v962 = vmul.f32 %v490, %v490
  %v963 = vmul.f32 %v491, %v491
  %v964 = vmul.f32 %v492, %v492
  %v965 = vmul.f32 %v493, %v493
  %v966 = vmul.f32 %v494, %v494
  %v967 = vadd.f32 %v711, %v839
  %v968 = vadd.f32 %v712, %v840
  %v969 = vadd.f32 %v713, %v841
  %v970 = vadd.f32 %v714, %v842
  %v971 = vadd.f32 %v715, %v843
  %v972 = vadd.f32 %v716, %v844
  %v973 = vadd.f32 %v717, %v845
  %v974 = vadd.f32 %v718, %v846
  %v975 = vadd.f32 %v719, %v847
  %v976 = vadd.f32 %v720, %v848
  %v977 = vadd.f32 %v721, %v849
  %v978 = vadd.f32 %v722, %v850
  %v979 = vadd.f32 %v723, %v851
  %v980 = vadd.f32 %v724, %v852
  %v981 = vadd.f32 %v725, %v853
  %v982 = vadd.f32 %v726, %v854
  %v983 = vadd.f32 %v727, %v855
  %v984 = vadd.f32 %v728, %v856
  %v985 = vadd.f32 %v729, %v857
  %v986 = vadd.f32 %v730, %v858
  %v987 = vadd.f32 %v731, %v859
  %v988 = vadd.f32 %v732, %v860
  %v989 = vadd.f32 %v733, %v861
  %v990 = vadd.f32 %v734, %v862
  %v991 = vadd.f32 %v735, %v863
  %v992 = vadd.f32 %v736, %v864
  %v993 = vadd.f32 %v737, %v865
  %v994 = vadd.f32 %v738, %v866
  %v995 = vadd.f32 %v739, %v867
  %v996 = vadd.f32 %v740, %v868
  %v997 = vadd.f32 %v741, %v869
  %v998 = vadd.f32 %v742, %v870
  %v999 = vadd.f32 %v743, %v871
  %v1000 = vadd.f32 %v744, %v872
  %v1001 = vadd.f32 %v745, %v873
  %v1002 = vadd.f32 %v746, %v874
  %v1003 = vadd.f32 %v747, %v875
  %v1004 = vadd.f32 %v748, %v876
  %v1005 = vadd.f32 %v749, %v877
  %v1006 = vadd.f32 %v750, %v878
  %v1007 = vadd.f32 %v751, %v879
  %v1008 = vadd.f32 %v752, %v880
  %v1009 = vadd.f32 %v753, %v881
  %v1010 = vadd.f32 %v754, %v882
  %v1011 = vadd.f32 %v755, %v883
  %v1012 = vadd.f32 %v756, %v884
  %v1013 = vadd.f32 %v757, %v885
  %v1014 = vadd.f32 %v758, %v886
  %v1015 = vadd.f32 %v759, %v887
  %v1016 = vadd.f32 %v760, %v888
  %v1017 = vadd.f32 %v761, %v889
  %v1018 = vadd.f32 %v762, %v890
  %v1019 = vadd.f32 %v763, %v891
  %v1020 = vadd.f32 %v764, %v892
  %v1021 = vadd.f32 %v765, %v893
  %v1022 = vadd.f32 %v766, %v894
  %v1023 = vadd.f32 %v767, %v895
  %v1024 = vadd.f32 %v768, %v896
  %v1025 = vadd.f32 %v769, %v897
  %v1026 = vadd.f32 %v770, %v898
  %v1027 = vadd.f32 %v771, %v899
  %v1028 = vadd.f32 %v772, %v900
  %v1029 = vadd.f32 %v773, %v901
  %v1030 = vadd.f32 %v774, %v902
  %v1031 = vadd.f32 %v775, %v903
  %v1032 = vadd.f32 %v776, %v904
  %v1033 = vadd.f32 %v777, %v905
  %v1034 = vadd.f32 %v778, %v906
  %v1035 = vadd.f32 %v779, %v907
  %v1036 = vadd.f32 %v780, %v908
  %v1037 = vadd.f32 %v781, %v909
  %v1038 = vadd.f32 %v782, %v910
  %v1039 = vadd.f32 %v783, %v911
  %v1040 = vadd.f32 %v784, %v912
  %v1041 = vadd.f32 %v785, %v913
  %v1042 = vadd.f32 %v786, %v914
  %v1043 = vadd.f32 %v787, %v915
  %v1044 = vadd.f32 %v788, %v916
  %v1045 = vadd.f32 %v789, %v917
  %v1046 = vadd.f32 %v790, %v918
  %v1047 = vadd.f32 %v791, %v919
  %v1048 = vadd.f32 %v792, %v920
  %v1049 = vadd.f32 %v793, %v921
  %v1050 = vadd.f32 %v794, %v922
  %v1051 = vadd.f32 %v795, %v923
  %v1052 = vadd.f32 %v796, %v924
  %v1053 = vadd.f32 %v797, %v925
  %v1054 = vadd.f32 %v798, %v926
  %v1055 = vadd.f32 %v799, %v927
  %v1056 = vadd.f32 %v800, %v928
  %v1057 = vadd.f32 %v801, %v929
  %v1058 = vadd.f32 %v802, %v930
  %v1059 = vadd.f32 %v803, %v931
  %v1060 = vadd.f32 %v804, %v932
  %v1061 = vadd.f32 %v805, %v933
  %v1062 = vadd.f32 %v806, %v934
  %v1063 = vadd.f32 %v807, %v935
  %v1064 = vadd.f32 %v808, %v936
  %v1065 = vadd.f32 %v809, %v937
  %v1066 = vadd.f32 %v810, %v938
  %v1067 = vadd.f32 %v811, %v939
  %v1068 = vadd.f32 %v812, %v940
  %v1069 = vadd.f32 %v813, %v941
  %v1070 = vadd.f32 %v814, %v942
  %v1071 = vadd.f32 %v815, %v943
  %v1072 = vadd.f32 %v816, %v944
  %v1073 = vadd.f32 %v817, %v945
  %v1074 = vadd.f32 %v818, %v946
  %v1075 = vadd.f32 %v819, %v947
  %v1076 = vadd.f32 %v820, %v948
  %v1077 = vadd.f32 %v821, %v949
  %v1078 = vadd.f32 %v822, %v950
  %v1079 = vadd.f32 %v823, %v951
  %v1080 = vadd.f32 %v824, %v952
  %v1081 = vadd.f32 %v825, %v953
  %v1082 = vadd.f32 %v826, %v954
  %v1083 = vadd.f32 %v827, %v955
  %v1084 = vadd.f32 %v828, %v956
  %v1085 = vadd.f32 %v829, %v957
  %v1086 = vadd.f32 %v830, %v958
  %v1087 = vadd.f32 %v831, %v959
  %v1088 = vadd.f32 %v832, %v960
  %v1089 = vadd.f32 %v833, %v961
  %v1090 = vadd.f32 %v834, %v962
  %v1091 = vadd.f32 %v835, %v963
  %v1092 = vadd.f32 %v836, %v964
  %v1093 = vadd.f32 %v837, %v965
  %v1094 = vadd.f32 %v838, %v966
  %v1095 = vmul.f32 %v583, %v583
  %v1096 = vmul.f32 %v584, %v584
  %v1097 = vmul.f32 %v585, %v585
  %v1098 = vmul.f32 %v586, %v586
  %v1099 = vmul.f32 %v587, %v587
  %v1100 = vmul.f32 %v588, %v588
  %v1101 = vmul.f32 %v589, %v589
  %v1102 = vmul.f32 %v590, %v590
  %v1103 = vmul.f32 %v591, %v591
  %v1104 = vmul.f32 %v592, %v592
  %v1105 = vmul.f32 %v593, %v593
  %v1106 = vmul.f32 %v594, %v594
  %v1107 = vmul.f32 %v595, %v595
  %v1108 = vmul.f32 %v596, %v596
  %v1109 = vmul.f32 %v597, %v597
  %v1110 = vmul.f32 %v598, %v598
  %v1111 = vmul.f32 %v599, %v599
  %v1112 = vmul.f32 %v600, %v600
  %v1113 = vmul.f32 %v601, %v601
  %v1114 = vmul.f32 %v602, %v602
  %v1115 = vmul.f32 %v603, %v603
  %v1116 = vmul.f32 %v604, %v604
  %v1117 = vmul.f32 %v605, %v605
  %v1118 = vmul.f32 %v606, %v606
  %v1119 = vmul.f32 %v607, %v607
  %v1120 = vmul.f32 %v608, %v608
  %v1121 = vmul.f32 %v609, %v609
  %v1122 = vmul.f32 %v610, %v610
  %v1123 = vmul.f32 %v611, %v611
  %v1124 = vmul.f32 %v612, %v612
  %v1125 = vmul.f32 %v613, %v613
  %v1126 = vmul.f32 %v614, %v614
  %v1127 = vmul.f32 %v615, %v615
  %v1128 = vmul.f32 %v616, %v616
  %v1129 = vmul.f32 %v617, %v617
  %v1130 = vmul.f32 %v618, %v618
  %v1131 = vmul.f32 %v619, %v619
  %v1132 = vmul.f32 %v620, %v620
  %v1133 = vmul.f32 %v621, %v621
  %v1134 = vmul.f32 %v622, %v622
  %v1135 = vmul.f32 %v623, %v623
  %v1136 = vmul.f32 %v624, %v624
  %v1137 = vmul.f32 %v625, %v625
  %v1138 = vmul.f32 %v626, %v626
  %v1139 = vmul.f32 %v627, %v627
  %v1140 = vmul.f32 %v628, %v628
  %v1141 = vmul.f32 %v629, %v629
  %v1142 = vmul.f32 %v630, %v630
  %v1143 = vmul.f32 %v631, %v631
  %v1144 = vmul.f32 %v632, %v632
  %v1145 = vmul.f32 %v633, %v633
  %v1146 = vmul.f32 %v634, %v634
  %v1147 = vmul.f32 %v635, %v635
  %v1148 = vmul.f32 %v636, %v636
  %v1149 = vmul.f32 %v637, %v637
  %v1150 = vmul.f32 %v638, %v638
  %v1151 = vmul.f32 %v639, %v639
  %v1152 = vmul.f32 %v640, %v640
  %v1153 = vmul.f32 %v641, %v641
  %v1154 = vmul.f32 %v642, %v642
  %v1155 = vmul.f32 %v643, %v643
  %v1156 = vmul.f32 %v644, %v644
  %v1157 = vmul.f32 %v645, %v645
  %v1158 = vmul.f32 %v646, %v646
  %v1159 = vmul.f32 %v647, %v647
  %v1160 = vmul.f32 %v648, %v648
  %v1161 = vmul.f32 %v649, %v649
  %v1162 = vmul.f32 %v650, %v650
  %v1163 = vmul.f32 %v651, %v651
  %v1164 = vmul.f32 %v652, %v652
  %v1165 = vmul.f32 %v653, %v653
  %v1166 = vmul.f32 %v654, %v654
  %v1167 = vmul.f32 %v655, %v655
  %v1168 = vmul.f32 %v656, %v656
  %v1169 = vmul.f32 %v657, %v657
  %v1170 = vmul.f32 %v658, %v658
  %v1171 = vmul.f32 %v659, %v659
  %v1172 = vmul.f32 %v660, %v660
  %v1173 = vmul.f32 %v661, %v661
  %v1174 = vmul.f32 %v662, %v662
  %v1175 = vmul.f32 %v663, %v663
  %v1176 = vmul.f32 %v664, %v664
  %v1177 = vmul.f32 %v665, %v665
  %v1178 = vmul.f32 %v666, %v666
  %v1179 = vmul.f32 %v667, %v667
  %v1180 = vmul.f32 %v668, %v668
  %v1181 = vmul.f32 %v669, %v669
  %v1182 = vmul.f32 %v670, %v670
  %v1183 = vmul.f32 %v671, %v671
  %v1184 = vmul.f32 %v672, %v672
  %v1185 = vmul.f32 %v673, %v673
  %v1186 = vmul.f32 %v674, %v674
  %v1187 = vmul.f32 %v675, %v675
  %v1188 = vmul.f32 %v676, %v676
  %v1189 = vmul.f32 %v677, %v677
  %v1190 = vmul.f32 %v678, %v678
  %v1191 = vmul.f32 %v679, %v679
  %v1192 = vmul.f32 %v680, %v680
  %v1193 = vmul.f32 %v681, %v681
  %v1194 = vmul.f32 %v682, %v682
  %v1195 = vmul.f32 %v683, %v683
  %v1196 = vmul.f32 %v684, %v684
  %v1197 = vmul.f32 %v685, %v685
  %v1198 = vmul.f32 %v686, %v686
  %v1199 = vmul.f32 %v687, %v687
  %v1200 = vmul.f32 %v688, %v688
  %v1201 = vmul.f32 %v689, %v689
  %v1202 = vmul.f32 %v690, %v690
  %v1203 = vmul.f32 %v691, %v691
  %v1204 = vmul.f32 %v692, %v692
  %v1205 = vmul.f32 %v693, %v693
  %v1206 = vmul.f32 %v694, %v694
  %v1207 = vmul.f32 %v695, %v695
  %v1208 = vmul.f32 %v696, %v696
  %v1209 = vmul.f32 %v697, %v697
  %v1210 = vmul.f32 %v698, %v698
  %v1211 = vmul.f32 %v699, %v699
  %v1212 = vmul.f32 %v700, %v700
  %v1213 = vmul.f32 %v701, %v701
  %v1214 = vmul.f32 %v702, %v702
  %v1215 = vmul.f32 %v703, %v703
  %v1216 = vmul.f32 %v704, %v704
  %v1217 = vmul.f32 %v705, %v705
  %v1218 = vmul.f32 %v706, %v706
  %v1219 = vmul.f32 %v707, %v707
  %v1220 = vmul.f32 %v708, %v708
  %v1221 = vmul.f32 %v709, %v709
  %v1222 = vmul.f32 %v710, %v710
  %v1223 = vadd.f32 %v967, %v1095
  %v1224 = vadd.f32 %v968, %v1096
  %v1225 = vadd.f32 %v969, %v1097
  %v1226 = vadd.f32 %v970, %v1098
  %v1227 = vadd.f32 %v971, %v1099
  %v1228 = vadd.f32 %v972, %v1100
  %v1229 = vadd.f32 %v973, %v1101
  %v1230 = vadd.f32 %v974, %v1102
  %v1231 = vadd.f32 %v975, %v1103
  %v1232 = vadd.f32 %v976, %v1104
  %v1233 = vadd.f32 %v977, %v1105
  %v1234 = vadd.f32 %v978, %v1106
  %v1235 = vadd.f32 %v979, %v1107
  %v1236 = vadd.f32 %v980, %v1108
  %v1237 = vadd.f32 %v981, %v1109
  %v1238 = vadd.f32 %v982, %v1110
  %v1239 = vadd.f32 %v983, %v1111
  %v1240 = vadd.f32 %v984, %v1112
  %v1241 = vadd.f32 %v985, %v1113
  %v1242 = vadd.f32 %v986, %v1114
  %v1243 = vadd.f32 %v987, %v1115
  %v1244 = vadd.f32 %v988, %v1116
  %v1245 = vadd.f32 %v989, %v1117
  %v1246 = vadd.f32 %v990, %v1118
  %v1247 = vadd.f32 %v991, %v1119
  %v1248 = vadd.f32 %v992, %v1120
  %v1249 = vadd.f32 %v993, %v1121
  %v1250 = vadd.f32 %v994, %v1122
  %v1251 = vadd.f32 %v995, %v1123
  %v1252 = vadd.f32 %v996, %v1124
  %v1253 = vadd.f32 %v997, %v1125
  %v1254 = vadd.f32 %v998, %v1126
  %v1255 = vadd.f32 %v999, %v1127
  %v1256 = vadd.f32 %v1000, %v1128
  %v1257 = vadd.f32 %v1001, %v1129
  %v1258 = vadd.f32 %v1002, %v1130
  %v1259 = vadd.f32 %v1003, %v1131
  %v1260 = vadd.f32 %v1004, %v1132
  %v1261 = vadd.f32 %v1005, %v1133
  %v1262 = vadd.f32 %v1006, %v1134
  %v1263 = vadd.f32 %v1007, %v1135
  %v1264 = vadd.f32 %v1008, %v1136
  %v1265 = vadd.f32 %v1009, %v1137
  %v1266 = vadd.f32 %v1010, %v1138
  %v1267 = vadd.f32 %v1011, %v1139
  %v1268 = vadd.f32 %v1012, %v1140
  %v1269 = vadd.f32 %v1013, %v1141
  %v1270 = vadd.f32 %v1014, %v1142
  %v1271 = vadd.f32 %v1015, %v1143
  %v1272 = vadd.f32 %v1016, %v1144
  %v1273 = vadd.f32 %v1017, %v1145
  %v1274 = vadd.f32 %v1018, %v1146
  %v1275 = vadd.f32 %v1019, %v1147
  %v1276 = vadd.f32 %v1020, %v1148
  %v1277 = vadd.f32 %v1021, %v1149
  %v1278 = vadd.f32 %v1022, %v1150
  %v1279 = vadd.f32 %v1023, %v1151
  %v1280 = vadd.f32 %v1024, %v1152
  %v1281 = vadd.f32 %v1025, %v1153
  %v1282 = vadd.f32 %v1026, %v1154
  %v1283 = vadd.f32 %v1027, %v1155
  %v1284 = vadd.f32 %v1028, %v1156
  %v1285 = vadd.f32 %v1029, %v1157
  %v1286 = vadd.f32 %v1030, %v1158
  %v1287 = vadd.f32 %v1031, %v1159
  %v1288 = vadd.f32 %v1032, %v1160
  %v1289 = vadd.f32 %v1033, %v1161
  %v1290 = vadd.f32 %v1034, %v1162
  %v1291 = vadd.f32 %v1035, %v1163
  %v1292 = vadd.f32 %v1036, %v1164
  %v1293 = vadd.f32 %v1037, %v1165
  %v1294 = vadd.f32 %v1038, %v1166
  %v1295 = vadd.f32 %v1039, %v1167
  %v1296 = vadd.f32 %v1040, %v1168
  %v1297 = vadd.f32 %v1041, %v1169
  %v1298 = vadd.f32 %v1042, %v1170
  %v1299 = vadd.f32 %v1043, %v1171
  %v1300 = vadd.f32 %v1044, %v1172
  %v1301 = vadd.f32 %v1045, %v1173
  %v1302 = vadd.f32 %v1046, %v1174
  %v1303 = vadd.f32 %v1047, %v1175
  %v1304 = vadd.f32 %v1048, %v1176
  %v1305 = vadd.f32 %v1049, %v1177
  %v1306 = vadd.f32 %v1050, %v1178
  %v1307 = vadd.f32 %v1051, %v1179
  %v1308 = vadd.f32 %v1052, %v1180
  %v1309 = vadd.f32 %v1053, %v1181
  %v1310 = vadd.f32 %v1054, %v1182
  %v1311 = vadd.f32 %v1055, %v1183
  %v1312 = vadd.f32 %v1056, %v1184
  %v1313 = vadd.f32 %v1057, %v1185
  %v1314 = vadd.f32 %v1058, %v1186
  %v1315 = vadd.f32 %v1059, %v1187
  %v1316 = vadd.f32 %v1060, %v1188
  %v1317 = vadd.f32 %v1061, %v1189
  %v1318 = vadd.f32 %v1062, %v1190
  %v1319 = vadd.f32 %v1063, %v1191
  %v1320 = vadd.f32 %v1064, %v1192
  %v1321 = vadd.f32 %v1065, %v1193
  %v1322 = vadd.f32 %v1066, %v1194
  %v1323 = vadd.f32 %v1067, %v1195
  %v1324 = vadd.f32 %v1068, %v1196
  %v1325 = vadd.f32 %v1069, %v1197
  %v1326 = vadd.f32 %v1070, %v1198
  %v1327 = vadd.f32 %v1071, %v1199
  %v1328 = vadd.f32 %v1072, %v1200
  %v1329 = vadd.f32 %v1073, %v1201
  %v1330 = vadd.f32 %v1074, %v1202
  %v1331 = vadd.f32 %v1075, %v1203
  %v1332 = vadd.f32 %v1076, %v1204
  %v1333 = vadd.f32 %v1077, %v1205
  %v1334 = vadd.f32 %v1078, %v1206
  %v1335 = vadd.f32 %v1079, %v1207
  %v1336 = vadd.f32 %v1080, %v1208
  %v1337 = vadd.f32 %v1081, %v1209
  %v1338 = vadd.f32 %v1082, %v1210
  %v1339 = vadd.f32 %v1083, %v1211
  %v1340 = vadd.f32 %v1084, %v1212
  %v1341 = vadd.f32 %v1085, %v1213
  %v1342 = vadd.f32 %v1086, %v1214
  %v1343 = vadd.f32 %v1087, %v1215
  %v1344 = vadd.f32 %v1088, %v1216
  %v1345 = vadd.f32 %v1089, %v1217
  %v1346 = vadd.f32 %v1090, %v1218
  %v1347 = vadd.f32 %v1091, %v1219
  %v1348 = vadd.f32 %v1092, %v1220
  %v1349 = vadd.f32 %v1093, %v1221
  %v1350 = vadd.f32 %v1094, %v1222
  %v1351 = vmin.f32 %v1223, %v1224
  %v1352 = vmin.f32 %v1351, %v1225
  %v1353 = vmin.f32 %v1352, %v1226
  %v1354 = vmin.f32 %v1353, %v1227
  %v1355 = vmin.f32 %v1354, %v1228
  %v1356 = vmin.f32 %v1355, %v1229
  %v1357 = vmin.f32 %v1356, %v1230
  %1358 = vmin.xlane.f32.xlu0 %v1357
  %v1359 = vpop.xlane.xlu0 %1358
  %v1360 = vmin.f32 %v1231, %v1232
  %v1361 = vmin.f32 %v1360, %v1233
  %v1362 = vmin.f32 %v1361, %v1234
  %v1363 = vmin.f32 %v1362, %v1235
  %v1364 = vmin.f32 %v1363, %v1236
  %v1365 = vmin.f32 %v1364, %v1237
  %v1366 = vmin.f32 %v1365, %v1238
  %1367 = vmin.xlane.f32.xlu0 %v1366
  %v1368 = vpop.xlane.xlu0 %1367
  %v1369 = vmin.f32 %v1239, %v1240
  %v1370 = vmin.f32 %v1369, %v1241
  %v1371 = vmin.f32 %v1370, %v1242
  %v1372 = vmin.f32 %v1371, %v1243
  %v1373 = vmin.f32 %v1372, %v1244
  %v1374 = vmin.f32 %v1373, %v1245
  %v1375 = vmin.f32 %v1374, %v1246
  %1376 = vmin.xlane.f32.xlu0 %v1375
  %v1377 = vpop.xlane.xlu0 %1376
  %v1378 = vmin.f32 %v1247, %v1248
  %v1379 = vmin.f32 %v1378, %v1249
  %v1380 = vmin.f32 %v1379, %v1250
  %v1381 = vmin.f32 %v1380, %v1251
  %v1382 = vmin.f32 %v1381, %v1252
  %v1383 = vmin.f32 %v1382, %v1253
  %v1384 = vmin.f32 %v1383, %v1254
  %1385 = vmin.xlane.f32.xlu0 %v1384
  %v1386 = vpop.xlane.xlu0 %1385
  %v1387 = vmin.f32 %v1255, %v1256
  %v1388 = vmin.f32 %v1387, %v1257
  %v1389 = vmin.f32 %v1388, %v1258
  %v1390 = vmin.f32 %v1389, %v1259
  %v1391 = vmin.f32 %v1390, %v1260
  %v1392 = vmin.f32 %v1391, %v1261
  %v1393 = vmin.f32 %v1392, %v1262
  %1394 = vmin.xlane.f32.xlu0 %v1393
  %v1395 = vpop.xlane.xlu0 %1394
  %v1396 = vmin.f32 %v1263, %v1264
  %v1397 = vmin.f32 %v1396, %v1265
  %v1398 = vmin.f32 %v1397, %v1266
  %v1399 = vmin.f32 %v1398, %v1267
  %v1400 = vmin.f32 %v1399, %v1268
  %v1401 = vmin.f32 %v1400, %v1269
  %v1402 = vmin.f32 %v1401, %v1270
  %1403 = vmin.xlane.f32.xlu0 %v1402
  %v1404 = vpop.xlane.xlu0 %1403
  %v1405 = vmin.f32 %v1271, %v1272
  %v1406 = vmin.f32 %v1405, %v1273
  %v1407 = vmin.f32 %v1406, %v1274
  %v1408 = vmin.f32 %v1407, %v1275
  %v1409 = vmin.f32 %v1408, %v1276
  %v1410 = vmin.f32 %v1409, %v1277
  %v1411 = vmin.f32 %v1410, %v1278
  %1412 = vmin.xlane.f32.xlu0 %v1411
  %v1413 = vpop.xlane.xlu0 %1412
  %v1414 = vmin.f32 %v1279, %v1280
  %v1415 = vmin.f32 %v1414, %v1281
  %v1416 = vmin.f32 %v1415, %v1282
  %v1417 = vmin.f32 %v1416, %v1283
  %v1418 = vmin.f32 %v1417, %v1284
  %v1419 = vmin.f32 %v1418, %v1285
  %v1420 = vmin.f32 %v1419, %v1286
  %1421 = vmin.xlane.f32.xlu0 %v1420
  %v1422 = vpop.xlane.xlu0 %1421
  %v1423 = vmin.f32 %v1287, %v1288
  %v1424 = vmin.f32 %v1423, %v1289
  %v1425 = vmin.f32 %v1424, %v1290
  %v1426 = vmin.f32 %v1425, %v1291
  %v1427 = vmin.f32 %v1426, %v1292
  %v1428 = vmin.f32 %v1427, %v1293
  %v1429 = vmin.f32 %v1428, %v1294
  %1430 = vmin.xlane.f32.xlu0 %v1429
  %v1431 = vpop.xlane.xlu0 %1430
  %v1432 = vmin.f32 %v1295, %v1296
  %v1433 = vmin.f32 %v1432, %v1297
  %v1434 = vmin.f32 %v1433, %v1298
  %v1435 = vmin.f32 %v1434, %v1299
  %v1436 = vmin.f32 %v1435, %v1300
  %v1437 = vmin.f32 %v1436, %v1301
  %v1438 = vmin.f32 %v1437, %v1302
  %1439 = vmin.xlane.f32.xlu0 %v1438
  %v1440 = vpop.xlane.xlu0 %1439
  %v1441 = vmin.f32 %v1303, %v1304
  %v1442 = vmin.f32 %v1441, %v1305
  %v1443 = vmin.f32 %v1442, %v1306
  %v1444 = vmin.f32 %v1443, %v1307
  %v1445 = vmin.f32 %v1444, %v1308
  %v1446 = vmin.f32 %v1445, %v1309
  %v1447 = vmin.f32 %v1446, %v1310
  %1448 = vmin.xlane.f32.xlu0 %v1447
  %v1449 = vpop.xlane.xlu0 %1448
  %v1450 = vmin.f32 %v1311, %v1312
  %v1451 = vmin.f32 %v1450, %v1313
  %v1452 = vmin.f32 %v1451, %v1314
  %v1453 = vmin.f32 %v1452, %v1315
  %v1454 = vmin.f32 %v1453, %v1316
  %v1455 = vmin.f32 %v1454, %v1317
  %v1456 = vmin.f32 %v1455, %v1318
  %1457 = vmin.xlane.f32.xlu0 %v1456
  %v1458 = vpop.xlane.xlu0 %1457
  %v1459 = vmin.f32 %v1319, %v1320
  %v1460 = vmin.f32 %v1459, %v1321
  %v1461 = vmin.f32 %v1460, %v1322
  %v1462 = vmin.f32 %v1461, %v1323
  %v1463 = vmin.f32 %v1462, %v1324
  %v1464 = vmin.f32 %v1463, %v1325
  %v1465 = vmin.f32 %v1464, %v1326
  %1466 = vmin.xlane.f32.xlu0 %v1465
  %v1467 = vpop.xlane.xlu0 %1466
  %v1468 = vmin.f32 %v1327, %v1328
  %v1469 = vmin.f32 %v1468, %v1329
  %v1470 = vmin.f32 %v1469, %v1330
  %v1471 = vmin.f32 %v1470, %v1331
  %v1472 = vmin.f32 %v1471, %v1332
  %v1473 = vmin.f32 %v1472, %v1333
  %v1474 = vmin.f32 %v1473, %v1334
  %1475 = vmin.xlane.f32.xlu0 %v1474
  %v1476 = vpop.xlane.xlu0 %1475
  %v1477 = vmin.f32 %v1335, %v1336
  %v1478 = vmin.f32 %v1477, %v1337
  %v1479 = vmin.f32 %v1478, %v1338
  %v1480 = vmin.f32 %v1479, %v1339
  %v1481 = vmin.f32 %v1480, %v1340
  %v1482 = vmin.f32 %v1481, %v1341
  %v1483 = vmin.f32 %v1482, %v1342
  %1484 = vmin.xlane.f32.xlu0 %v1483
  %v1485 = vpop.xlane.xlu0 %1484
  %v1486 = vmin.f32 %v1343, %v1344
  %v1487 = vmin.f32 %v1486, %v1345
  %v1488 = vmin.f32 %v1487, %v1346
  %v1489 = vmin.f32 %v1488, %v1347
  %v1490 = vmin.f32 %v1489, %v1348
  %v1491 = vmin.f32 %v1490, %v1349
  %v1492 = vmin.f32 %v1491, %v1350
  %1493 = vmin.xlane.f32.xlu0 %v1492
  %v1494 = vpop.xlane.xlu0 %1493
  %v1499 = vperm.slane %v31, 0
  %v1500 = vperm.slane %v31, 4
  %v1501 = vperm.slane %v32, 0
  %v1502 = vperm.slane %v32, 4
  %v1503 = vperm.slane %v33, 0
  %v1504 = vperm.slane %v33, 4
  %v1505 = vperm.slane %v34, 0
  %v1506 = vperm.slane %v34, 4
  %v1515 = vperm.slane %v1499, 0
  %v1516 = vperm.slane %v1500, 0
  %v1517 = vperm.slane %v1501, 0
  %v1518 = vperm.slane %v1502, 0
  %v1519 = vperm.slane %v1503, 0
  %v1520 = vperm.slane %v1504, 0
  %v1521 = vperm.slane %v1505, 0
  %v1522 = vperm.slane %v1506, 0
  %v1523 = vsub.f32 %v46, %v1515
  %v1524 = vsub.f32 %v46, %v1516
  %v1525 = vsub.f32 %v46, %v1517
  %v1526 = vsub.f32 %v46, %v1518
  %v1527 = vsub.f32 %v46, %v1519
  %v1528 = vsub.f32 %v46, %v1520
  %v1529 = vsub.f32 %v46, %v1521
  %v1530 = vsub.f32 %v46, %v1522
  %v1531 = vsub.f32 %v51, %v1515
  %v1532 = vsub.f32 %v51, %v1516
  %v1533 = vsub.f32 %v51, %v1517
  %v1534 = vsub.f32 %v51, %v1518
  %v1535 = vsub.f32 %v51, %v1519
  %v1536 = vsub.f32 %v51, %v1520
  %v1537 = vsub.f32 %v51, %v1521
  %v1538 = vsub.f32 %v51, %v1522
  %v1539 = vsub.f32 %v56, %v1515
  %v1540 = vsub.f32 %v56, %v1516
  %v1541 = vsub.f32 %v56, %v1517
  %v1542 = vsub.f32 %v56, %v1518
  %v1543 = vsub.f32 %v56, %v1519
  %v1544 = vsub.f32 %v56, %v1520
  %v1545 = vsub.f32 %v56, %v1521
  %v1546 = vsub.f32 %v56, %v1522
  %v1547 = vsub.f32 %v61, %v1515
  %v1548 = vsub.f32 %v61, %v1516
  %v1549 = vsub.f32 %v61, %v1517
  %v1550 = vsub.f32 %v61, %v1518
  %v1551 = vsub.f32 %v61, %v1519
  %v1552 = vsub.f32 %v61, %v1520
  %v1553 = vsub.f32 %v61, %v1521
  %v1554 = vsub.f32 %v61, %v1522
  %v1555 = vsub.f32 %v66, %v1515
  %v1556 = vsub.f32 %v66, %v1516
  %v1557 = vsub.f32 %v66, %v1517
  %v1558 = vsub.f32 %v66, %v1518
  %v1559 = vsub.f32 %v66, %v1519
  %v1560 = vsub.f32 %v66, %v1520
  %v1561 = vsub.f32 %v66, %v1521
  %v1562 = vsub.f32 %v66, %v1522
  %v1563 = vsub.f32 %v71, %v1515
  %v1564 = vsub.f32 %v71, %v1516
  %v1565 = vsub.f32 %v71, %v1517
  %v1566 = vsub.f32 %v71, %v1518
  %v1567 = vsub.f32 %v71, %v1519
  %v1568 = vsub.f32 %v71, %v1520
  %v1569 = vsub.f32 %v71, %v1521
  %v1570 = vsub.f32 %v71, %v1522
  %v1571 = vsub.f32 %v76, %v1515
  %v1572 = vsub.f32 %v76, %v1516
  %v1573 = vsub.f32 %v76, %v1517
  %v1574 = vsub.f32 %v76, %v1518
  %v1575 = vsub.f32 %v76, %v1519
  %v1576 = vsub.f32 %v76, %v1520
  %v1577 = vsub.f32 %v76, %v1521
  %v1578 = vsub.f32 %v76, %v1522
  %v1579 = vsub.f32 %v81, %v1515
  %v1580 = vsub.f32 %v81, %v1516
  %v1581 = vsub.f32 %v81, %v1517
  %v1582 = vsub.f32 %v81, %v1518
  %v1583 = vsub.f32 %v81, %v1519
  %v1584 = vsub.f32 %v81, %v1520
  %v1585 = vsub.f32 %v81, %v1521
  %v1586 = vsub.f32 %v81, %v1522
  %v1587 = vsub.f32 %v86, %v1515
  %v1588 = vsub.f32 %v86, %v1516
  %v1589 = vsub.f32 %v86, %v1517
  %v1590 = vsub.f32 %v86, %v1518
  %v1591 = vsub.f32 %v86, %v1519
  %v1592 = vsub.f32 %v86, %v1520
  %v1593 = vsub.f32 %v86, %v1521
  %v1594 = vsub.f32 %v86, %v1522
  %v1595 = vsub.f32 %v91, %v1515
  %v1596 = vsub.f32 %v91, %v1516
  %v1597 = vsub.f32 %v91, %v1517
  %v1598 = vsub.f32 %v91, %v1518
  %v1599 = vsub.f32 %v91, %v1519
  %v1600 = vsub.f32 %v91, %v1520
  %v1601 = vsub.f32 %v91, %v1521
  %v1602 = vsub.f32 %v91, %v1522
  %v1603 = vsub.f32 %v96, %v1515
  %v1604 = vsub.f32 %v96, %v1516
  %v1605 = vsub.f32 %v96, %v1517
  %v1606 = vsub.f32 %v96, %v1518
  %v1607 = vsub.f32 %v96, %v1519
  %v1608 = vsub.f32 %v96, %v1520
  %v1609 = vsub.f32 %v96, %v1521
  %v1610 = vsub.f32 %v96, %v1522
  %v1611 = vsub.f32 %v101, %v1515
  %v1612 = vsub.f32 %v101, %v1516
  %v1613 = vsub.f32 %v101, %v1517
  %v1614 = vsub.f32 %v101, %v1518
  %v1615 = vsub.f32 %v101, %v1519
  %v1616 = vsub.f32 %v101, %v1520
  %v1617 = vsub.f32 %v101, %v1521
  %v1618 = vsub.f32 %v101, %v1522
  %v1619 = vsub.f32 %v106, %v1515
  %v1620 = vsub.f32 %v106, %v1516
  %v1621 = vsub.f32 %v106, %v1517
  %v1622 = vsub.f32 %v106, %v1518
  %v1623 = vsub.f32 %v106, %v1519
  %v1624 = vsub.f32 %v106, %v1520
  %v1625 = vsub.f32 %v106, %v1521
  %v1626 = vsub.f32 %v106, %v1522
  %v1627 = vsub.f32 %v111, %v1515
  %v1628 = vsub.f32 %v111, %v1516
  %v1629 = vsub.f32 %v111, %v1517
  %v1630 = vsub.f32 %v111, %v1518
  %v1631 = vsub.f32 %v111, %v1519
  %v1632 = vsub.f32 %v111, %v1520
  %v1633 = vsub.f32 %v111, %v1521
  %v1634 = vsub.f32 %v111, %v1522
  %v1635 = vsub.f32 %v116, %v1515
  %v1636 = vsub.f32 %v116, %v1516
  %v1637 = vsub.f32 %v116, %v1517
  %v1638 = vsub.f32 %v116, %v1518
  %v1639 = vsub.f32 %v116, %v1519
  %v1640 = vsub.f32 %v116, %v1520
  %v1641 = vsub.f32 %v116, %v1521
  %v1642 = vsub.f32 %v116, %v1522
  %v1643 = vsub.f32 %v121, %v1515
  %v1644 = vsub.f32 %v121, %v1516
  %v1645 = vsub.f32 %v121, %v1517
  %v1646 = vsub.f32 %v121, %v1518
  %v1647 = vsub.f32 %v121, %v1519
  %v1648 = vsub.f32 %v121, %v1520
  %v1649 = vsub.f32 %v121, %v1521
  %v1650 = vsub.f32 %v121, %v1522
  %v1651 = vperm.slane %v31, 1
  %v1652 = vperm.slane %v31, 5
  %v1653 = vperm.slane %v32, 1
  %v1654 = vperm.slane %v32, 5
  %v1655 = vperm.slane %v33, 1
  %v1656 = vperm.slane %v33, 5
  %v1657 = vperm.slane %v34, 1
  %v1658 = vperm.slane %v34, 5
  %v1667 = vperm.slane %v1651, 1
  %v1668 = vperm.slane %v1652, 1
  %v1669 = vperm.slane %v1653, 1
  %v1670 = vperm.slane %v1654, 1
  %v1671 = vperm.slane %v1655, 1
  %v1672 = vperm.slane %v1656, 1
  %v1673 = vperm.slane %v1657, 1
  %v1674 = vperm.slane %v1658, 1
  %v1675 = vsub.f32 %v281, %v1667
  %v1676 = vsub.f32 %v281, %v1668
  %v1677 = vsub.f32 %v281, %v1669
  %v1678 = vsub.f32 %v281, %v1670
  %v1679 = vsub.f32 %v281, %v1671
  %v1680 = vsub.f32 %v281, %v1672
  %v1681 = vsub.f32 %v281, %v1673
  %v1682 = vsub.f32 %v281, %v1674
  %v1683 = vsub.f32 %v285, %v1667
  %v1684 = vsub.f32 %v285, %v1668
  %v1685 = vsub.f32 %v285, %v1669
  %v1686 = vsub.f32 %v285, %v1670
  %v1687 = vsub.f32 %v285, %v1671
  %v1688 = vsub.f32 %v285, %v1672
  %v1689 = vsub.f32 %v285, %v1673
  %v1690 = vsub.f32 %v285, %v1674
  %v1691 = vsub.f32 %v289, %v1667
  %v1692 = vsub.f32 %v289, %v1668
  %v1693 = vsub.f32 %v289, %v1669
  %v1694 = vsub.f32 %v289, %v1670
  %v1695 = vsub.f32 %v289, %v1671
  %v1696 = vsub.f32 %v289, %v1672
  %v1697 = vsub.f32 %v289, %v1673
  %v1698 = vsub.f32 %v289, %v1674
  %v1699 = vsub.f32 %v293, %v1667
  %v1700 = vsub.f32 %v293, %v1668
  %v1701 = vsub.f32 %v293, %v1669
  %v1702 = vsub.f32 %v293, %v1670
  %v1703 = vsub.f32 %v293, %v1671
  %v1704 = vsub.f32 %v293, %v1672
  %v1705 = vsub.f32 %v293, %v1673
  %v1706 = vsub.f32 %v293, %v1674
  %v1707 = vsub.f32 %v297, %v1667
  %v1708 = vsub.f32 %v297, %v1668
  %v1709 = vsub.f32 %v297, %v1669
  %v1710 = vsub.f32 %v297, %v1670
  %v1711 = vsub.f32 %v297, %v1671
  %v1712 = vsub.f32 %v297, %v1672
  %v1713 = vsub.f32 %v297, %v1673
  %v1714 = vsub.f32 %v297, %v1674
  %v1715 = vsub.f32 %v301, %v1667
  %v1716 = vsub.f32 %v301, %v1668
  %v1717 = vsub.f32 %v301, %v1669
  %v1718 = vsub.f32 %v301, %v1670
  %v1719 = vsub.f32 %v301, %v1671
  %v1720 = vsub.f32 %v301, %v1672
  %v1721 = vsub.f32 %v301, %v1673
  %v1722 = vsub.f32 %v301, %v1674
  %v1723 = vsub.f32 %v305, %v1667
  %v1724 = vsub.f32 %v305, %v1668
  %v1725 = vsub.f32 %v305, %v1669
  %v1726 = vsub.f32 %v305, %v1670
  %v1727 = vsub.f32 %v305, %v1671
  %v1728 = vsub.f32 %v305, %v1672
  %v1729 = vsub.f32 %v305, %v1673
  %v1730 = vsub.f32 %v305, %v1674
  %v1731 = vsub.f32 %v309, %v1667
  %v1732 = vsub.f32 %v309, %v1668
  %v1733 = vsub.f32 %v309, %v1669
  %v1734 = vsub.f32 %v309, %v1670
  %v1735 = vsub.f32 %v309, %v1671
  %v1736 = vsub.f32 %v309, %v1672
  %v1737 = vsub.f32 %v309, %v1673
  %v1738 = vsub.f32 %v309, %v1674
  %v1739 = vsub.f32 %v313, %v1667
  %v1740 = vsub.f32 %v313, %v1668
  %v1741 = vsub.f32 %v313, %v1669
  %v1742 = vsub.f32 %v313, %v1670
  %v1743 = vsub.f32 %v313, %v1671
  %v1744 = vsub.f32 %v313, %v1672
  %v1745 = vsub.f32 %v313, %v1673
  %v1746 = vsub.f32 %v313, %v1674
  %v1747 = vsub.f32 %v317, %v1667
  %v1748 = vsub.f32 %v317, %v1668
  %v1749 = vsub.f32 %v317, %v1669
  %v1750 = vsub.f32 %v317, %v1670
  %v1751 = vsub.f32 %v317, %v1671
  %v1752 = vsub.f32 %v317, %v1672
  %v1753 = vsub.f32 %v317, %v1673
  %v1754 = vsub.f32 %v317, %v1674
  %v1755 = vsub.f32 %v321, %v1667
  %v1756 = vsub.f32 %v321, %v1668
  %v1757 = vsub.f32 %v321, %v1669
  %v1758 = vsub.f32 %v321, %v1670
  %v1759 = vsub.f32 %v321, %v1671
  %v1760 = vsub.f32 %v321, %v1672
  %v1761 = vsub.f32 %v321, %v1673
  %v1762 = vsub.f32 %v321, %v1674
  %v1763 = vsub.f32 %v325, %v1667
  %v1764 = vsub.f32 %v325, %v1668
  %v1765 = vsub.f32 %v325, %v1669
  %v1766 = vsub.f32 %v325, %v1670
  %v1767 = vsub.f32 %v325, %v1671
  %v1768 = vsub.f32 %v325, %v1672
  %v1769 = vsub.f32 %v325, %v1673
  %v1770 = vsub.f32 %v325, %v1674
  %v1771 = vsub.f32 %v329, %v1667
  %v1772 = vsub.f32 %v329, %v1668
  %v1773 = vsub.f32 %v329, %v1669
  %v1774 = vsub.f32 %v329, %v1670
  %v1775 = vsub.f32 %v329, %v1671
  %v1776 = vsub.f32 %v329, %v1672
  %v1777 = vsub.f32 %v329, %v1673
  %v1778 = vsub.f32 %v329, %v1674
  %v1779 = vsub.f32 %v333, %v1667
  %v1780 = vsub.f32 %v333, %v1668
  %v1781 = vsub.f32 %v333, %v1669
  %v1782 = vsub.f32 %v333, %v1670
  %v1783 = vsub.f32 %v333, %v1671
  %v1784 = vsub.f32 %v333, %v1672
  %v1785 = vsub.f32 %v333, %v1673
  %v1786 = vsub.f32 %v333, %v1674
  %v1787 = vsub.f32 %v337, %v1667
  %v1788 = vsub.f32 %v337, %v1668
  %v1789 = vsub.f32 %v337, %v1669
  %v1790 = vsub.f32 %v337, %v1670
  %v1791 = vsub.f32 %v337, %v1671
  %v1792 = vsub.f32 %v337, %v1672
  %v1793 = vsub.f32 %v337, %v1673
  %v1794 = vsub.f32 %v337, %v1674
  %v1795 = vsub.f32 %v341, %v1667
  %v1796 = vsub.f32 %v341, %v1668
  %v1797 = vsub.f32 %v341, %v1669
  %v1798 = vsub.f32 %v341, %v1670
  %v1799 = vsub.f32 %v341, %v1671
  %v1800 = vsub.f32 %v341, %v1672
  %v1801 = vsub.f32 %v341, %v1673
  %v1802 = vsub.f32 %v341, %v1674
  %v1803 = vperm.slane %v31, 2
  %v1804 = vperm.slane %v31, 6
  %v1805 = vperm.slane %v32, 2
  %v1806 = vperm.slane %v32, 6
  %v1807 = vperm.slane %v33, 2
  %v1808 = vperm.slane %v33, 6
  %v1809 = vperm.slane %v34, 2
  %v1810 = vperm.slane %v34, 6
  %v1819 = vperm.slane %v1803, 2
  %v1820 = vperm.slane %v1804, 2
  %v1821 = vperm.slane %v1805, 2
  %v1822 = vperm.slane %v1806, 2
  %v1823 = vperm.slane %v1807, 2
  %v1824 = vperm.slane %v1808, 2
  %v1825 = vperm.slane %v1809, 2
  %v1826 = vperm.slane %v1810, 2
  %v1827 = vsub.f32 %v497, %v1819
  %v1828 = vsub.f32 %v497, %v1820
  %v1829 = vsub.f32 %v497, %v1821
  %v1830 = vsub.f32 %v497, %v1822
  %v1831 = vsub.f32 %v497, %v1823
  %v1832 = vsub.f32 %v497, %v1824
  %v1833 = vsub.f32 %v497, %v1825
  %v1834 = vsub.f32 %v497, %v1826
  %v1835 = vsub.f32 %v501, %v1819
  %v1836 = vsub.f32 %v501, %v1820
  %v1837 = vsub.f32 %v501, %v1821
  %v1838 = vsub.f32 %v501, %v1822
  %v1839 = vsub.f32 %v501, %v1823
  %v1840 = vsub.f32 %v501, %v1824
  %v1841 = vsub.f32 %v501, %v1825
  %v1842 = vsub.f32 %v501, %v1826
  %v1843 = vsub.f32 %v505, %v1819
  %v1844 = vsub.f32 %v505, %v1820
  %v1845 = vsub.f32 %v505, %v1821
  %v1846 = vsub.f32 %v505, %v1822
  %v1847 = vsub.f32 %v505, %v1823
  %v1848 = vsub.f32 %v505, %v1824
  %v1849 = vsub.f32 %v505, %v1825
  %v1850 = vsub.f32 %v505, %v1826
  %v1851 = vsub.f32 %v509, %v1819
  %v1852 = vsub.f32 %v509, %v1820
  %v1853 = vsub.f32 %v509, %v1821
  %v1854 = vsub.f32 %v509, %v1822
  %v1855 = vsub.f32 %v509, %v1823
  %v1856 = vsub.f32 %v509, %v1824
  %v1857 = vsub.f32 %v509, %v1825
  %v1858 = vsub.f32 %v509, %v1826
  %v1859 = vsub.f32 %v513, %v1819
  %v1860 = vsub.f32 %v513, %v1820
  %v1861 = vsub.f32 %v513, %v1821
  %v1862 = vsub.f32 %v513, %v1822
  %v1863 = vsub.f32 %v513, %v1823
  %v1864 = vsub.f32 %v513, %v1824
  %v1865 = vsub.f32 %v513, %v1825
  %v1866 = vsub.f32 %v513, %v1826
  %v1867 = vsub.f32 %v517, %v1819
  %v1868 = vsub.f32 %v517, %v1820
  %v1869 = vsub.f32 %v517, %v1821
  %v1870 = vsub.f32 %v517, %v1822
  %v1871 = vsub.f32 %v517, %v1823
  %v1872 = vsub.f32 %v517, %v1824
  %v1873 = vsub.f32 %v517, %v1825
  %v1874 = vsub.f32 %v517, %v1826
  %v1875 = vsub.f32 %v521, %v1819
  %v1876 = vsub.f32 %v521, %v1820
  %v1877 = vsub.f32 %v521, %v1821
  %v1878 = vsub.f32 %v521, %v1822
  %v1879 = vsub.f32 %v521, %v1823
  %v1880 = vsub.f32 %v521, %v1824
  %v1881 = vsub.f32 %v521, %v1825
  %v1882 = vsub.f32 %v521, %v1826
  %v1883 = vsub.f32 %v525, %v1819
  %v1884 = vsub.f32 %v525, %v1820
  %v1885 = vsub.f32 %v525, %v1821
  %v1886 = vsub.f32 %v525, %v1822
  %v1887 = vsub.f32 %v525, %v1823
  %v1888 = vsub.f32 %v525, %v1824
  %v1889 = vsub.f32 %v525, %v1825
  %v1890 = vsub.f32 %v525, %v1826
  %v1891 = vsub.f32 %v529, %v1819
  %v1892 = vsub.f32 %v529, %v1820
  %v1893 = vsub.f32 %v529, %v1821
  %v1894 = vsub.f32 %v529, %v1822
  %v1895 = vsub.f32 %v529, %v1823
  %v1896 = vsub.f32 %v529, %v1824
  %v1897 = vsub.f32 %v529, %v1825
  %v1898 = vsub.f32 %v529, %v1826
  %v1899 = vsub.f32 %v533, %v1819
  %v1900 = vsub.f32 %v533, %v1820
  %v1901 = vsub.f32 %v533, %v1821
  %v1902 = vsub.f32 %v533, %v1822
  %v1903 = vsub.f32 %v533, %v1823
  %v1904 = vsub.f32 %v533, %v1824
  %v1905 = vsub.f32 %v533, %v1825
  %v1906 = vsub.f32 %v533, %v1826
  %v1907 = vsub.f32 %v537, %v1819
  %v1908 = vsub.f32 %v537, %v1820
  %v1909 = vsub.f32 %v537, %v1821
  %v1910 = vsub.f32 %v537, %v1822
  %v1911 = vsub.f32 %v537, %v1823
  %v1912 = vsub.f32 %v537, %v1824
  %v1913 = vsub.f32 %v537, %v1825
  %v1914 = vsub.f32 %v537, %v1826
  %v1915 = vsub.f32 %v541, %v1819
  %v1916 = vsub.f32 %v541, %v1820
  %v1917 = vsub.f32 %v541, %v1821
  %v1918 = vsub.f32 %v541, %v1822
  %v1919 = vsub.f32 %v541, %v1823
  %v1920 = vsub.f32 %v541, %v1824
  %v1921 = vsub.f32 %v541, %v1825
  %v1922 = vsub.f32 %v541, %v1826
  %v1923 = vsub.f32 %v545, %v1819
  %v1924 = vsub.f32 %v545, %v1820
  %v1925 = vsub.f32 %v545, %v1821
  %v1926 = vsub.f32 %v545, %v1822
  %v1927 = vsub.f32 %v545, %v1823
  %v1928 = vsub.f32 %v545, %v1824
  %v1929 = vsub.f32 %v545, %v1825
  %v1930 = vsub.f32 %v545, %v1826
  %v1931 = vsub.f32 %v549, %v1819
  %v1932 = vsub.f32 %v549, %v1820
  %v1933 = vsub.f32 %v549, %v1821
  %v1934 = vsub.f32 %v549, %v1822
  %v1935 = vsub.f32 %v549, %v1823
  %v1936 = vsub.f32 %v549, %v1824
  %v1937 = vsub.f32 %v549, %v1825
  %v1938 = vsub.f32 %v549, %v1826
  %v1939 = vsub.f32 %v553, %v1819
  %v1940 = vsub.f32 %v553, %v1820
  %v1941 = vsub.f32 %v553, %v1821
  %v1942 = vsub.f32 %v553, %v1822
  %v1943 = vsub.f32 %v553, %v1823
  %v1944 = vsub.f32 %v553, %v1824
  %v1945 = vsub.f32 %v553, %v1825
  %v1946 = vsub.f32 %v553, %v1826
  %v1947 = vsub.f32 %v557, %v1819
  %v1948 = vsub.f32 %v557, %v1820
  %v1949 = vsub.f32 %v557, %v1821
  %v1950 = vsub.f32 %v557, %v1822
  %v1951 = vsub.f32 %v557, %v1823
  %v1952 = vsub.f32 %v557, %v1824
  %v1953 = vsub.f32 %v557, %v1825
  %v1954 = vsub.f32 %v557, %v1826
  %v1955 = vmul.f32 %v1523, %v1523
  %v1956 = vmul.f32 %v1524, %v1524
  %v1957 = vmul.f32 %v1525, %v1525
  %v1958 = vmul.f32 %v1526, %v1526
  %v1959 = vmul.f32 %v1527, %v1527
  %v1960 = vmul.f32 %v1528, %v1528
  %v1961 = vmul.f32 %v1529, %v1529
  %v1962 = vmul.f32 %v1530, %v1530
  %v1963 = vmul.f32 %v1531, %v1531
  %v1964 = vmul.f32 %v1532, %v1532
  %v1965 = vmul.f32 %v1533, %v1533
  %v1966 = vmul.f32 %v1534, %v1534
  %v1967 = vmul.f32 %v1535, %v1535
  %v1968 = vmul.f32 %v1536, %v1536
  %v1969 = vmul.f32 %v1537, %v1537
  %v1970 = vmul.f32 %v1538, %v1538
  %v1971 = vmul.f32 %v1539, %v1539
  %v1972 = vmul.f32 %v1540, %v1540
  %v1973 = vmul.f32 %v1541, %v1541
  %v1974 = vmul.f32 %v1542, %v1542
  %v1975 = vmul.f32 %v1543, %v1543
  %v1976 = vmul.f32 %v1544, %v1544
  %v1977 = vmul.f32 %v1545, %v1545
  %v1978 = vmul.f32 %v1546, %v1546
  %v1979 = vmul.f32 %v1547, %v1547
  %v1980 = vmul.f32 %v1548, %v1548
  %v1981 = vmul.f32 %v1549, %v1549
  %v1982 = vmul.f32 %v1550, %v1550
  %v1983 = vmul.f32 %v1551, %v1551
  %v1984 = vmul.f32 %v1552, %v1552
  %v1985 = vmul.f32 %v1553, %v1553
  %v1986 = vmul.f32 %v1554, %v1554
  %v1987 = vmul.f32 %v1555, %v1555
  %v1988 = vmul.f32 %v1556, %v1556
  %v1989 = vmul.f32 %v1557, %v1557
  %v1990 = vmul.f32 %v1558, %v1558
  %v1991 = vmul.f32 %v1559, %v1559
  %v1992 = vmul.f32 %v1560, %v1560
  %v1993 = vmul.f32 %v1561, %v1561
  %v1994 = vmul.f32 %v1562, %v1562
  %v1995 = vmul.f32 %v1563, %v1563
  %v1996 = vmul.f32 %v1564, %v1564
  %v1997 = vmul.f32 %v1565, %v1565
  %v1998 = vmul.f32 %v1566, %v1566
  %v1999 = vmul.f32 %v1567, %v1567
  %v2000 = vmul.f32 %v1568, %v1568
  %v2001 = vmul.f32 %v1569, %v1569
  %v2002 = vmul.f32 %v1570, %v1570
  %v2003 = vmul.f32 %v1571, %v1571
  %v2004 = vmul.f32 %v1572, %v1572
  %v2005 = vmul.f32 %v1573, %v1573
  %v2006 = vmul.f32 %v1574, %v1574
  %v2007 = vmul.f32 %v1575, %v1575
  %v2008 = vmul.f32 %v1576, %v1576
  %v2009 = vmul.f32 %v1577, %v1577
  %v2010 = vmul.f32 %v1578, %v1578
  %v2011 = vmul.f32 %v1579, %v1579
  %v2012 = vmul.f32 %v1580, %v1580
  %v2013 = vmul.f32 %v1581, %v1581
  %v2014 = vmul.f32 %v1582, %v1582
  %v2015 = vmul.f32 %v1583, %v1583
  %v2016 = vmul.f32 %v1584, %v1584
  %v2017 = vmul.f32 %v1585, %v1585
  %v2018 = vmul.f32 %v1586, %v1586
  %v2019 = vmul.f32 %v1587, %v1587
  %v2020 = vmul.f32 %v1588, %v1588
  %v2021 = vmul.f32 %v1589, %v1589
  %v2022 = vmul.f32 %v1590, %v1590
  %v2023 = vmul.f32 %v1591, %v1591
  %v2024 = vmul.f32 %v1592, %v1592
  %v2025 = vmul.f32 %v1593, %v1593
  %v2026 = vmul.f32 %v1594, %v1594
  %v2027 = vmul.f32 %v1595, %v1595
  %v2028 = vmul.f32 %v1596, %v1596
  %v2029 = vmul.f32 %v1597, %v1597
  %v2030 = vmul.f32 %v1598, %v1598
  %v2031 = vmul.f32 %v1599, %v1599
  %v2032 = vmul.f32 %v1600, %v1600
  %v2033 = vmul.f32 %v1601, %v1601
  %v2034 = vmul.f32 %v1602, %v1602
  %v2035 = vmul.f32 %v1603, %v1603
  %v2036 = vmul.f32 %v1604, %v1604
  %v2037 = vmul.f32 %v1605, %v1605
  %v2038 = vmul.f32 %v1606, %v1606
  %v2039 = vmul.f32 %v1607, %v1607
  %v2040 = vmul.f32 %v1608, %v1608
  %v2041 = vmul.f32 %v1609, %v1609
  %v2042 = vmul.f32 %v1610, %v1610
  %v2043 = vmul.f32 %v1611, %v1611
  %v2044 = vmul.f32 %v1612, %v1612
  %v2045 = vmul.f32 %v1613, %v1613
  %v2046 = vmul.f32 %v1614, %v1614
  %v2047 = vmul.f32 %v1615, %v1615
  %v2048 = vmul.f32 %v1616, %v1616
  %v2049 = vmul.f32 %v1617, %v1617
  %v2050 = vmul.f32 %v1618, %v1618
  %v2051 = vmul.f32 %v1619, %v1619
  %v2052 = vmul.f32 %v1620, %v1620
  %v2053 = vmul.f32 %v1621, %v1621
  %v2054 = vmul.f32 %v1622, %v1622
  %v2055 = vmul.f32 %v1623, %v1623
  %v2056 = vmul.f32 %v1624, %v1624
  %v2057 = vmul.f32 %v1625, %v1625
  %v2058 = vmul.f32 %v1626, %v1626
  %v2059 = vmul.f32 %v1627, %v1627
  %v2060 = vmul.f32 %v1628, %v1628
  %v2061 = vmul.f32 %v1629, %v1629
  %v2062 = vmul.f32 %v1630, %v1630
  %v2063 = vmul.f32 %v1631, %v1631
  %v2064 = vmul.f32 %v1632, %v1632
  %v2065 = vmul.f32 %v1633, %v1633
  %v2066 = vmul.f32 %v1634, %v1634
  %v2067 = vmul.f32 %v1635, %v1635
  %v2068 = vmul.f32 %v1636, %v1636
  %v2069 = vmul.f32 %v1637, %v1637
  %v2070 = vmul.f32 %v1638, %v1638
  %v2071 = vmul.f32 %v1639, %v1639
  %v2072 = vmul.f32 %v1640, %v1640
  %v2073 = vmul.f32 %v1641, %v1641
  %v2074 = vmul.f32 %v1642, %v1642
  %v2075 = vmul.f32 %v1643, %v1643
  %v2076 = vmul.f32 %v1644, %v1644
  %v2077 = vmul.f32 %v1645, %v1645
  %v2078 = vmul.f32 %v1646, %v1646
  %v2079 = vmul.f32 %v1647, %v1647
  %v2080 = vmul.f32 %v1648, %v1648
  %v2081 = vmul.f32 %v1649, %v1649
  %v2082 = vmul.f32 %v1650, %v1650
  %v2083 = vmul.f32 %v1675, %v1675
  %v2084 = vmul.f32 %v1676, %v1676
  %v2085 = vmul.f32 %v1677, %v1677
  %v2086 = vmul.f32 %v1678, %v1678
  %v2087 = vmul.f32 %v1679, %v1679
  %v2088 = vmul.f32 %v1680, %v1680
  %v2089 = vmul.f32 %v1681, %v1681
  %v2090 = vmul.f32 %v1682, %v1682
  %v2091 = vmul.f32 %v1683, %v1683
  %v2092 = vmul.f32 %v1684, %v1684
  %v2093 = vmul.f32 %v1685, %v1685
  %v2094 = vmul.f32 %v1686, %v1686
  %v2095 = vmul.f32 %v1687, %v1687
  %v2096 = vmul.f32 %v1688, %v1688
  %v2097 = vmul.f32 %v1689, %v1689
  %v2098 = vmul.f32 %v1690, %v1690
  %v2099 = vmul.f32 %v1691, %v1691
  %v2100 = vmul.f32 %v1692, %v1692
  %v2101 = vmul.f32 %v1693, %v1693
  %v2102 = vmul.f32 %v1694, %v1694
  %v2103 = vmul.f32 %v1695, %v1695
  %v2104 = vmul.f32 %v1696, %v1696
  %v2105 = vmul.f32 %v1697, %v1697
  %v2106 = vmul.f32 %v1698, %v1698
  %v2107 = vmul.f32 %v1699, %v1699
  %v2108 = vmul.f32 %v1700, %v1700
  %v2109 = vmul.f32 %v1701, %v1701
  %v2110 = vmul.f32 %v1702, %v1702
  %v2111 = vmul.f32 %v1703, %v1703
  %v2112 = vmul.f32 %v1704, %v1704
  %v2113 = vmul.f32 %v1705, %v1705
  %v2114 = vmul.f32 %v1706, %v1706
  %v2115 = vmul.f32 %v1707, %v1707
  %v2116 = vmul.f32 %v1708, %v1708
  %v2117 = vmul.f32 %v1709, %v1709
  %v2118 = vmul.f32 %v1710, %v1710
  %v2119 = vmul.f32 %v1711, %v1711
  %v2120 = vmul.f32 %v1712, %v1712
  %v2121 = vmul.f32 %v1713, %v1713
  %v2122 = vmul.f32 %v1714, %v1714
  %v2123 = vmul.f32 %v1715, %v1715
  %v2124 = vmul.f32 %v1716, %v1716
  %v2125 = vmul.f32 %v1717, %v1717
  %v2126 = vmul.f32 %v1718, %v1718
  %v2127 = vmul.f32 %v1719, %v1719
  %v2128 = vmul.f32 %v1720, %v1720
  %v2129 = vmul.f32 %v1721, %v1721
  %v2130 = vmul.f32 %v1722, %v1722
  %v2131 = vmul.f32 %v1723, %v1723
  %v2132 = vmul.f32 %v1724, %v1724
  %v2133 = vmul.f32 %v1725, %v1725
  %v2134 = vmul.f32 %v1726, %v1726
  %v2135 = vmul.f32 %v1727, %v1727
  %v2136 = vmul.f32 %v1728, %v1728
  %v2137 = vmul.f32 %v1729, %v1729
  %v2138 = vmul.f32 %v1730, %v1730
  %v2139 = vmul.f32 %v1731, %v1731
  %v2140 = vmul.f32 %v1732, %v1732
  %v2141 = vmul.f32 %v1733, %v1733
  %v2142 = vmul.f32 %v1734, %v1734
  %v2143 = vmul.f32 %v1735, %v1735
  %v2144 = vmul.f32 %v1736, %v1736
  %v2145 = vmul.f32 %v1737, %v1737
  %v2146 = vmul.f32 %v1738, %v1738
  %v2147 = vmul.f32 %v1739, %v1739
  %v2148 = vmul.f32 %v1740, %v1740
  %v2149 = vmul.f32 %v1741, %v1741
  %v2150 = vmul.f32 %v1742, %v1742
  %v2151 = vmul.f32 %v1743, %v1743
  %v2152 = vmul.f32 %v1744, %v1744
  %v2153 = vmul.f32 %v1745, %v1745
  %v2154 = vmul.f32 %v1746, %v1746
  %v2155 = vmul.f32 %v1747, %v1747
  %v2156 = vmul.f32 %v1748, %v1748
  %v2157 = vmul.f32 %v1749, %v1749
  %v2158 = vmul.f32 %v1750, %v1750
  %v2159 = vmul.f32 %v1751, %v1751
  %v2160 = vmul.f32 %v1752, %v1752
  %v2161 = vmul.f32 %v1753, %v1753
  %v2162 = vmul.f32 %v1754, %v1754
  %v2163 = vmul.f32 %v1755, %v1755
  %v2164 = vmul.f32 %v1756, %v1756
  %v2165 = vmul.f32 %v1757, %v1757
  %v2166 = vmul.f32 %v1758, %v1758
  %v2167 = vmul.f32 %v1759, %v1759
  %v2168 = vmul.f32 %v1760, %v1760
  %v2169 = vmul.f32 %v1761, %v1761
  %v2170 = vmul.f32 %v1762, %v1762
  %v2171 = vmul.f32 %v1763, %v1763
  %v2172 = vmul.f32 %v1764, %v1764
  %v2173 = vmul.f32 %v1765, %v1765
  %v2174 = vmul.f32 %v1766, %v1766
  %v2175 = vmul.f32 %v1767, %v1767
  %v2176 = vmul.f32 %v1768, %v1768
  %v2177 = vmul.f32 %v1769, %v1769
  %v2178 = vmul.f32 %v1770, %v1770
  %v2179 = vmul.f32 %v1771, %v1771
  %v2180 = vmul.f32 %v1772, %v1772
  %v2181 = vmul.f32 %v1773, %v1773
  %v2182 = vmul.f32 %v1774, %v1774
  %v2183 = vmul.f32 %v1775, %v1775
  %v2184 = vmul.f32 %v1776, %v1776
  %v2185 = vmul.f32 %v1777, %v1777
  %v2186 = vmul.f32 %v1778, %v1778
  %v2187 = vmul.f32 %v1779, %v1779
  %v2188 = vmul.f32 %v1780, %v1780
  %v2189 = vmul.f32 %v1781, %v1781
  %v2190 = vmul.f32 %v1782, %v1782
  %v2191 = vmul.f32 %v1783, %v1783
  %v2192 = vmul.f32 %v1784, %v1784
  %v2193 = vmul.f32 %v1785, %v1785
  %v2194 = vmul.f32 %v1786, %v1786
  %v2195 = vmul.f32 %v1787, %v1787
  %v2196 = vmul.f32 %v1788, %v1788
  %v2197 = vmul.f32 %v1789, %v1789
  %v2198 = vmul.f32 %v1790, %v1790
  %v2199 = vmul.f32 %v1791, %v1791
  %v2200 = vmul.f32 %v1792, %v1792
  %v2201 = vmul.f32 %v1793, %v1793
  %v2202 = vmul.f32 %v1794, %v1794
  %v2203 = vmul.f32 %v1795, %v1795
  %v2204 = vmul.f32 %v1796, %v1796
  %v2205 = vmul.f32 %v1797, %v1797
  %v2206 = vmul.f32 %v1798, %v1798
  %v2207 = vmul.f32 %v1799, %v1799
  %v2208 = vmul.f32 %v1800, %v1800
  %v2209 = vmul.f32 %v1801, %v1801
  %v2210 = vmul.f32 %v1802, %v1802
  %v2211 = vadd.f32 %v1955, %v2083
  %v2212 = vadd.f32 %v1956, %v2084
  %v2213 = vadd.f32 %v1957, %v2085
  %v2214 = vadd.f32 %v1958, %v2086
  %v2215 = vadd.f32 %v1959, %v2087
  %v2216 = vadd.f32 %v1960, %v2088
  %v2217 = vadd.f32 %v1961, %v2089
  %v2218 = vadd.f32 %v1962, %v2090
  %v2219 = vadd.f32 %v1963, %v2091
  %v2220 = vadd.f32 %v1964, %v2092
  %v2221 = vadd.f32 %v1965, %v2093
  %v2222 = vadd.f32 %v1966, %v2094
  %v2223 = vadd.f32 %v1967, %v2095
  %v2224 = vadd.f32 %v1968, %v2096
  %v2225 = vadd.f32 %v1969, %v2097
  %v2226 = vadd.f32 %v1970, %v2098
  %v2227 = vadd.f32 %v1971, %v2099
  %v2228 = vadd.f32 %v1972, %v2100
  %v2229 = vadd.f32 %v1973, %v2101
  %v2230 = vadd.f32 %v1974, %v2102
  %v2231 = vadd.f32 %v1975, %v2103
  %v2232 = vadd.f32 %v1976, %v2104
  %v2233 = vadd.f32 %v1977, %v2105
  %v2234 = vadd.f32 %v1978, %v2106
  %v2235 = vadd.f32 %v1979, %v2107
  %v2236 = vadd.f32 %v1980, %v2108
  %v2237 = vadd.f32 %v1981, %v2109
  %v2238 = vadd.f32 %v1982, %v2110
  %v2239 = vadd.f32 %v1983, %v2111
  %v2240 = vadd.f32 %v1984, %v2112
  %v2241 = vadd.f32 %v1985, %v2113
  %v2242 = vadd.f32 %v1986, %v2114
  %v2243 = vadd.f32 %v1987, %v2115
  %v2244 = vadd.f32 %v1988, %v2116
  %v2245 = vadd.f32 %v1989, %v2117
  %v2246 = vadd.f32 %v1990, %v2118
  %v2247 = vadd.f32 %v1991, %v2119
  %v2248 = vadd.f32 %v1992, %v2120
  %v2249 = vadd.f32 %v1993, %v2121
  %v2250 = vadd.f32 %v1994, %v2122
  %v2251 = vadd.f32 %v1995, %v2123
  %v2252 = vadd.f32 %v1996, %v2124
  %v2253 = vadd.f32 %v1997, %v2125
  %v2254 = vadd.f32 %v1998, %v2126
  %v2255 = vadd.f32 %v1999, %v2127
  %v2256 = vadd.f32 %v2000, %v2128
  %v2257 = vadd.f32 %v2001, %v2129
  %v2258 = vadd.f32 %v2002, %v2130
  %v2259 = vadd.f32 %v2003, %v2131
  %v2260 = vadd.f32 %v2004, %v2132
  %v2261 = vadd.f32 %v2005, %v2133
  %v2262 = vadd.f32 %v2006, %v2134
  %v2263 = vadd.f32 %v2007, %v2135
  %v2264 = vadd.f32 %v2008, %v2136
  %v2265 = vadd.f32 %v2009, %v2137
  %v2266 = vadd.f32 %v2010, %v2138
  %v2267 = vadd.f32 %v2011, %v2139
  %v2268 = vadd.f32 %v2012, %v2140
  %v2269 = vadd.f32 %v2013, %v2141
  %v2270 = vadd.f32 %v2014, %v2142
  %v2271 = vadd.f32 %v2015, %v2143
  %v2272 = vadd.f32 %v2016, %v2144
  %v2273 = vadd.f32 %v2017, %v2145
  %v2274 = vadd.f32 %v2018, %v2146
  %v2275 = vadd.f32 %v2019, %v2147
  %v2276 = vadd.f32 %v2020, %v2148
  %v2277 = vadd.f32 %v2021, %v2149
  %v2278 = vadd.f32 %v2022, %v2150
  %v2279 = vadd.f32 %v2023, %v2151
  %v2280 = vadd.f32 %v2024, %v2152
  %v2281 = vadd.f32 %v2025, %v2153
  %v2282 = vadd.f32 %v2026, %v2154
  %v2283 = vadd.f32 %v2027, %v2155
  %v2284 = vadd.f32 %v2028, %v2156
  %v2285 = vadd.f32 %v2029, %v2157
  %v2286 = vadd.f32 %v2030, %v2158
  %v2287 = vadd.f32 %v2031, %v2159
  %v2288 = vadd.f32 %v2032, %v2160
  %v2289 = vadd.f32 %v2033, %v2161
  %v2290 = vadd.f32 %v2034, %v2162
  %v2291 = vadd.f32 %v2035, %v2163
  %v2292 = vadd.f32 %v2036, %v2164
  %v2293 = vadd.f32 %v2037, %v2165
  %v2294 = vadd.f32 %v2038, %v2166
  %v2295 = vadd.f32 %v2039, %v2167
  %v2296 = vadd.f32 %v2040, %v2168
  %v2297 = vadd.f32 %v2041, %v2169
  %v2298 = vadd.f32 %v2042, %v2170
  %v2299 = vadd.f32 %v2043, %v2171
  %v2300 = vadd.f32 %v2044, %v2172
  %v2301 = vadd.f32 %v2045, %v2173
  %v2302 = vadd.f32 %v2046, %v2174
  %v2303 = vadd.f32 %v2047, %v2175
  %v2304 = vadd.f32 %v2048, %v2176
  %v2305 = vadd.f32 %v2049, %v2177
  %v2306 = vadd.f32 %v2050, %v2178
  %v2307 = vadd.f32 %v2051, %v2179
  %v2308 = vadd.f32 %v2052, %v2180
  %v2309 = vadd.f32 %v2053, %v2181
  %v2310 = vadd.f32 %v2054, %v2182
  %v2311 = vadd.f32 %v2055, %v2183
  %v2312 = vadd.f32 %v2056, %v2184
  %v2313 = vadd.f32 %v2057, %v2185
  %v2314 = vadd.f32 %v2058, %v2186
  %v2315 = vadd.f32 %v2059, %v2187
  %v2316 = vadd.f32 %v2060, %v2188
  %v2317 = vadd.f32 %v2061, %v2189
  %v2318 = vadd.f32 %v2062, %v2190
  %v2319 = vadd.f32 %v2063, %v2191
  %v2320 = vadd.f32 %v2064, %v2192
  %v2321 = vadd.f32 %v2065, %v2193
  %v2322 = vadd.f32 %v2066, %v2194
  %v2323 = vadd.f32 %v2067, %v2195
  %v2324 = vadd.f32 %v2068, %v2196
  %v2325 = vadd.f32 %v2069, %v2197
  %v2326 = vadd.f32 %v2070, %v2198
  %v2327 = vadd.f32 %v2071, %v2199
  %v2328 = vadd.f32 %v2072, %v2200
  %v2329 = vadd.f32 %v2073, %v2201
  %v2330 = vadd.f32 %v2074, %v2202
  %v2331 = vadd.f32 %v2075, %v2203
  %v2332 = vadd.f32 %v2076, %v2204
  %v2333 = vadd.f32 %v2077, %v2205
  %v2334 = vadd.f32 %v2078, %v2206
  %v2335 = vadd.f32 %v2079, %v2207
  %v2336 = vadd.f32 %v2080, %v2208
  %v2337 = vadd.f32 %v2081, %v2209
  %v2338 = vadd.f32 %v2082, %v2210
  %v2339 = vmul.f32 %v1827, %v1827
  %v2340 = vmul.f32 %v1828, %v1828
  %v2341 = vmul.f32 %v1829, %v1829
  %v2342 = vmul.f32 %v1830, %v1830
  %v2343 = vmul.f32 %v1831, %v1831
  %v2344 = vmul.f32 %v1832, %v1832
  %v2345 = vmul.f32 %v1833, %v1833
  %v2346 = vmul.f32 %v1834, %v1834
  %v2347 = vmul.f32 %v1835, %v1835
  %v2348 = vmul.f32 %v1836, %v1836
  %v2349 = vmul.f32 %v1837, %v1837
  %v2350 = vmul.f32 %v1838, %v1838
  %v2351 = vmul.f32 %v1839, %v1839
  %v2352 = vmul.f32 %v1840, %v1840
  %v2353 = vmul.f32 %v1841, %v1841
  %v2354 = vmul.f32 %v1842, %v1842
  %v2355 = vmul.f32 %v1843, %v1843
  %v2356 = vmul.f32 %v1844, %v1844
  %v2357 = vmul.f32 %v1845, %v1845
  %v2358 = vmul.f32 %v1846, %v1846
  %v2359 = vmul.f32 %v1847, %v1847
  %v2360 = vmul.f32 %v1848, %v1848
  %v2361 = vmul.f32 %v1849, %v1849
  %v2362 = vmul.f32 %v1850, %v1850
  %v2363 = vmul.f32 %v1851, %v1851
  %v2364 = vmul.f32 %v1852, %v1852
  %v2365 = vmul.f32 %v1853, %v1853
  %v2366 = vmul.f32 %v1854, %v1854
  %v2367 = vmul.f32 %v1855, %v1855
  %v2368 = vmul.f32 %v1856, %v1856
  %v2369 = vmul.f32 %v1857, %v1857
  %v2370 = vmul.f32 %v1858, %v1858
  %v2371 = vmul.f32 %v1859, %v1859
  %v2372 = vmul.f32 %v1860, %v1860
  %v2373 = vmul.f32 %v1861, %v1861
  %v2374 = vmul.f32 %v1862, %v1862
  %v2375 = vmul.f32 %v1863, %v1863
  %v2376 = vmul.f32 %v1864, %v1864
  %v2377 = vmul.f32 %v1865, %v1865
  %v2378 = vmul.f32 %v1866, %v1866
  %v2379 = vmul.f32 %v1867, %v1867
  %v2380 = vmul.f32 %v1868, %v1868
  %v2381 = vmul.f32 %v1869, %v1869
  %v2382 = vmul.f32 %v1870, %v1870
  %v2383 = vmul.f32 %v1871, %v1871
  %v2384 = vmul.f32 %v1872, %v1872
  %v2385 = vmul.f32 %v1873, %v1873
  %v2386 = vmul.f32 %v1874, %v1874
  %v2387 = vmul.f32 %v1875, %v1875
  %v2388 = vmul.f32 %v1876, %v1876
  %v2389 = vmul.f32 %v1877, %v1877
  %v2390 = vmul.f32 %v1878, %v1878
  %v2391 = vmul.f32 %v1879, %v1879
  %v2392 = vmul.f32 %v1880, %v1880
  %v2393 = vmul.f32 %v1881, %v1881
  %v2394 = vmul.f32 %v1882, %v1882
  %v2395 = vmul.f32 %v1883, %v1883
  %v2396 = vmul.f32 %v1884, %v1884
  %v2397 = vmul.f32 %v1885, %v1885
  %v2398 = vmul.f32 %v1886, %v1886
  %v2399 = vmul.f32 %v1887, %v1887
  %v2400 = vmul.f32 %v1888, %v1888
  %v2401 = vmul.f32 %v1889, %v1889
  %v2402 = vmul.f32 %v1890, %v1890
  %v2403 = vmul.f32 %v1891, %v1891
  %v2404 = vmul.f32 %v1892, %v1892
  %v2405 = vmul.f32 %v1893, %v1893
  %v2406 = vmul.f32 %v1894, %v1894
  %v2407 = vmul.f32 %v1895, %v1895
  %v2408 = vmul.f32 %v1896, %v1896
  %v2409 = vmul.f32 %v1897, %v1897
  %v2410 = vmul.f32 %v1898, %v1898
  %v2411 = vmul.f32 %v1899, %v1899
  %v2412 = vmul.f32 %v1900, %v1900
  %v2413 = vmul.f32 %v1901, %v1901
  %v2414 = vmul.f32 %v1902, %v1902
  %v2415 = vmul.f32 %v1903, %v1903
  %v2416 = vmul.f32 %v1904, %v1904
  %v2417 = vmul.f32 %v1905, %v1905
  %v2418 = vmul.f32 %v1906, %v1906
  %v2419 = vmul.f32 %v1907, %v1907
  %v2420 = vmul.f32 %v1908, %v1908
  %v2421 = vmul.f32 %v1909, %v1909
  %v2422 = vmul.f32 %v1910, %v1910
  %v2423 = vmul.f32 %v1911, %v1911
  %v2424 = vmul.f32 %v1912, %v1912
  %v2425 = vmul.f32 %v1913, %v1913
  %v2426 = vmul.f32 %v1914, %v1914
  %v2427 = vmul.f32 %v1915, %v1915
  %v2428 = vmul.f32 %v1916, %v1916
  %v2429 = vmul.f32 %v1917, %v1917
  %v2430 = vmul.f32 %v1918, %v1918
  %v2431 = vmul.f32 %v1919, %v1919
  %v2432 = vmul.f32 %v1920, %v1920
  %v2433 = vmul.f32 %v1921, %v1921
  %v2434 = vmul.f32 %v1922, %v1922
  %v2435 = vmul.f32 %v1923, %v1923
  %v2436 = vmul.f32 %v1924, %v1924
  %v2437 = vmul.f32 %v1925, %v1925
  %v2438 = vmul.f32 %v1926, %v1926
  %v2439 = vmul.f32 %v1927, %v1927
  %v2440 = vmul.f32 %v1928, %v1928
  %v2441 = vmul.f32 %v1929, %v1929
  %v2442 = vmul.f32 %v1930, %v1930
  %v2443 = vmul.f32 %v1931, %v1931
  %v2444 = vmul.f32 %v1932, %v1932
  %v2445 = vmul.f32 %v1933, %v1933
  %v2446 = vmul.f32 %v1934, %v1934
  %v2447 = vmul.f32 %v1935, %v1935
  %v2448 = vmul.f32 %v1936, %v1936
  %v2449 = vmul.f32 %v1937, %v1937
  %v2450 = vmul.f32 %v1938, %v1938
  %v2451 = vmul.f32 %v1939, %v1939
  %v2452 = vmul.f32 %v1940, %v1940
  %v2453 = vmul.f32 %v1941, %v1941
  %v2454 = vmul.f32 %v1942, %v1942
  %v2455 = vmul.f32 %v1943, %v1943
  %v2456 = vmul.f32 %v1944, %v1944
  %v2457 = vmul.f32 %v1945, %v1945
  %v2458 = vmul.f32 %v1946, %v1946
  %v2459 = vmul.f32 %v1947, %v1947
  %v2460 = vmul.f32 %v1948, %v1948
  %v2461 = vmul.f32 %v1949, %v1949
  %v2462 = vmul.f32 %v1950, %v1950
  %v2463 = vmul.f32 %v1951, %v1951
  %v2464 = vmul.f32 %v1952, %v1952
  %v2465 = vmul.f32 %v1953, %v1953
  %v2466 = vmul.f32 %v1954, %v1954
  %v2467 = vadd.f32 %v2211, %v2339
  %v2468 = vadd.f32 %v2212, %v2340
  %v2469 = vadd.f32 %v2213, %v2341
  %v2470 = vadd.f32 %v2214, %v2342
  %v2471 = vadd.f32 %v2215, %v2343
  %v2472 = vadd.f32 %v2216, %v2344
  %v2473 = vadd.f32 %v2217, %v2345
  %v2474 = vadd.f32 %v2218, %v2346
  %v2475 = vadd.f32 %v2219, %v2347
  %v2476 = vadd.f32 %v2220, %v2348
  %v2477 = vadd.f32 %v2221, %v2349
  %v2478 = vadd.f32 %v2222, %v2350
  %v2479 = vadd.f32 %v2223, %v2351
  %v2480 = vadd.f32 %v2224, %v2352
  %v2481 = vadd.f32 %v2225, %v2353
  %v2482 = vadd.f32 %v2226, %v2354
  %v2483 = vadd.f32 %v2227, %v2355
  %v2484 = vadd.f32 %v2228, %v2356
  %v2485 = vadd.f32 %v2229, %v2357
  %v2486 = vadd.f32 %v2230, %v2358
  %v2487 = vadd.f32 %v2231, %v2359
  %v2488 = vadd.f32 %v2232, %v2360
  %v2489 = vadd.f32 %v2233, %v2361
  %v2490 = vadd.f32 %v2234, %v2362
  %v2491 = vadd.f32 %v2235, %v2363
  %v2492 = vadd.f32 %v2236, %v2364
  %v2493 = vadd.f32 %v2237, %v2365
  %v2494 = vadd.f32 %v2238, %v2366
  %v2495 = vadd.f32 %v2239, %v2367
  %v2496 = vadd.f32 %v2240, %v2368
  %v2497 = vadd.f32 %v2241, %v2369
  %v2498 = vadd.f32 %v2242, %v2370
  %v2499 = vadd.f32 %v2243, %v2371
  %v2500 = vadd.f32 %v2244, %v2372
  %v2501 = vadd.f32 %v2245, %v2373
  %v2502 = vadd.f32 %v2246, %v2374
  %v2503 = vadd.f32 %v2247, %v2375
  %v2504 = vadd.f32 %v2248, %v2376
  %v2505 = vadd.f32 %v2249, %v2377
  %v2506 = vadd.f32 %v2250, %v2378
  %v2507 = vadd.f32 %v2251, %v2379
  %v2508 = vadd.f32 %v2252, %v2380
  %v2509 = vadd.f32 %v2253, %v2381
  %v2510 = vadd.f32 %v2254, %v2382
  %v2511 = vadd.f32 %v2255, %v2383
  %v2512 = vadd.f32 %v2256, %v2384
  %v2513 = vadd.f32 %v2257, %v2385
  %v2514 = vadd.f32 %v2258, %v2386
  %v2515 = vadd.f32 %v2259, %v2387
  %v2516 = vadd.f32 %v2260, %v2388
  %v2517 = vadd.f32 %v2261, %v2389
  %v2518 = vadd.f32 %v2262, %v2390
  %v2519 = vadd.f32 %v2263, %v2391
  %v2520 = vadd.f32 %v2264, %v2392
  %v2521 = vadd.f32 %v2265, %v2393
  %v2522 = vadd.f32 %v2266, %v2394
  %v2523 = vadd.f32 %v2267, %v2395
  %v2524 = vadd.f32 %v2268, %v2396
  %v2525 = vadd.f32 %v2269, %v2397
  %v2526 = vadd.f32 %v2270, %v2398
  %v2527 = vadd.f32 %v2271, %v2399
  %v2528 = vadd.f32 %v2272, %v2400
  %v2529 = vadd.f32 %v2273, %v2401
  %v2530 = vadd.f32 %v2274, %v2402
  %v2531 = vadd.f32 %v2275, %v2403
  %v2532 = vadd.f32 %v2276, %v2404
  %v2533 = vadd.f32 %v2277, %v2405
  %v2534 = vadd.f32 %v2278, %v2406
  %v2535 = vadd.f32 %v2279, %v2407
  %v2536 = vadd.f32 %v2280, %v2408
  %v2537 = vadd.f32 %v2281, %v2409
  %v2538 = vadd.f32 %v2282, %v2410
  %v2539 = vadd.f32 %v2283, %v2411
  %v2540 = vadd.f32 %v2284, %v2412
  %v2541 = vadd.f32 %v2285, %v2413
  %v2542 = vadd.f32 %v2286, %v2414
  %v2543 = vadd.f32 %v2287, %v2415
  %v2544 = vadd.f32 %v2288, %v2416
  %v2545 = vadd.f32 %v2289, %v2417
  %v2546 = vadd.f32 %v2290, %v2418
  %v2547 = vadd.f32 %v2291, %v2419
  %v2548 = vadd.f32 %v2292, %v2420
  %v2549 = vadd.f32 %v2293, %v2421
  %v2550 = vadd.f32 %v2294, %v2422
  %v2551 = vadd.f32 %v2295, %v2423
  %v2552 = vadd.f32 %v2296, %v2424
  %v2553 = vadd.f32 %v2297, %v2425
  %v2554 = vadd.f32 %v2298, %v2426
  %v2555 = vadd.f32 %v2299, %v2427
  %v2556 = vadd.f32 %v2300, %v2428
  %v2557 = vadd.f32 %v2301, %v2429
  %v2558 = vadd.f32 %v2302, %v2430
  %v2559 = vadd.f32 %v2303, %v2431
  %v2560 = vadd.f32 %v2304, %v2432
  %v2561 = vadd.f32 %v2305, %v2433
  %v2562 = vadd.f32 %v2306, %v2434
  %v2563 = vadd.f32 %v2307, %v2435
  %v2564 = vadd.f32 %v2308, %v2436
  %v2565 = vadd.f32 %v2309, %v2437
  %v2566 = vadd.f32 %v2310, %v2438
  %v2567 = vadd.f32 %v2311, %v2439
  %v2568 = vadd.f32 %v2312, %v2440
  %v2569 = vadd.f32 %v2313, %v2441
  %v2570 = vadd.f32 %v2314, %v2442
  %v2571 = vadd.f32 %v2315, %v2443
  %v2572 = vadd.f32 %v2316, %v2444
  %v2573 = vadd.f32 %v2317, %v2445
  %v2574 = vadd.f32 %v2318, %v2446
  %v2575 = vadd.f32 %v2319, %v2447
  %v2576 = vadd.f32 %v2320, %v2448
  %v2577 = vadd.f32 %v2321, %v2449
  %v2578 = vadd.f32 %v2322, %v2450
  %v2579 = vadd.f32 %v2323, %v2451
  %v2580 = vadd.f32 %v2324, %v2452
  %v2581 = vadd.f32 %v2325, %v2453
  %v2582 = vadd.f32 %v2326, %v2454
  %v2583 = vadd.f32 %v2327, %v2455
  %v2584 = vadd.f32 %v2328, %v2456
  %v2585 = vadd.f32 %v2329, %v2457
  %v2586 = vadd.f32 %v2330, %v2458
  %v2587 = vadd.f32 %v2331, %v2459
  %v2588 = vadd.f32 %v2332, %v2460
  %v2589 = vadd.f32 %v2333, %v2461
  %v2590 = vadd.f32 %v2334, %v2462
  %v2591 = vadd.f32 %v2335, %v2463
  %v2592 = vadd.f32 %v2336, %v2464
  %v2593 = vadd.f32 %v2337, %v2465
  %v2594 = vadd.f32 %v2338, %v2466
  %v2595 = vmin.f32 %v2467, %v2468
  %v2596 = vmin.f32 %v2595, %v2469
  %v2597 = vmin.f32 %v2596, %v2470
  %v2598 = vmin.f32 %v2597, %v2471
  %v2599 = vmin.f32 %v2598, %v2472
  %v2600 = vmin.f32 %v2599, %v2473
  %v2601 = vmin.f32 %v2600, %v2474
  %2602 = vmin.xlane.f32.xlu0 %v2601
  %v2603 = vpop.xlane.xlu0 %2602
  %v2604 = vmin.f32 %v2475, %v2476
  %v2605 = vmin.f32 %v2604, %v2477
  %v2606 = vmin.f32 %v2605, %v2478
  %v2607 = vmin.f32 %v2606, %v2479
  %v2608 = vmin.f32 %v2607, %v2480
  %v2609 = vmin.f32 %v2608, %v2481
  %v2610 = vmin.f32 %v2609, %v2482
  %2611 = vmin.xlane.f32.xlu0 %v2610
  %v2612 = vpop.xlane.xlu0 %2611
  %v2613 = vmin.f32 %v2483, %v2484
  %v2614 = vmin.f32 %v2613, %v2485
  %v2615 = vmin.f32 %v2614, %v2486
  %v2616 = vmin.f32 %v2615, %v2487
  %v2617 = vmin.f32 %v2616, %v2488
  %v2618 = vmin.f32 %v2617, %v2489
  %v2619 = vmin.f32 %v2618, %v2490
  %2620 = vmin.xlane.f32.xlu0 %v2619
  %v2621 = vpop.xlane.xlu0 %2620
  %v2622 = vmin.f32 %v2491, %v2492
  %v2623 = vmin.f32 %v2622, %v2493
  %v2624 = vmin.f32 %v2623, %v2494
  %v2625 = vmin.f32 %v2624, %v2495
  %v2626 = vmin.f32 %v2625, %v2496
  %v2627 = vmin.f32 %v2626, %v2497
  %v2628 = vmin.f32 %v2627, %v2498
  %2629 = vmin.xlane.f32.xlu0 %v2628
  %v2630 = vpop.xlane.xlu0 %2629
  %v2631 = vmin.f32 %v2499, %v2500
  %v2632 = vmin.f32 %v2631, %v2501
  %v2633 = vmin.f32 %v2632, %v2502
  %v2634 = vmin.f32 %v2633, %v2503
  %v2635 = vmin.f32 %v2634, %v2504
  %v2636 = vmin.f32 %v2635, %v2505
  %v2637 = vmin.f32 %v2636, %v2506
  %2638 = vmin.xlane.f32.xlu0 %v2637
  %v2639 = vpop.xlane.xlu0 %2638
  %v2640 = vmin.f32 %v2507, %v2508
  %v2641 = vmin.f32 %v2640, %v2509
  %v2642 = vmin.f32 %v2641, %v2510
  %v2643 = vmin.f32 %v2642, %v2511
  %v2644 = vmin.f32 %v2643, %v2512
  %v2645 = vmin.f32 %v2644, %v2513
  %v2646 = vmin.f32 %v2645, %v2514
  %2647 = vmin.xlane.f32.xlu0 %v2646
  %v2648 = vpop.xlane.xlu0 %2647
  %v2649 = vmin.f32 %v2515, %v2516
  %v2650 = vmin.f32 %v2649, %v2517
  %v2651 = vmin.f32 %v2650, %v2518
  %v2652 = vmin.f32 %v2651, %v2519
  %v2653 = vmin.f32 %v2652, %v2520
  %v2654 = vmin.f32 %v2653, %v2521
  %v2655 = vmin.f32 %v2654, %v2522
  %2656 = vmin.xlane.f32.xlu0 %v2655
  %v2657 = vpop.xlane.xlu0 %2656
  %v2658 = vmin.f32 %v2523, %v2524
  %v2659 = vmin.f32 %v2658, %v2525
  %v2660 = vmin.f32 %v2659, %v2526
  %v2661 = vmin.f32 %v2660, %v2527
  %v2662 = vmin.f32 %v2661, %v2528
  %v2663 = vmin.f32 %v2662, %v2529
  %v2664 = vmin.f32 %v2663, %v2530
  %2665 = vmin.xlane.f32.xlu0 %v2664
  %v2666 = vpop.xlane.xlu0 %2665
  %v2667 = vmin.f32 %v2531, %v2532
  %v2668 = vmin.f32 %v2667, %v2533
  %v2669 = vmin.f32 %v2668, %v2534
  %v2670 = vmin.f32 %v2669, %v2535
  %v2671 = vmin.f32 %v2670, %v2536
  %v2672 = vmin.f32 %v2671, %v2537
  %v2673 = vmin.f32 %v2672, %v2538
  %2674 = vmin.xlane.f32.xlu0 %v2673
  %v2675 = vpop.xlane.xlu0 %2674
  %v2676 = vmin.f32 %v2539, %v2540
  %v2677 = vmin.f32 %v2676, %v2541
  %v2678 = vmin.f32 %v2677, %v2542
  %v2679 = vmin.f32 %v2678, %v2543
  %v2680 = vmin.f32 %v2679, %v2544
  %v2681 = vmin.f32 %v2680, %v2545
  %v2682 = vmin.f32 %v2681, %v2546
  %2683 = vmin.xlane.f32.xlu0 %v2682
  %v2684 = vpop.xlane.xlu0 %2683
  %v2685 = vmin.f32 %v2547, %v2548
  %v2686 = vmin.f32 %v2685, %v2549
  %v2687 = vmin.f32 %v2686, %v2550
  %v2688 = vmin.f32 %v2687, %v2551
  %v2689 = vmin.f32 %v2688, %v2552
  %v2690 = vmin.f32 %v2689, %v2553
  %v2691 = vmin.f32 %v2690, %v2554
  %2692 = vmin.xlane.f32.xlu0 %v2691
  %v2693 = vpop.xlane.xlu0 %2692
  %v2694 = vmin.f32 %v2555, %v2556
  %v2695 = vmin.f32 %v2694, %v2557
  %v2696 = vmin.f32 %v2695, %v2558
  %v2697 = vmin.f32 %v2696, %v2559
  %v2698 = vmin.f32 %v2697, %v2560
  %v2699 = vmin.f32 %v2698, %v2561
  %v2700 = vmin.f32 %v2699, %v2562
  %2701 = vmin.xlane.f32.xlu0 %v2700
  %v2702 = vpop.xlane.xlu0 %2701
  %v2703 = vmin.f32 %v2563, %v2564
  %v2704 = vmin.f32 %v2703, %v2565
  %v2705 = vmin.f32 %v2704, %v2566
  %v2706 = vmin.f32 %v2705, %v2567
  %v2707 = vmin.f32 %v2706, %v2568
  %v2708 = vmin.f32 %v2707, %v2569
  %v2709 = vmin.f32 %v2708, %v2570
  %2710 = vmin.xlane.f32.xlu0 %v2709
  %v2711 = vpop.xlane.xlu0 %2710
  %v2712 = vmin.f32 %v2571, %v2572
  %v2713 = vmin.f32 %v2712, %v2573
  %v2714 = vmin.f32 %v2713, %v2574
  %v2715 = vmin.f32 %v2714, %v2575
  %v2716 = vmin.f32 %v2715, %v2576
  %v2717 = vmin.f32 %v2716, %v2577
  %v2718 = vmin.f32 %v2717, %v2578
  %2719 = vmin.xlane.f32.xlu0 %v2718
  %v2720 = vpop.xlane.xlu0 %2719
  %v2721 = vmin.f32 %v2579, %v2580
  %v2722 = vmin.f32 %v2721, %v2581
  %v2723 = vmin.f32 %v2722, %v2582
  %v2724 = vmin.f32 %v2723, %v2583
  %v2725 = vmin.f32 %v2724, %v2584
  %v2726 = vmin.f32 %v2725, %v2585
  %v2727 = vmin.f32 %v2726, %v2586
  %2728 = vmin.xlane.f32.xlu0 %v2727
  %v2729 = vpop.xlane.xlu0 %2728
  %v2730 = vmin.f32 %v2587, %v2588
  %v2731 = vmin.f32 %v2730, %v2589
  %v2732 = vmin.f32 %v2731, %v2590
  %v2733 = vmin.f32 %v2732, %v2591
  %v2734 = vmin.f32 %v2733, %v2592
  %v2735 = vmin.f32 %v2734, %v2593
  %v2736 = vmin.f32 %v2735, %v2594
  %2737 = vmin.xlane.f32.xlu0 %v2736
  %v2738 = vpop.xlane.xlu0 %2737
  %v2739 = vmin.f32 %v1359, %v2603
  %v2740 = vmin.f32 %v1368, %v2612
  %v2741 = vmin.f32 %v1377, %v2621
  %v2742 = vmin.f32 %v1386, %v2630
  %v2743 = vmin.f32 %v1395, %v2639
  %v2744 = vmin.f32 %v1404, %v2648
  %v2745 = vmin.f32 %v1413, %v2657
  %v2746 = vmin.f32 %v1422, %v2666
  %v2747 = vmin.f32 %v1431, %v2675
  %v2748 = vmin.f32 %v1440, %v2684
  %v2749 = vmin.f32 %v1449, %v2693
  %v2750 = vmin.f32 %v1458, %v2702
  %v2751 = vmin.f32 %v1467, %v2711
  %v2752 = vmin.f32 %v1476, %v2720
  %v2753 = vmin.f32 %v1485, %v2729
  %v2754 = vmin.f32 %v1494, %v2738
  %v2759 = vperm.slane %v35, 0
  %v2760 = vperm.slane %v35, 4
  %v2761 = vperm.slane %v36, 0
  %v2762 = vperm.slane %v36, 4
  %v2763 = vperm.slane %v37, 0
  %v2764 = vperm.slane %v37, 4
  %v2765 = vperm.slane %v38, 0
  %v2766 = vperm.slane %v38, 4
  %v2775 = vperm.slane %v2759, 0
  %v2776 = vperm.slane %v2760, 0
  %v2777 = vperm.slane %v2761, 0
  %v2778 = vperm.slane %v2762, 0
  %v2779 = vperm.slane %v2763, 0
  %v2780 = vperm.slane %v2764, 0
  %v2781 = vperm.slane %v2765, 0
  %v2782 = vperm.slane %v2766, 0
  %v2783 = vsub.f32 %v46, %v2775
  %v2784 = vsub.f32 %v46, %v2776
  %v2785 = vsub.f32 %v46, %v2777
  %v2786 = vsub.f32 %v46, %v2778
  %v2787 = vsub.f32 %v46, %v2779
  %v2788 = vsub.f32 %v46, %v2780
  %v2789 = vsub.f32 %v46, %v2781
  %v2790 = vsub.f32 %v46, %v2782
  %v2791 = vsub.f32 %v51, %v2775
  %v2792 = vsub.f32 %v51, %v2776
  %v2793 = vsub.f32 %v51, %v2777
  %v2794 = vsub.f32 %v51, %v2778
  %v2795 = vsub.f32 %v51, %v2779
  %v2796 = vsub.f32 %v51, %v2780
  %v2797 = vsub.f32 %v51, %v2781
  %v2798 = vsub.f32 %v51, %v2782
  %v2799 = vsub.f32 %v56, %v2775
  %v2800 = vsub.f32 %v56, %v2776
  %v2801 = vsub.f32 %v56, %v2777
  %v2802 = vsub.f32 %v56, %v2778
  %v2803 = vsub.f32 %v56, %v2779
  %v2804 = vsub.f32 %v56, %v2780
  %v2805 = vsub.f32 %v56, %v2781
  %v2806 = vsub.f32 %v56, %v2782
  %v2807 = vsub.f32 %v61, %v2775
  %v2808 = vsub.f32 %v61, %v2776
  %v2809 = vsub.f32 %v61, %v2777
  %v2810 = vsub.f32 %v61, %v2778
  %v2811 = vsub.f32 %v61, %v2779
  %v2812 = vsub.f32 %v61, %v2780
  %v2813 = vsub.f32 %v61, %v2781
  %v2814 = vsub.f32 %v61, %v2782
  %v2815 = vsub.f32 %v66, %v2775
  %v2816 = vsub.f32 %v66, %v2776
  %v2817 = vsub.f32 %v66, %v2777
  %v2818 = vsub.f32 %v66, %v2778
  %v2819 = vsub.f32 %v66, %v2779
  %v2820 = vsub.f32 %v66, %v2780
  %v2821 = vsub.f32 %v66, %v2781
  %v2822 = vsub.f32 %v66, %v2782
  %v2823 = vsub.f32 %v71, %v2775
  %v2824 = vsub.f32 %v71, %v2776
  %v2825 = vsub.f32 %v71, %v2777
  %v2826 = vsub.f32 %v71, %v2778
  %v2827 = vsub.f32 %v71, %v2779
  %v2828 = vsub.f32 %v71, %v2780
  %v2829 = vsub.f32 %v71, %v2781
  %v2830 = vsub.f32 %v71, %v2782
  %v2831 = vsub.f32 %v76, %v2775
  %v2832 = vsub.f32 %v76, %v2776
  %v2833 = vsub.f32 %v76, %v2777
  %v2834 = vsub.f32 %v76, %v2778
  %v2835 = vsub.f32 %v76, %v2779
  %v2836 = vsub.f32 %v76, %v2780
  %v2837 = vsub.f32 %v76, %v2781
  %v2838 = vsub.f32 %v76, %v2782
  %v2839 = vsub.f32 %v81, %v2775
  %v2840 = vsub.f32 %v81, %v2776
  %v2841 = vsub.f32 %v81, %v2777
  %v2842 = vsub.f32 %v81, %v2778
  %v2843 = vsub.f32 %v81, %v2779
  %v2844 = vsub.f32 %v81, %v2780
  %v2845 = vsub.f32 %v81, %v2781
  %v2846 = vsub.f32 %v81, %v2782
  %v2847 = vsub.f32 %v86, %v2775
  %v2848 = vsub.f32 %v86, %v2776
  %v2849 = vsub.f32 %v86, %v2777
  %v2850 = vsub.f32 %v86, %v2778
  %v2851 = vsub.f32 %v86, %v2779
  %v2852 = vsub.f32 %v86, %v2780
  %v2853 = vsub.f32 %v86, %v2781
  %v2854 = vsub.f32 %v86, %v2782
  %v2855 = vsub.f32 %v91, %v2775
  %v2856 = vsub.f32 %v91, %v2776
  %v2857 = vsub.f32 %v91, %v2777
  %v2858 = vsub.f32 %v91, %v2778
  %v2859 = vsub.f32 %v91, %v2779
  %v2860 = vsub.f32 %v91, %v2780
  %v2861 = vsub.f32 %v91, %v2781
  %v2862 = vsub.f32 %v91, %v2782
  %v2863 = vsub.f32 %v96, %v2775
  %v2864 = vsub.f32 %v96, %v2776
  %v2865 = vsub.f32 %v96, %v2777
  %v2866 = vsub.f32 %v96, %v2778
  %v2867 = vsub.f32 %v96, %v2779
  %v2868 = vsub.f32 %v96, %v2780
  %v2869 = vsub.f32 %v96, %v2781
  %v2870 = vsub.f32 %v96, %v2782
  %v2871 = vsub.f32 %v101, %v2775
  %v2872 = vsub.f32 %v101, %v2776
  %v2873 = vsub.f32 %v101, %v2777
  %v2874 = vsub.f32 %v101, %v2778
  %v2875 = vsub.f32 %v101, %v2779
  %v2876 = vsub.f32 %v101, %v2780
  %v2877 = vsub.f32 %v101, %v2781
  %v2878 = vsub.f32 %v101, %v2782
  %v2879 = vsub.f32 %v106, %v2775
  %v2880 = vsub.f32 %v106, %v2776
  %v2881 = vsub.f32 %v106, %v2777
  %v2882 = vsub.f32 %v106, %v2778
  %v2883 = vsub.f32 %v106, %v2779
  %v2884 = vsub.f32 %v106, %v2780
  %v2885 = vsub.f32 %v106, %v2781
  %v2886 = vsub.f32 %v106, %v2782
  %v2887 = vsub.f32 %v111, %v2775
  %v2888 = vsub.f32 %v111, %v2776
  %v2889 = vsub.f32 %v111, %v2777
  %v2890 = vsub.f32 %v111, %v2778
  %v2891 = vsub.f32 %v111, %v2779
  %v2892 = vsub.f32 %v111, %v2780
  %v2893 = vsub.f32 %v111, %v2781
  %v2894 = vsub.f32 %v111, %v2782
  %v2895 = vsub.f32 %v116, %v2775
  %v2896 = vsub.f32 %v116, %v2776
  %v2897 = vsub.f32 %v116, %v2777
  %v2898 = vsub.f32 %v116, %v2778
  %v2899 = vsub.f32 %v116, %v2779
  %v2900 = vsub.f32 %v116, %v2780
  %v2901 = vsub.f32 %v116, %v2781
  %v2902 = vsub.f32 %v116, %v2782
  %v2903 = vsub.f32 %v121, %v2775
  %v2904 = vsub.f32 %v121, %v2776
  %v2905 = vsub.f32 %v121, %v2777
  %v2906 = vsub.f32 %v121, %v2778
  %v2907 = vsub.f32 %v121, %v2779
  %v2908 = vsub.f32 %v121, %v2780
  %v2909 = vsub.f32 %v121, %v2781
  %v2910 = vsub.f32 %v121, %v2782
  %v2911 = vperm.slane %v35, 1
  %v2912 = vperm.slane %v35, 5
  %v2913 = vperm.slane %v36, 1
  %v2914 = vperm.slane %v36, 5
  %v2915 = vperm.slane %v37, 1
  %v2916 = vperm.slane %v37, 5
  %v2917 = vperm.slane %v38, 1
  %v2918 = vperm.slane %v38, 5
  %v2927 = vperm.slane %v2911, 1
  %v2928 = vperm.slane %v2912, 1
  %v2929 = vperm.slane %v2913, 1
  %v2930 = vperm.slane %v2914, 1
  %v2931 = vperm.slane %v2915, 1
  %v2932 = vperm.slane %v2916, 1
  %v2933 = vperm.slane %v2917, 1
  %v2934 = vperm.slane %v2918, 1
  %v2935 = vsub.f32 %v281, %v2927
  %v2936 = vsub.f32 %v281, %v2928
  %v2937 = vsub.f32 %v281, %v2929
  %v2938 = vsub.f32 %v281, %v2930
  %v2939 = vsub.f32 %v281, %v2931
  %v2940 = vsub.f32 %v281, %v2932
  %v2941 = vsub.f32 %v281, %v2933
  %v2942 = vsub.f32 %v281, %v2934
  %v2943 = vsub.f32 %v285, %v2927
  %v2944 = vsub.f32 %v285, %v2928
  %v2945 = vsub.f32 %v285, %v2929
  %v2946 = vsub.f32 %v285, %v2930
  %v2947 = vsub.f32 %v285, %v2931
  %v2948 = vsub.f32 %v285, %v2932
  %v2949 = vsub.f32 %v285, %v2933
  %v2950 = vsub.f32 %v285, %v2934
  %v2951 = vsub.f32 %v289, %v2927
  %v2952 = vsub.f32 %v289, %v2928
  %v2953 = vsub.f32 %v289, %v2929
  %v2954 = vsub.f32 %v289, %v2930
  %v2955 = vsub.f32 %v289, %v2931
  %v2956 = vsub.f32 %v289, %v2932
  %v2957 = vsub.f32 %v289, %v2933
  %v2958 = vsub.f32 %v289, %v2934
  %v2959 = vsub.f32 %v293, %v2927
  %v2960 = vsub.f32 %v293, %v2928
  %v2961 = vsub.f32 %v293, %v2929
  %v2962 = vsub.f32 %v293, %v2930
  %v2963 = vsub.f32 %v293, %v2931
  %v2964 = vsub.f32 %v293, %v2932
  %v2965 = vsub.f32 %v293, %v2933
  %v2966 = vsub.f32 %v293, %v2934
  %v2967 = vsub.f32 %v297, %v2927
  %v2968 = vsub.f32 %v297, %v2928
  %v2969 = vsub.f32 %v297, %v2929
  %v2970 = vsub.f32 %v297, %v2930
  %v2971 = vsub.f32 %v297, %v2931
  %v2972 = vsub.f32 %v297, %v2932
  %v2973 = vsub.f32 %v297, %v2933
  %v2974 = vsub.f32 %v297, %v2934
  %v2975 = vsub.f32 %v301, %v2927
  %v2976 = vsub.f32 %v301, %v2928
  %v2977 = vsub.f32 %v301, %v2929
  %v2978 = vsub.f32 %v301, %v2930
  %v2979 = vsub.f32 %v301, %v2931
  %v2980 = vsub.f32 %v301, %v2932
  %v2981 = vsub.f32 %v301, %v2933
  %v2982 = vsub.f32 %v301, %v2934
  %v2983 = vsub.f32 %v305, %v2927
  %v2984 = vsub.f32 %v305, %v2928
  %v2985 = vsub.f32 %v305, %v2929
  %v2986 = vsub.f32 %v305, %v2930
  %v2987 = vsub.f32 %v305, %v2931
  %v2988 = vsub.f32 %v305, %v2932
  %v2989 = vsub.f32 %v305, %v2933
  %v2990 = vsub.f32 %v305, %v2934
  %v2991 = vsub.f32 %v309, %v2927
  %v2992 = vsub.f32 %v309, %v2928
  %v2993 = vsub.f32 %v309, %v2929
  %v2994 = vsub.f32 %v309, %v2930
  %v2995 = vsub.f32 %v309, %v2931
  %v2996 = vsub.f32 %v309, %v2932
  %v2997 = vsub.f32 %v309, %v2933
  %v2998 = vsub.f32 %v309, %v2934
  %v2999 = vsub.f32 %v313, %v2927
  %v3000 = vsub.f32 %v313, %v2928
  %v3001 = vsub.f32 %v313, %v2929
  %v3002 = vsub.f32 %v313, %v2930
  %v3003 = vsub.f32 %v313, %v2931
  %v3004 = vsub.f32 %v313, %v2932
  %v3005 = vsub.f32 %v313, %v2933
  %v3006 = vsub.f32 %v313, %v2934
  %v3007 = vsub.f32 %v317, %v2927
  %v3008 = vsub.f32 %v317, %v2928
  %v3009 = vsub.f32 %v317, %v2929
  %v3010 = vsub.f32 %v317, %v2930
  %v3011 = vsub.f32 %v317, %v2931
  %v3012 = vsub.f32 %v317, %v2932
  %v3013 = vsub.f32 %v317, %v2933
  %v3014 = vsub.f32 %v317, %v2934
  %v3015 = vsub.f32 %v321, %v2927
  %v3016 = vsub.f32 %v321, %v2928
  %v3017 = vsub.f32 %v321, %v2929
  %v3018 = vsub.f32 %v321, %v2930
  %v3019 = vsub.f32 %v321, %v2931
  %v3020 = vsub.f32 %v321, %v2932
  %v3021 = vsub.f32 %v321, %v2933
  %v3022 = vsub.f32 %v321, %v2934
  %v3023 = vsub.f32 %v325, %v2927
  %v3024 = vsub.f32 %v325, %v2928
  %v3025 = vsub.f32 %v325, %v2929
  %v3026 = vsub.f32 %v325, %v2930
  %v3027 = vsub.f32 %v325, %v2931
  %v3028 = vsub.f32 %v325, %v2932
  %v3029 = vsub.f32 %v325, %v2933
  %v3030 = vsub.f32 %v325, %v2934
  %v3031 = vsub.f32 %v329, %v2927
  %v3032 = vsub.f32 %v329, %v2928
  %v3033 = vsub.f32 %v329, %v2929
  %v3034 = vsub.f32 %v329, %v2930
  %v3035 = vsub.f32 %v329, %v2931
  %v3036 = vsub.f32 %v329, %v2932
  %v3037 = vsub.f32 %v329, %v2933
  %v3038 = vsub.f32 %v329, %v2934
  %v3039 = vsub.f32 %v333, %v2927
  %v3040 = vsub.f32 %v333, %v2928
  %v3041 = vsub.f32 %v333, %v2929
  %v3042 = vsub.f32 %v333, %v2930
  %v3043 = vsub.f32 %v333, %v2931
  %v3044 = vsub.f32 %v333, %v2932
  %v3045 = vsub.f32 %v333, %v2933
  %v3046 = vsub.f32 %v333, %v2934
  %v3047 = vsub.f32 %v337, %v2927
  %v3048 = vsub.f32 %v337, %v2928
  %v3049 = vsub.f32 %v337, %v2929
  %v3050 = vsub.f32 %v337, %v2930
  %v3051 = vsub.f32 %v337, %v2931
  %v3052 = vsub.f32 %v337, %v2932
  %v3053 = vsub.f32 %v337, %v2933
  %v3054 = vsub.f32 %v337, %v2934
  %v3055 = vsub.f32 %v341, %v2927
  %v3056 = vsub.f32 %v341, %v2928
  %v3057 = vsub.f32 %v341, %v2929
  %v3058 = vsub.f32 %v341, %v2930
  %v3059 = vsub.f32 %v341, %v2931
  %v3060 = vsub.f32 %v341, %v2932
  %v3061 = vsub.f32 %v341, %v2933
  %v3062 = vsub.f32 %v341, %v2934
  %v3063 = vperm.slane %v35, 2
  %v3064 = vperm.slane %v35, 6
  %v3065 = vperm.slane %v36, 2
  %v3066 = vperm.slane %v36, 6
  %v3067 = vperm.slane %v37, 2
  %v3068 = vperm.slane %v37, 6
  %v3069 = vperm.slane %v38, 2
  %v3070 = vperm.slane %v38, 6
  %v3079 = vperm.slane %v3063, 2
  %v3080 = vperm.slane %v3064, 2
  %v3081 = vperm.slane %v3065, 2
  %v3082 = vperm.slane %v3066, 2
  %v3083 = vperm.slane %v3067, 2
  %v3084 = vperm.slane %v3068, 2
  %v3085 = vperm.slane %v3069, 2
  %v3086 = vperm.slane %v3070, 2
  %v3087 = vsub.f32 %v497, %v3079
  %v3088 = vsub.f32 %v497, %v3080
  %v3089 = vsub.f32 %v497, %v3081
  %v3090 = vsub.f32 %v497, %v3082
  %v3091 = vsub.f32 %v497, %v3083
  %v3092 = vsub.f32 %v497, %v3084
  %v3093 = vsub.f32 %v497, %v3085
  %v3094 = vsub.f32 %v497, %v3086
  %v3095 = vsub.f32 %v501, %v3079
  %v3096 = vsub.f32 %v501, %v3080
  %v3097 = vsub.f32 %v501, %v3081
  %v3098 = vsub.f32 %v501, %v3082
  %v3099 = vsub.f32 %v501, %v3083
  %v3100 = vsub.f32 %v501, %v3084
  %v3101 = vsub.f32 %v501, %v3085
  %v3102 = vsub.f32 %v501, %v3086
  %v3103 = vsub.f32 %v505, %v3079
  %v3104 = vsub.f32 %v505, %v3080
  %v3105 = vsub.f32 %v505, %v3081
  %v3106 = vsub.f32 %v505, %v3082
  %v3107 = vsub.f32 %v505, %v3083
  %v3108 = vsub.f32 %v505, %v3084
  %v3109 = vsub.f32 %v505, %v3085
  %v3110 = vsub.f32 %v505, %v3086
  %v3111 = vsub.f32 %v509, %v3079
  %v3112 = vsub.f32 %v509, %v3080
  %v3113 = vsub.f32 %v509, %v3081
  %v3114 = vsub.f32 %v509, %v3082
  %v3115 = vsub.f32 %v509, %v3083
  %v3116 = vsub.f32 %v509, %v3084
  %v3117 = vsub.f32 %v509, %v3085
  %v3118 = vsub.f32 %v509, %v3086
  %v3119 = vsub.f32 %v513, %v3079
  %v3120 = vsub.f32 %v513, %v3080
  %v3121 = vsub.f32 %v513, %v3081
  %v3122 = vsub.f32 %v513, %v3082
  %v3123 = vsub.f32 %v513, %v3083
  %v3124 = vsub.f32 %v513, %v3084
  %v3125 = vsub.f32 %v513, %v3085
  %v3126 = vsub.f32 %v513, %v3086
  %v3127 = vsub.f32 %v517, %v3079
  %v3128 = vsub.f32 %v517, %v3080
  %v3129 = vsub.f32 %v517, %v3081
  %v3130 = vsub.f32 %v517, %v3082
  %v3131 = vsub.f32 %v517, %v3083
  %v3132 = vsub.f32 %v517, %v3084
  %v3133 = vsub.f32 %v517, %v3085
  %v3134 = vsub.f32 %v517, %v3086
  %v3135 = vsub.f32 %v521, %v3079
  %v3136 = vsub.f32 %v521, %v3080
  %v3137 = vsub.f32 %v521, %v3081
  %v3138 = vsub.f32 %v521, %v3082
  %v3139 = vsub.f32 %v521, %v3083
  %v3140 = vsub.f32 %v521, %v3084
  %v3141 = vsub.f32 %v521, %v3085
  %v3142 = vsub.f32 %v521, %v3086
  %v3143 = vsub.f32 %v525, %v3079
  %v3144 = vsub.f32 %v525, %v3080
  %v3145 = vsub.f32 %v525, %v3081
  %v3146 = vsub.f32 %v525, %v3082
  %v3147 = vsub.f32 %v525, %v3083
  %v3148 = vsub.f32 %v525, %v3084
  %v3149 = vsub.f32 %v525, %v3085
  %v3150 = vsub.f32 %v525, %v3086
  %v3151 = vsub.f32 %v529, %v3079
  %v3152 = vsub.f32 %v529, %v3080
  %v3153 = vsub.f32 %v529, %v3081
  %v3154 = vsub.f32 %v529, %v3082
  %v3155 = vsub.f32 %v529, %v3083
  %v3156 = vsub.f32 %v529, %v3084
  %v3157 = vsub.f32 %v529, %v3085
  %v3158 = vsub.f32 %v529, %v3086
  %v3159 = vsub.f32 %v533, %v3079
  %v3160 = vsub.f32 %v533, %v3080
  %v3161 = vsub.f32 %v533, %v3081
  %v3162 = vsub.f32 %v533, %v3082
  %v3163 = vsub.f32 %v533, %v3083
  %v3164 = vsub.f32 %v533, %v3084
  %v3165 = vsub.f32 %v533, %v3085
  %v3166 = vsub.f32 %v533, %v3086
  %v3167 = vsub.f32 %v537, %v3079
  %v3168 = vsub.f32 %v537, %v3080
  %v3169 = vsub.f32 %v537, %v3081
  %v3170 = vsub.f32 %v537, %v3082
  %v3171 = vsub.f32 %v537, %v3083
  %v3172 = vsub.f32 %v537, %v3084
  %v3173 = vsub.f32 %v537, %v3085
  %v3174 = vsub.f32 %v537, %v3086
  %v3175 = vsub.f32 %v541, %v3079
  %v3176 = vsub.f32 %v541, %v3080
  %v3177 = vsub.f32 %v541, %v3081
  %v3178 = vsub.f32 %v541, %v3082
  %v3179 = vsub.f32 %v541, %v3083
  %v3180 = vsub.f32 %v541, %v3084
  %v3181 = vsub.f32 %v541, %v3085
  %v3182 = vsub.f32 %v541, %v3086
  %v3183 = vsub.f32 %v545, %v3079
  %v3184 = vsub.f32 %v545, %v3080
  %v3185 = vsub.f32 %v545, %v3081
  %v3186 = vsub.f32 %v545, %v3082
  %v3187 = vsub.f32 %v545, %v3083
  %v3188 = vsub.f32 %v545, %v3084
  %v3189 = vsub.f32 %v545, %v3085
  %v3190 = vsub.f32 %v545, %v3086
  %v3191 = vsub.f32 %v549, %v3079
  %v3192 = vsub.f32 %v549, %v3080
  %v3193 = vsub.f32 %v549, %v3081
  %v3194 = vsub.f32 %v549, %v3082
  %v3195 = vsub.f32 %v549, %v3083
  %v3196 = vsub.f32 %v549, %v3084
  %v3197 = vsub.f32 %v549, %v3085
  %v3198 = vsub.f32 %v549, %v3086
  %v3199 = vsub.f32 %v553, %v3079
  %v3200 = vsub.f32 %v553, %v3080
  %v3201 = vsub.f32 %v553, %v3081
  %v3202 = vsub.f32 %v553, %v3082
  %v3203 = vsub.f32 %v553, %v3083
  %v3204 = vsub.f32 %v553, %v3084
  %v3205 = vsub.f32 %v553, %v3085
  %v3206 = vsub.f32 %v553, %v3086
  %v3207 = vsub.f32 %v557, %v3079
  %v3208 = vsub.f32 %v557, %v3080
  %v3209 = vsub.f32 %v557, %v3081
  %v3210 = vsub.f32 %v557, %v3082
  %v3211 = vsub.f32 %v557, %v3083
  %v3212 = vsub.f32 %v557, %v3084
  %v3213 = vsub.f32 %v557, %v3085
  %v3214 = vsub.f32 %v557, %v3086
  %v3215 = vmul.f32 %v2783, %v2783
  %v3216 = vmul.f32 %v2784, %v2784
  %v3217 = vmul.f32 %v2785, %v2785
  %v3218 = vmul.f32 %v2786, %v2786
  %v3219 = vmul.f32 %v2787, %v2787
  %v3220 = vmul.f32 %v2788, %v2788
  %v3221 = vmul.f32 %v2789, %v2789
  %v3222 = vmul.f32 %v2790, %v2790
  %v3223 = vmul.f32 %v2791, %v2791
  %v3224 = vmul.f32 %v2792, %v2792
  %v3225 = vmul.f32 %v2793, %v2793
  %v3226 = vmul.f32 %v2794, %v2794
  %v3227 = vmul.f32 %v2795, %v2795
  %v3228 = vmul.f32 %v2796, %v2796
  %v3229 = vmul.f32 %v2797, %v2797
  %v3230 = vmul.f32 %v2798, %v2798
  %v3231 = vmul.f32 %v2799, %v2799
  %v3232 = vmul.f32 %v2800, %v2800
  %v3233 = vmul.f32 %v2801, %v2801
  %v3234 = vmul.f32 %v2802, %v2802
  %v3235 = vmul.f32 %v2803, %v2803
  %v3236 = vmul.f32 %v2804, %v2804
  %v3237 = vmul.f32 %v2805, %v2805
  %v3238 = vmul.f32 %v2806, %v2806
  %v3239 = vmul.f32 %v2807, %v2807
  %v3240 = vmul.f32 %v2808, %v2808
  %v3241 = vmul.f32 %v2809, %v2809
  %v3242 = vmul.f32 %v2810, %v2810
  %v3243 = vmul.f32 %v2811, %v2811
  %v3244 = vmul.f32 %v2812, %v2812
  %v3245 = vmul.f32 %v2813, %v2813
  %v3246 = vmul.f32 %v2814, %v2814
  %v3247 = vmul.f32 %v2815, %v2815
  %v3248 = vmul.f32 %v2816, %v2816
  %v3249 = vmul.f32 %v2817, %v2817
  %v3250 = vmul.f32 %v2818, %v2818
  %v3251 = vmul.f32 %v2819, %v2819
  %v3252 = vmul.f32 %v2820, %v2820
  %v3253 = vmul.f32 %v2821, %v2821
  %v3254 = vmul.f32 %v2822, %v2822
  %v3255 = vmul.f32 %v2823, %v2823
  %v3256 = vmul.f32 %v2824, %v2824
  %v3257 = vmul.f32 %v2825, %v2825
  %v3258 = vmul.f32 %v2826, %v2826
  %v3259 = vmul.f32 %v2827, %v2827
  %v3260 = vmul.f32 %v2828, %v2828
  %v3261 = vmul.f32 %v2829, %v2829
  %v3262 = vmul.f32 %v2830, %v2830
  %v3263 = vmul.f32 %v2831, %v2831
  %v3264 = vmul.f32 %v2832, %v2832
  %v3265 = vmul.f32 %v2833, %v2833
  %v3266 = vmul.f32 %v2834, %v2834
  %v3267 = vmul.f32 %v2835, %v2835
  %v3268 = vmul.f32 %v2836, %v2836
  %v3269 = vmul.f32 %v2837, %v2837
  %v3270 = vmul.f32 %v2838, %v2838
  %v3271 = vmul.f32 %v2839, %v2839
  %v3272 = vmul.f32 %v2840, %v2840
  %v3273 = vmul.f32 %v2841, %v2841
  %v3274 = vmul.f32 %v2842, %v2842
  %v3275 = vmul.f32 %v2843, %v2843
  %v3276 = vmul.f32 %v2844, %v2844
  %v3277 = vmul.f32 %v2845, %v2845
  %v3278 = vmul.f32 %v2846, %v2846
  %v3279 = vmul.f32 %v2847, %v2847
  %v3280 = vmul.f32 %v2848, %v2848
  %v3281 = vmul.f32 %v2849, %v2849
  %v3282 = vmul.f32 %v2850, %v2850
  %v3283 = vmul.f32 %v2851, %v2851
  %v3284 = vmul.f32 %v2852, %v2852
  %v3285 = vmul.f32 %v2853, %v2853
  %v3286 = vmul.f32 %v2854, %v2854
  %v3287 = vmul.f32 %v2855, %v2855
  %v3288 = vmul.f32 %v2856, %v2856
  %v3289 = vmul.f32 %v2857, %v2857
  %v3290 = vmul.f32 %v2858, %v2858
  %v3291 = vmul.f32 %v2859, %v2859
  %v3292 = vmul.f32 %v2860, %v2860
  %v3293 = vmul.f32 %v2861, %v2861
  %v3294 = vmul.f32 %v2862, %v2862
  %v3295 = vmul.f32 %v2863, %v2863
  %v3296 = vmul.f32 %v2864, %v2864
  %v3297 = vmul.f32 %v2865, %v2865
  %v3298 = vmul.f32 %v2866, %v2866
  %v3299 = vmul.f32 %v2867, %v2867
  %v3300 = vmul.f32 %v2868, %v2868
  %v3301 = vmul.f32 %v2869, %v2869
  %v3302 = vmul.f32 %v2870, %v2870
  %v3303 = vmul.f32 %v2871, %v2871
  %v3304 = vmul.f32 %v2872, %v2872
  %v3305 = vmul.f32 %v2873, %v2873
  %v3306 = vmul.f32 %v2874, %v2874
  %v3307 = vmul.f32 %v2875, %v2875
  %v3308 = vmul.f32 %v2876, %v2876
  %v3309 = vmul.f32 %v2877, %v2877
  %v3310 = vmul.f32 %v2878, %v2878
  %v3311 = vmul.f32 %v2879, %v2879
  %v3312 = vmul.f32 %v2880, %v2880
  %v3313 = vmul.f32 %v2881, %v2881
  %v3314 = vmul.f32 %v2882, %v2882
  %v3315 = vmul.f32 %v2883, %v2883
  %v3316 = vmul.f32 %v2884, %v2884
  %v3317 = vmul.f32 %v2885, %v2885
  %v3318 = vmul.f32 %v2886, %v2886
  %v3319 = vmul.f32 %v2887, %v2887
  %v3320 = vmul.f32 %v2888, %v2888
  %v3321 = vmul.f32 %v2889, %v2889
  %v3322 = vmul.f32 %v2890, %v2890
  %v3323 = vmul.f32 %v2891, %v2891
  %v3324 = vmul.f32 %v2892, %v2892
  %v3325 = vmul.f32 %v2893, %v2893
  %v3326 = vmul.f32 %v2894, %v2894
  %v3327 = vmul.f32 %v2895, %v2895
  %v3328 = vmul.f32 %v2896, %v2896
  %v3329 = vmul.f32 %v2897, %v2897
  %v3330 = vmul.f32 %v2898, %v2898
  %v3331 = vmul.f32 %v2899, %v2899
  %v3332 = vmul.f32 %v2900, %v2900
  %v3333 = vmul.f32 %v2901, %v2901
  %v3334 = vmul.f32 %v2902, %v2902
  %v3335 = vmul.f32 %v2903, %v2903
  %v3336 = vmul.f32 %v2904, %v2904
  %v3337 = vmul.f32 %v2905, %v2905
  %v3338 = vmul.f32 %v2906, %v2906
  %v3339 = vmul.f32 %v2907, %v2907
  %v3340 = vmul.f32 %v2908, %v2908
  %v3341 = vmul.f32 %v2909, %v2909
  %v3342 = vmul.f32 %v2910, %v2910
  %v3343 = vmul.f32 %v2935, %v2935
  %v3344 = vmul.f32 %v2936, %v2936
  %v3345 = vmul.f32 %v2937, %v2937
  %v3346 = vmul.f32 %v2938, %v2938
  %v3347 = vmul.f32 %v2939, %v2939
  %v3348 = vmul.f32 %v2940, %v2940
  %v3349 = vmul.f32 %v2941, %v2941
  %v3350 = vmul.f32 %v2942, %v2942
  %v3351 = vmul.f32 %v2943, %v2943
  %v3352 = vmul.f32 %v2944, %v2944
  %v3353 = vmul.f32 %v2945, %v2945
  %v3354 = vmul.f32 %v2946, %v2946
  %v3355 = vmul.f32 %v2947, %v2947
  %v3356 = vmul.f32 %v2948, %v2948
  %v3357 = vmul.f32 %v2949, %v2949
  %v3358 = vmul.f32 %v2950, %v2950
  %v3359 = vmul.f32 %v2951, %v2951
  %v3360 = vmul.f32 %v2952, %v2952
  %v3361 = vmul.f32 %v2953, %v2953
  %v3362 = vmul.f32 %v2954, %v2954
  %v3363 = vmul.f32 %v2955, %v2955
  %v3364 = vmul.f32 %v2956, %v2956
  %v3365 = vmul.f32 %v2957, %v2957
  %v3366 = vmul.f32 %v2958, %v2958
  %v3367 = vmul.f32 %v2959, %v2959
  %v3368 = vmul.f32 %v2960, %v2960
  %v3369 = vmul.f32 %v2961, %v2961
  %v3370 = vmul.f32 %v2962, %v2962
  %v3371 = vmul.f32 %v2963, %v2963
  %v3372 = vmul.f32 %v2964, %v2964
  %v3373 = vmul.f32 %v2965, %v2965
  %v3374 = vmul.f32 %v2966, %v2966
  %v3375 = vmul.f32 %v2967, %v2967
  %v3376 = vmul.f32 %v2968, %v2968
  %v3377 = vmul.f32 %v2969, %v2969
  %v3378 = vmul.f32 %v2970, %v2970
  %v3379 = vmul.f32 %v2971, %v2971
  %v3380 = vmul.f32 %v2972, %v2972
  %v3381 = vmul.f32 %v2973, %v2973
  %v3382 = vmul.f32 %v2974, %v2974
  %v3383 = vmul.f32 %v2975, %v2975
  %v3384 = vmul.f32 %v2976, %v2976
  %v3385 = vmul.f32 %v2977, %v2977
  %v3386 = vmul.f32 %v2978, %v2978
  %v3387 = vmul.f32 %v2979, %v2979
  %v3388 = vmul.f32 %v2980, %v2980
  %v3389 = vmul.f32 %v2981, %v2981
  %v3390 = vmul.f32 %v2982, %v2982
  %v3391 = vmul.f32 %v2983, %v2983
  %v3392 = vmul.f32 %v2984, %v2984
  %v3393 = vmul.f32 %v2985, %v2985
  %v3394 = vmul.f32 %v2986, %v2986
  %v3395 = vmul.f32 %v2987, %v2987
  %v3396 = vmul.f32 %v2988, %v2988
  %v3397 = vmul.f32 %v2989, %v2989
  %v3398 = vmul.f32 %v2990, %v2990
  %v3399 = vmul.f32 %v2991, %v2991
  %v3400 = vmul.f32 %v2992, %v2992
  %v3401 = vmul.f32 %v2993, %v2993
  %v3402 = vmul.f32 %v2994, %v2994
  %v3403 = vmul.f32 %v2995, %v2995
  %v3404 = vmul.f32 %v2996, %v2996
  %v3405 = vmul.f32 %v2997, %v2997
  %v3406 = vmul.f32 %v2998, %v2998
  %v3407 = vmul.f32 %v2999, %v2999
  %v3408 = vmul.f32 %v3000, %v3000
  %v3409 = vmul.f32 %v3001, %v3001
  %v3410 = vmul.f32 %v3002, %v3002
  %v3411 = vmul.f32 %v3003, %v3003
  %v3412 = vmul.f32 %v3004, %v3004
  %v3413 = vmul.f32 %v3005, %v3005
  %v3414 = vmul.f32 %v3006, %v3006
  %v3415 = vmul.f32 %v3007, %v3007
  %v3416 = vmul.f32 %v3008, %v3008
  %v3417 = vmul.f32 %v3009, %v3009
  %v3418 = vmul.f32 %v3010, %v3010
  %v3419 = vmul.f32 %v3011, %v3011
  %v3420 = vmul.f32 %v3012, %v3012
  %v3421 = vmul.f32 %v3013, %v3013
  %v3422 = vmul.f32 %v3014, %v3014
  %v3423 = vmul.f32 %v3015, %v3015
  %v3424 = vmul.f32 %v3016, %v3016
  %v3425 = vmul.f32 %v3017, %v3017
  %v3426 = vmul.f32 %v3018, %v3018
  %v3427 = vmul.f32 %v3019, %v3019
  %v3428 = vmul.f32 %v3020, %v3020
  %v3429 = vmul.f32 %v3021, %v3021
  %v3430 = vmul.f32 %v3022, %v3022
  %v3431 = vmul.f32 %v3023, %v3023
  %v3432 = vmul.f32 %v3024, %v3024
  %v3433 = vmul.f32 %v3025, %v3025
  %v3434 = vmul.f32 %v3026, %v3026
  %v3435 = vmul.f32 %v3027, %v3027
  %v3436 = vmul.f32 %v3028, %v3028
  %v3437 = vmul.f32 %v3029, %v3029
  %v3438 = vmul.f32 %v3030, %v3030
  %v3439 = vmul.f32 %v3031, %v3031
  %v3440 = vmul.f32 %v3032, %v3032
  %v3441 = vmul.f32 %v3033, %v3033
  %v3442 = vmul.f32 %v3034, %v3034
  %v3443 = vmul.f32 %v3035, %v3035
  %v3444 = vmul.f32 %v3036, %v3036
  %v3445 = vmul.f32 %v3037, %v3037
  %v3446 = vmul.f32 %v3038, %v3038
  %v3447 = vmul.f32 %v3039, %v3039
  %v3448 = vmul.f32 %v3040, %v3040
  %v3449 = vmul.f32 %v3041, %v3041
  %v3450 = vmul.f32 %v3042, %v3042
  %v3451 = vmul.f32 %v3043, %v3043
  %v3452 = vmul.f32 %v3044, %v3044
  %v3453 = vmul.f32 %v3045, %v3045
  %v3454 = vmul.f32 %v3046, %v3046
  %v3455 = vmul.f32 %v3047, %v3047
  %v3456 = vmul.f32 %v3048, %v3048
  %v3457 = vmul.f32 %v3049, %v3049
  %v3458 = vmul.f32 %v3050, %v3050
  %v3459 = vmul.f32 %v3051, %v3051
  %v3460 = vmul.f32 %v3052, %v3052
  %v3461 = vmul.f32 %v3053, %v3053
  %v3462 = vmul.f32 %v3054, %v3054
  %v3463 = vmul.f32 %v3055, %v3055
  %v3464 = vmul.f32 %v3056, %v3056
  %v3465 = vmul.f32 %v3057, %v3057
  %v3466 = vmul.f32 %v3058, %v3058
  %v3467 = vmul.f32 %v3059, %v3059
  %v3468 = vmul.f32 %v3060, %v3060
  %v3469 = vmul.f32 %v3061, %v3061
  %v3470 = vmul.f32 %v3062, %v3062
  %v3471 = vadd.f32 %v3215, %v3343
  %v3472 = vadd.f32 %v3216, %v3344
  %v3473 = vadd.f32 %v3217, %v3345
  %v3474 = vadd.f32 %v3218, %v3346
  %v3475 = vadd.f32 %v3219, %v3347
  %v3476 = vadd.f32 %v3220, %v3348
  %v3477 = vadd.f32 %v3221, %v3349
  %v3478 = vadd.f32 %v3222, %v3350
  %v3479 = vadd.f32 %v3223, %v3351
  %v3480 = vadd.f32 %v3224, %v3352
  %v3481 = vadd.f32 %v3225, %v3353
  %v3482 = vadd.f32 %v3226, %v3354
  %v3483 = vadd.f32 %v3227, %v3355
  %v3484 = vadd.f32 %v3228, %v3356
  %v3485 = vadd.f32 %v3229, %v3357
  %v3486 = vadd.f32 %v3230, %v3358
  %v3487 = vadd.f32 %v3231, %v3359
  %v3488 = vadd.f32 %v3232, %v3360
  %v3489 = vadd.f32 %v3233, %v3361
  %v3490 = vadd.f32 %v3234, %v3362
  %v3491 = vadd.f32 %v3235, %v3363
  %v3492 = vadd.f32 %v3236, %v3364
  %v3493 = vadd.f32 %v3237, %v3365
  %v3494 = vadd.f32 %v3238, %v3366
  %v3495 = vadd.f32 %v3239, %v3367
  %v3496 = vadd.f32 %v3240, %v3368
  %v3497 = vadd.f32 %v3241, %v3369
  %v3498 = vadd.f32 %v3242, %v3370
  %v3499 = vadd.f32 %v3243, %v3371
  %v3500 = vadd.f32 %v3244, %v3372
  %v3501 = vadd.f32 %v3245, %v3373
  %v3502 = vadd.f32 %v3246, %v3374
  %v3503 = vadd.f32 %v3247, %v3375
  %v3504 = vadd.f32 %v3248, %v3376
  %v3505 = vadd.f32 %v3249, %v3377
  %v3506 = vadd.f32 %v3250, %v3378
  %v3507 = vadd.f32 %v3251, %v3379
  %v3508 = vadd.f32 %v3252, %v3380
  %v3509 = vadd.f32 %v3253, %v3381
  %v3510 = vadd.f32 %v3254, %v3382
  %v3511 = vadd.f32 %v3255, %v3383
  %v3512 = vadd.f32 %v3256, %v3384
  %v3513 = vadd.f32 %v3257, %v3385
  %v3514 = vadd.f32 %v3258, %v3386
  %v3515 = vadd.f32 %v3259, %v3387
  %v3516 = vadd.f32 %v3260, %v3388
  %v3517 = vadd.f32 %v3261, %v3389
  %v3518 = vadd.f32 %v3262, %v3390
  %v3519 = vadd.f32 %v3263, %v3391
  %v3520 = vadd.f32 %v3264, %v3392
  %v3521 = vadd.f32 %v3265, %v3393
  %v3522 = vadd.f32 %v3266, %v3394
  %v3523 = vadd.f32 %v3267, %v3395
  %v3524 = vadd.f32 %v3268, %v3396
  %v3525 = vadd.f32 %v3269, %v3397
  %v3526 = vadd.f32 %v3270, %v3398
  %v3527 = vadd.f32 %v3271, %v3399
  %v3528 = vadd.f32 %v3272, %v3400
  %v3529 = vadd.f32 %v3273, %v3401
  %v3530 = vadd.f32 %v3274, %v3402
  %v3531 = vadd.f32 %v3275, %v3403
  %v3532 = vadd.f32 %v3276, %v3404
  %v3533 = vadd.f32 %v3277, %v3405
  %v3534 = vadd.f32 %v3278, %v3406
  %v3535 = vadd.f32 %v3279, %v3407
  %v3536 = vadd.f32 %v3280, %v3408
  %v3537 = vadd.f32 %v3281, %v3409
  %v3538 = vadd.f32 %v3282, %v3410
  %v3539 = vadd.f32 %v3283, %v3411
  %v3540 = vadd.f32 %v3284, %v3412
  %v3541 = vadd.f32 %v3285, %v3413
  %v3542 = vadd.f32 %v3286, %v3414
  %v3543 = vadd.f32 %v3287, %v3415
  %v3544 = vadd.f32 %v3288, %v3416
  %v3545 = vadd.f32 %v3289, %v3417
  %v3546 = vadd.f32 %v3290, %v3418
  %v3547 = vadd.f32 %v3291, %v3419
  %v3548 = vadd.f32 %v3292, %v3420
  %v3549 = vadd.f32 %v3293, %v3421
  %v3550 = vadd.f32 %v3294, %v3422
  %v3551 = vadd.f32 %v3295, %v3423
  %v3552 = vadd.f32 %v3296, %v3424
  %v3553 = vadd.f32 %v3297, %v3425
  %v3554 = vadd.f32 %v3298, %v3426
  %v3555 = vadd.f32 %v3299, %v3427
  %v3556 = vadd.f32 %v3300, %v3428
  %v3557 = vadd.f32 %v3301, %v3429
  %v3558 = vadd.f32 %v3302, %v3430
  %v3559 = vadd.f32 %v3303, %v3431
  %v3560 = vadd.f32 %v3304, %v3432
  %v3561 = vadd.f32 %v3305, %v3433
  %v3562 = vadd.f32 %v3306, %v3434
  %v3563 = vadd.f32 %v3307, %v3435
  %v3564 = vadd.f32 %v3308, %v3436
  %v3565 = vadd.f32 %v3309, %v3437
  %v3566 = vadd.f32 %v3310, %v3438
  %v3567 = vadd.f32 %v3311, %v3439
  %v3568 = vadd.f32 %v3312, %v3440
  %v3569 = vadd.f32 %v3313, %v3441
  %v3570 = vadd.f32 %v3314, %v3442
  %v3571 = vadd.f32 %v3315, %v3443
  %v3572 = vadd.f32 %v3316, %v3444
  %v3573 = vadd.f32 %v3317, %v3445
  %v3574 = vadd.f32 %v3318, %v3446
  %v3575 = vadd.f32 %v3319, %v3447
  %v3576 = vadd.f32 %v3320, %v3448
  %v3577 = vadd.f32 %v3321, %v3449
  %v3578 = vadd.f32 %v3322, %v3450
  %v3579 = vadd.f32 %v3323, %v3451
  %v3580 = vadd.f32 %v3324, %v3452
  %v3581 = vadd.f32 %v3325, %v3453
  %v3582 = vadd.f32 %v3326, %v3454
  %v3583 = vadd.f32 %v3327, %v3455
  %v3584 = vadd.f32 %v3328, %v3456
  %v3585 = vadd.f32 %v3329, %v3457
  %v3586 = vadd.f32 %v3330, %v3458
  %v3587 = vadd.f32 %v3331, %v3459
  %v3588 = vadd.f32 %v3332, %v3460
  %v3589 = vadd.f32 %v3333, %v3461
  %v3590 = vadd.f32 %v3334, %v3462
  %v3591 = vadd.f32 %v3335, %v3463
  %v3592 = vadd.f32 %v3336, %v3464
  %v3593 = vadd.f32 %v3337, %v3465
  %v3594 = vadd.f32 %v3338, %v3466
  %v3595 = vadd.f32 %v3339, %v3467
  %v3596 = vadd.f32 %v3340, %v3468
  %v3597 = vadd.f32 %v3341, %v3469
  %v3598 = vadd.f32 %v3342, %v3470
  %v3599 = vmul.f32 %v3087, %v3087
  %v3600 = vmul.f32 %v3088, %v3088
  %v3601 = vmul.f32 %v3089, %v3089
  %v3602 = vmul.f32 %v3090, %v3090
  %v3603 = vmul.f32 %v3091, %v3091
  %v3604 = vmul.f32 %v3092, %v3092
  %v3605 = vmul.f32 %v3093, %v3093
  %v3606 = vmul.f32 %v3094, %v3094
  %v3607 = vmul.f32 %v3095, %v3095
  %v3608 = vmul.f32 %v3096, %v3096
  %v3609 = vmul.f32 %v3097, %v3097
  %v3610 = vmul.f32 %v3098, %v3098
  %v3611 = vmul.f32 %v3099, %v3099
  %v3612 = vmul.f32 %v3100, %v3100
  %v3613 = vmul.f32 %v3101, %v3101
  %v3614 = vmul.f32 %v3102, %v3102
  %v3615 = vmul.f32 %v3103, %v3103
  %v3616 = vmul.f32 %v3104, %v3104
  %v3617 = vmul.f32 %v3105, %v3105
  %v3618 = vmul.f32 %v3106, %v3106
  %v3619 = vmul.f32 %v3107, %v3107
  %v3620 = vmul.f32 %v3108, %v3108
  %v3621 = vmul.f32 %v3109, %v3109
  %v3622 = vmul.f32 %v3110, %v3110
  %v3623 = vmul.f32 %v3111, %v3111
  %v3624 = vmul.f32 %v3112, %v3112
  %v3625 = vmul.f32 %v3113, %v3113
  %v3626 = vmul.f32 %v3114, %v3114
  %v3627 = vmul.f32 %v3115, %v3115
  %v3628 = vmul.f32 %v3116, %v3116
  %v3629 = vmul.f32 %v3117, %v3117
  %v3630 = vmul.f32 %v3118, %v3118
  %v3631 = vmul.f32 %v3119, %v3119
  %v3632 = vmul.f32 %v3120, %v3120
  %v3633 = vmul.f32 %v3121, %v3121
  %v3634 = vmul.f32 %v3122, %v3122
  %v3635 = vmul.f32 %v3123, %v3123
  %v3636 = vmul.f32 %v3124, %v3124
  %v3637 = vmul.f32 %v3125, %v3125
  %v3638 = vmul.f32 %v3126, %v3126
  %v3639 = vmul.f32 %v3127, %v3127
  %v3640 = vmul.f32 %v3128, %v3128
  %v3641 = vmul.f32 %v3129, %v3129
  %v3642 = vmul.f32 %v3130, %v3130
  %v3643 = vmul.f32 %v3131, %v3131
  %v3644 = vmul.f32 %v3132, %v3132
  %v3645 = vmul.f32 %v3133, %v3133
  %v3646 = vmul.f32 %v3134, %v3134
  %v3647 = vmul.f32 %v3135, %v3135
  %v3648 = vmul.f32 %v3136, %v3136
  %v3649 = vmul.f32 %v3137, %v3137
  %v3650 = vmul.f32 %v3138, %v3138
  %v3651 = vmul.f32 %v3139, %v3139
  %v3652 = vmul.f32 %v3140, %v3140
  %v3653 = vmul.f32 %v3141, %v3141
  %v3654 = vmul.f32 %v3142, %v3142
  %v3655 = vmul.f32 %v3143, %v3143
  %v3656 = vmul.f32 %v3144, %v3144
  %v3657 = vmul.f32 %v3145, %v3145
  %v3658 = vmul.f32 %v3146, %v3146
  %v3659 = vmul.f32 %v3147, %v3147
  %v3660 = vmul.f32 %v3148, %v3148
  %v3661 = vmul.f32 %v3149, %v3149
  %v3662 = vmul.f32 %v3150, %v3150
  %v3663 = vmul.f32 %v3151, %v3151
  %v3664 = vmul.f32 %v3152, %v3152
  %v3665 = vmul.f32 %v3153, %v3153
  %v3666 = vmul.f32 %v3154, %v3154
  %v3667 = vmul.f32 %v3155, %v3155
  %v3668 = vmul.f32 %v3156, %v3156
  %v3669 = vmul.f32 %v3157, %v3157
  %v3670 = vmul.f32 %v3158, %v3158
  %v3671 = vmul.f32 %v3159, %v3159
  %v3672 = vmul.f32 %v3160, %v3160
  %v3673 = vmul.f32 %v3161, %v3161
  %v3674 = vmul.f32 %v3162, %v3162
  %v3675 = vmul.f32 %v3163, %v3163
  %v3676 = vmul.f32 %v3164, %v3164
  %v3677 = vmul.f32 %v3165, %v3165
  %v3678 = vmul.f32 %v3166, %v3166
  %v3679 = vmul.f32 %v3167, %v3167
  %v3680 = vmul.f32 %v3168, %v3168
  %v3681 = vmul.f32 %v3169, %v3169
  %v3682 = vmul.f32 %v3170, %v3170
  %v3683 = vmul.f32 %v3171, %v3171
  %v3684 = vmul.f32 %v3172, %v3172
  %v3685 = vmul.f32 %v3173, %v3173
  %v3686 = vmul.f32 %v3174, %v3174
  %v3687 = vmul.f32 %v3175, %v3175
  %v3688 = vmul.f32 %v3176, %v3176
  %v3689 = vmul.f32 %v3177, %v3177
  %v3690 = vmul.f32 %v3178, %v3178
  %v3691 = vmul.f32 %v3179, %v3179
  %v3692 = vmul.f32 %v3180, %v3180
  %v3693 = vmul.f32 %v3181, %v3181
  %v3694 = vmul.f32 %v3182, %v3182
  %v3695 = vmul.f32 %v3183, %v3183
  %v3696 = vmul.f32 %v3184, %v3184
  %v3697 = vmul.f32 %v3185, %v3185
  %v3698 = vmul.f32 %v3186, %v3186
  %v3699 = vmul.f32 %v3187, %v3187
  %v3700 = vmul.f32 %v3188, %v3188
  %v3701 = vmul.f32 %v3189, %v3189
  %v3702 = vmul.f32 %v3190, %v3190
  %v3703 = vmul.f32 %v3191, %v3191
  %v3704 = vmul.f32 %v3192, %v3192
  %v3705 = vmul.f32 %v3193, %v3193
  %v3706 = vmul.f32 %v3194, %v3194
  %v3707 = vmul.f32 %v3195, %v3195
  %v3708 = vmul.f32 %v3196, %v3196
  %v3709 = vmul.f32 %v3197, %v3197
  %v3710 = vmul.f32 %v3198, %v3198
  %v3711 = vmul.f32 %v3199, %v3199
  %v3712 = vmul.f32 %v3200, %v3200
  %v3713 = vmul.f32 %v3201, %v3201
  %v3714 = vmul.f32 %v3202, %v3202
  %v3715 = vmul.f32 %v3203, %v3203
  %v3716 = vmul.f32 %v3204, %v3204
  %v3717 = vmul.f32 %v3205, %v3205
  %v3718 = vmul.f32 %v3206, %v3206
  %v3719 = vmul.f32 %v3207, %v3207
  %v3720 = vmul.f32 %v3208, %v3208
  %v3721 = vmul.f32 %v3209, %v3209
  %v3722 = vmul.f32 %v3210, %v3210
  %v3723 = vmul.f32 %v3211, %v3211
  %v3724 = vmul.f32 %v3212, %v3212
  %v3725 = vmul.f32 %v3213, %v3213
  %v3726 = vmul.f32 %v3214, %v3214
  %v3727 = vadd.f32 %v3471, %v3599
  %v3728 = vadd.f32 %v3472, %v3600
  %v3729 = vadd.f32 %v3473, %v3601
  %v3730 = vadd.f32 %v3474, %v3602
  %v3731 = vadd.f32 %v3475, %v3603
  %v3732 = vadd.f32 %v3476, %v3604
  %v3733 = vadd.f32 %v3477, %v3605
  %v3734 = vadd.f32 %v3478, %v3606
  %v3735 = vadd.f32 %v3479, %v3607
  %v3736 = vadd.f32 %v3480, %v3608
  %v3737 = vadd.f32 %v3481, %v3609
  %v3738 = vadd.f32 %v3482, %v3610
  %v3739 = vadd.f32 %v3483, %v3611
  %v3740 = vadd.f32 %v3484, %v3612
  %v3741 = vadd.f32 %v3485, %v3613
  %v3742 = vadd.f32 %v3486, %v3614
  %v3743 = vadd.f32 %v3487, %v3615
  %v3744 = vadd.f32 %v3488, %v3616
  %v3745 = vadd.f32 %v3489, %v3617
  %v3746 = vadd.f32 %v3490, %v3618
  %v3747 = vadd.f32 %v3491, %v3619
  %v3748 = vadd.f32 %v3492, %v3620
  %v3749 = vadd.f32 %v3493, %v3621
  %v3750 = vadd.f32 %v3494, %v3622
  %v3751 = vadd.f32 %v3495, %v3623
  %v3752 = vadd.f32 %v3496, %v3624
  %v3753 = vadd.f32 %v3497, %v3625
  %v3754 = vadd.f32 %v3498, %v3626
  %v3755 = vadd.f32 %v3499, %v3627
  %v3756 = vadd.f32 %v3500, %v3628
  %v3757 = vadd.f32 %v3501, %v3629
  %v3758 = vadd.f32 %v3502, %v3630
  %v3759 = vadd.f32 %v3503, %v3631
  %v3760 = vadd.f32 %v3504, %v3632
  %v3761 = vadd.f32 %v3505, %v3633
  %v3762 = vadd.f32 %v3506, %v3634
  %v3763 = vadd.f32 %v3507, %v3635
  %v3764 = vadd.f32 %v3508, %v3636
  %v3765 = vadd.f32 %v3509, %v3637
  %v3766 = vadd.f32 %v3510, %v3638
  %v3767 = vadd.f32 %v3511, %v3639
  %v3768 = vadd.f32 %v3512, %v3640
  %v3769 = vadd.f32 %v3513, %v3641
  %v3770 = vadd.f32 %v3514, %v3642
  %v3771 = vadd.f32 %v3515, %v3643
  %v3772 = vadd.f32 %v3516, %v3644
  %v3773 = vadd.f32 %v3517, %v3645
  %v3774 = vadd.f32 %v3518, %v3646
  %v3775 = vadd.f32 %v3519, %v3647
  %v3776 = vadd.f32 %v3520, %v3648
  %v3777 = vadd.f32 %v3521, %v3649
  %v3778 = vadd.f32 %v3522, %v3650
  %v3779 = vadd.f32 %v3523, %v3651
  %v3780 = vadd.f32 %v3524, %v3652
  %v3781 = vadd.f32 %v3525, %v3653
  %v3782 = vadd.f32 %v3526, %v3654
  %v3783 = vadd.f32 %v3527, %v3655
  %v3784 = vadd.f32 %v3528, %v3656
  %v3785 = vadd.f32 %v3529, %v3657
  %v3786 = vadd.f32 %v3530, %v3658
  %v3787 = vadd.f32 %v3531, %v3659
  %v3788 = vadd.f32 %v3532, %v3660
  %v3789 = vadd.f32 %v3533, %v3661
  %v3790 = vadd.f32 %v3534, %v3662
  %v3791 = vadd.f32 %v3535, %v3663
  %v3792 = vadd.f32 %v3536, %v3664
  %v3793 = vadd.f32 %v3537, %v3665
  %v3794 = vadd.f32 %v3538, %v3666
  %v3795 = vadd.f32 %v3539, %v3667
  %v3796 = vadd.f32 %v3540, %v3668
  %v3797 = vadd.f32 %v3541, %v3669
  %v3798 = vadd.f32 %v3542, %v3670
  %v3799 = vadd.f32 %v3543, %v3671
  %v3800 = vadd.f32 %v3544, %v3672
  %v3801 = vadd.f32 %v3545, %v3673
  %v3802 = vadd.f32 %v3546, %v3674
  %v3803 = vadd.f32 %v3547, %v3675
  %v3804 = vadd.f32 %v3548, %v3676
  %v3805 = vadd.f32 %v3549, %v3677
  %v3806 = vadd.f32 %v3550, %v3678
  %v3807 = vadd.f32 %v3551, %v3679
  %v3808 = vadd.f32 %v3552, %v3680
  %v3809 = vadd.f32 %v3553, %v3681
  %v3810 = vadd.f32 %v3554, %v3682
  %v3811 = vadd.f32 %v3555, %v3683
  %v3812 = vadd.f32 %v3556, %v3684
  %v3813 = vadd.f32 %v3557, %v3685
  %v3814 = vadd.f32 %v3558, %v3686
  %v3815 = vadd.f32 %v3559, %v3687
  %v3816 = vadd.f32 %v3560, %v3688
  %v3817 = vadd.f32 %v3561, %v3689
  %v3818 = vadd.f32 %v3562, %v3690
  %v3819 = vadd.f32 %v3563, %v3691
  %v3820 = vadd.f32 %v3564, %v3692
  %v3821 = vadd.f32 %v3565, %v3693
  %v3822 = vadd.f32 %v3566, %v3694
  %v3823 = vadd.f32 %v3567, %v3695
  %v3824 = vadd.f32 %v3568, %v3696
  %v3825 = vadd.f32 %v3569, %v3697
  %v3826 = vadd.f32 %v3570, %v3698
  %v3827 = vadd.f32 %v3571, %v3699
  %v3828 = vadd.f32 %v3572, %v3700
  %v3829 = vadd.f32 %v3573, %v3701
  %v3830 = vadd.f32 %v3574, %v3702
  %v3831 = vadd.f32 %v3575, %v3703
  %v3832 = vadd.f32 %v3576, %v3704
  %v3833 = vadd.f32 %v3577, %v3705
  %v3834 = vadd.f32 %v3578, %v3706
  %v3835 = vadd.f32 %v3579, %v3707
  %v3836 = vadd.f32 %v3580, %v3708
  %v3837 = vadd.f32 %v3581, %v3709
  %v3838 = vadd.f32 %v3582, %v3710
  %v3839 = vadd.f32 %v3583, %v3711
  %v3840 = vadd.f32 %v3584, %v3712
  %v3841 = vadd.f32 %v3585, %v3713
  %v3842 = vadd.f32 %v3586, %v3714
  %v3843 = vadd.f32 %v3587, %v3715
  %v3844 = vadd.f32 %v3588, %v3716
  %v3845 = vadd.f32 %v3589, %v3717
  %v3846 = vadd.f32 %v3590, %v3718
  %v3847 = vadd.f32 %v3591, %v3719
  %v3848 = vadd.f32 %v3592, %v3720
  %v3849 = vadd.f32 %v3593, %v3721
  %v3850 = vadd.f32 %v3594, %v3722
  %v3851 = vadd.f32 %v3595, %v3723
  %v3852 = vadd.f32 %v3596, %v3724
  %v3853 = vadd.f32 %v3597, %v3725
  %v3854 = vadd.f32 %v3598, %v3726
  %v3855 = vmin.f32 %v3727, %v3728
  %v3856 = vmin.f32 %v3855, %v3729
  %v3857 = vmin.f32 %v3856, %v3730
  %v3858 = vmin.f32 %v3857, %v3731
  %v3859 = vmin.f32 %v3858, %v3732
  %v3860 = vmin.f32 %v3859, %v3733
  %v3861 = vmin.f32 %v3860, %v3734
  %3862 = vmin.xlane.f32.xlu0 %v3861
  %v3863 = vpop.xlane.xlu0 %3862
  %v3864 = vmin.f32 %v3735, %v3736
  %v3865 = vmin.f32 %v3864, %v3737
  %v3866 = vmin.f32 %v3865, %v3738
  %v3867 = vmin.f32 %v3866, %v3739
  %v3868 = vmin.f32 %v3867, %v3740
  %v3869 = vmin.f32 %v3868, %v3741
  %v3870 = vmin.f32 %v3869, %v3742
  %3871 = vmin.xlane.f32.xlu0 %v3870
  %v3872 = vpop.xlane.xlu0 %3871
  %v3873 = vmin.f32 %v3743, %v3744
  %v3874 = vmin.f32 %v3873, %v3745
  %v3875 = vmin.f32 %v3874, %v3746
  %v3876 = vmin.f32 %v3875, %v3747
  %v3877 = vmin.f32 %v3876, %v3748
  %v3878 = vmin.f32 %v3877, %v3749
  %v3879 = vmin.f32 %v3878, %v3750
  %3880 = vmin.xlane.f32.xlu0 %v3879
  %v3881 = vpop.xlane.xlu0 %3880
  %v3882 = vmin.f32 %v3751, %v3752
  %v3883 = vmin.f32 %v3882, %v3753
  %v3884 = vmin.f32 %v3883, %v3754
  %v3885 = vmin.f32 %v3884, %v3755
  %v3886 = vmin.f32 %v3885, %v3756
  %v3887 = vmin.f32 %v3886, %v3757
  %v3888 = vmin.f32 %v3887, %v3758
  %3889 = vmin.xlane.f32.xlu0 %v3888
  %v3890 = vpop.xlane.xlu0 %3889
  %v3891 = vmin.f32 %v3759, %v3760
  %v3892 = vmin.f32 %v3891, %v3761
  %v3893 = vmin.f32 %v3892, %v3762
  %v3894 = vmin.f32 %v3893, %v3763
  %v3895 = vmin.f32 %v3894, %v3764
  %v3896 = vmin.f32 %v3895, %v3765
  %v3897 = vmin.f32 %v3896, %v3766
  %3898 = vmin.xlane.f32.xlu0 %v3897
  %v3899 = vpop.xlane.xlu0 %3898
  %v3900 = vmin.f32 %v3767, %v3768
  %v3901 = vmin.f32 %v3900, %v3769
  %v3902 = vmin.f32 %v3901, %v3770
  %v3903 = vmin.f32 %v3902, %v3771
  %v3904 = vmin.f32 %v3903, %v3772
  %v3905 = vmin.f32 %v3904, %v3773
  %v3906 = vmin.f32 %v3905, %v3774
  %3907 = vmin.xlane.f32.xlu0 %v3906
  %v3908 = vpop.xlane.xlu0 %3907
  %v3909 = vmin.f32 %v3775, %v3776
  %v3910 = vmin.f32 %v3909, %v3777
  %v3911 = vmin.f32 %v3910, %v3778
  %v3912 = vmin.f32 %v3911, %v3779
  %v3913 = vmin.f32 %v3912, %v3780
  %v3914 = vmin.f32 %v3913, %v3781
  %v3915 = vmin.f32 %v3914, %v3782
  %3916 = vmin.xlane.f32.xlu0 %v3915
  %v3917 = vpop.xlane.xlu0 %3916
  %v3918 = vmin.f32 %v3783, %v3784
  %v3919 = vmin.f32 %v3918, %v3785
  %v3920 = vmin.f32 %v3919, %v3786
  %v3921 = vmin.f32 %v3920, %v3787
  %v3922 = vmin.f32 %v3921, %v3788
  %v3923 = vmin.f32 %v3922, %v3789
  %v3924 = vmin.f32 %v3923, %v3790
  %3925 = vmin.xlane.f32.xlu0 %v3924
  %v3926 = vpop.xlane.xlu0 %3925
  %v3927 = vmin.f32 %v3791, %v3792
  %v3928 = vmin.f32 %v3927, %v3793
  %v3929 = vmin.f32 %v3928, %v3794
  %v3930 = vmin.f32 %v3929, %v3795
  %v3931 = vmin.f32 %v3930, %v3796
  %v3932 = vmin.f32 %v3931, %v3797
  %v3933 = vmin.f32 %v3932, %v3798
  %3934 = vmin.xlane.f32.xlu0 %v3933
  %v3935 = vpop.xlane.xlu0 %3934
  %v3936 = vmin.f32 %v3799, %v3800
  %v3937 = vmin.f32 %v3936, %v3801
  %v3938 = vmin.f32 %v3937, %v3802
  %v3939 = vmin.f32 %v3938, %v3803
  %v3940 = vmin.f32 %v3939, %v3804
  %v3941 = vmin.f32 %v3940, %v3805
  %v3942 = vmin.f32 %v3941, %v3806
  %3943 = vmin.xlane.f32.xlu0 %v3942
  %v3944 = vpop.xlane.xlu0 %3943
  %v3945 = vmin.f32 %v3807, %v3808
  %v3946 = vmin.f32 %v3945, %v3809
  %v3947 = vmin.f32 %v3946, %v3810
  %v3948 = vmin.f32 %v3947, %v3811
  %v3949 = vmin.f32 %v3948, %v3812
  %v3950 = vmin.f32 %v3949, %v3813
  %v3951 = vmin.f32 %v3950, %v3814
  %3952 = vmin.xlane.f32.xlu0 %v3951
  %v3953 = vpop.xlane.xlu0 %3952
  %v3954 = vmin.f32 %v3815, %v3816
  %v3955 = vmin.f32 %v3954, %v3817
  %v3956 = vmin.f32 %v3955, %v3818
  %v3957 = vmin.f32 %v3956, %v3819
  %v3958 = vmin.f32 %v3957, %v3820
  %v3959 = vmin.f32 %v3958, %v3821
  %v3960 = vmin.f32 %v3959, %v3822
  %3961 = vmin.xlane.f32.xlu0 %v3960
  %v3962 = vpop.xlane.xlu0 %3961
  %v3963 = vmin.f32 %v3823, %v3824
  %v3964 = vmin.f32 %v3963, %v3825
  %v3965 = vmin.f32 %v3964, %v3826
  %v3966 = vmin.f32 %v3965, %v3827
  %v3967 = vmin.f32 %v3966, %v3828
  %v3968 = vmin.f32 %v3967, %v3829
  %v3969 = vmin.f32 %v3968, %v3830
  %3970 = vmin.xlane.f32.xlu0 %v3969
  %v3971 = vpop.xlane.xlu0 %3970
  %v3972 = vmin.f32 %v3831, %v3832
  %v3973 = vmin.f32 %v3972, %v3833
  %v3974 = vmin.f32 %v3973, %v3834
  %v3975 = vmin.f32 %v3974, %v3835
  %v3976 = vmin.f32 %v3975, %v3836
  %v3977 = vmin.f32 %v3976, %v3837
  %v3978 = vmin.f32 %v3977, %v3838
  %3979 = vmin.xlane.f32.xlu0 %v3978
  %v3980 = vpop.xlane.xlu0 %3979
  %v3981 = vmin.f32 %v3839, %v3840
  %v3982 = vmin.f32 %v3981, %v3841
  %v3983 = vmin.f32 %v3982, %v3842
  %v3984 = vmin.f32 %v3983, %v3843
  %v3985 = vmin.f32 %v3984, %v3844
  %v3986 = vmin.f32 %v3985, %v3845
  %v3987 = vmin.f32 %v3986, %v3846
  %3988 = vmin.xlane.f32.xlu0 %v3987
  %v3989 = vpop.xlane.xlu0 %3988
  %v3990 = vmin.f32 %v3847, %v3848
  %v3991 = vmin.f32 %v3990, %v3849
  %v3992 = vmin.f32 %v3991, %v3850
  %v3993 = vmin.f32 %v3992, %v3851
  %v3994 = vmin.f32 %v3993, %v3852
  %v3995 = vmin.f32 %v3994, %v3853
  %v3996 = vmin.f32 %v3995, %v3854
  %3997 = vmin.xlane.f32.xlu0 %v3996
  %v3998 = vpop.xlane.xlu0 %3997
  %v3999 = vmin.f32 %v2739, %v3863
  %v4000 = vmin.f32 %v2740, %v3872
  %v4001 = vmin.f32 %v2741, %v3881
  %v4002 = vmin.f32 %v2742, %v3890
  %v4003 = vmin.f32 %v2743, %v3899
  %v4004 = vmin.f32 %v2744, %v3908
  %v4005 = vmin.f32 %v2745, %v3917
  %v4006 = vmin.f32 %v2746, %v3926
  %v4007 = vmin.f32 %v2747, %v3935
  %v4008 = vmin.f32 %v2748, %v3944
  %v4009 = vmin.f32 %v2749, %v3953
  %v4010 = vmin.f32 %v2750, %v3962
  %v4011 = vmin.f32 %v2751, %v3971
  %v4012 = vmin.f32 %v2752, %v3980
  %v4013 = vmin.f32 %v2753, %v3989
  %v4014 = vmin.f32 %v2754, %v3998
  %v4019 = vperm.slane %v39, 0
  %v4020 = vperm.slane %v39, 4
  %v4021 = vperm.slane %v40, 0
  %v4022 = vperm.slane %v40, 4
  %v4023 = vperm.slane %v41, 0
  %v4024 = vperm.slane %v41, 4
  %v4025 = vperm.slane %v42, 0
  %v4026 = vperm.slane %v42, 4
  %v4035 = vperm.slane %v4019, 0
  %v4036 = vperm.slane %v4020, 0
  %v4037 = vperm.slane %v4021, 0
  %v4038 = vperm.slane %v4022, 0
  %v4039 = vperm.slane %v4023, 0
  %v4040 = vperm.slane %v4024, 0
  %v4041 = vperm.slane %v4025, 0
  %v4042 = vperm.slane %v4026, 0
  %v4043 = vsub.f32 %v46, %v4035
  %v4044 = vsub.f32 %v46, %v4036
  %v4045 = vsub.f32 %v46, %v4037
  %v4046 = vsub.f32 %v46, %v4038
  %v4047 = vsub.f32 %v46, %v4039
  %v4048 = vsub.f32 %v46, %v4040
  %v4049 = vsub.f32 %v46, %v4041
  %v4050 = vsub.f32 %v46, %v4042
  %v4051 = vsub.f32 %v51, %v4035
  %v4052 = vsub.f32 %v51, %v4036
  %v4053 = vsub.f32 %v51, %v4037
  %v4054 = vsub.f32 %v51, %v4038
  %v4055 = vsub.f32 %v51, %v4039
  %v4056 = vsub.f32 %v51, %v4040
  %v4057 = vsub.f32 %v51, %v4041
  %v4058 = vsub.f32 %v51, %v4042
  %v4059 = vsub.f32 %v56, %v4035
  %v4060 = vsub.f32 %v56, %v4036
  %v4061 = vsub.f32 %v56, %v4037
  %v4062 = vsub.f32 %v56, %v4038
  %v4063 = vsub.f32 %v56, %v4039
  %v4064 = vsub.f32 %v56, %v4040
  %v4065 = vsub.f32 %v56, %v4041
  %v4066 = vsub.f32 %v56, %v4042
  %v4067 = vsub.f32 %v61, %v4035
  %v4068 = vsub.f32 %v61, %v4036
  %v4069 = vsub.f32 %v61, %v4037
  %v4070 = vsub.f32 %v61, %v4038
  %v4071 = vsub.f32 %v61, %v4039
  %v4072 = vsub.f32 %v61, %v4040
  %v4073 = vsub.f32 %v61, %v4041
  %v4074 = vsub.f32 %v61, %v4042
  %v4075 = vsub.f32 %v66, %v4035
  %v4076 = vsub.f32 %v66, %v4036
  %v4077 = vsub.f32 %v66, %v4037
  %v4078 = vsub.f32 %v66, %v4038
  %v4079 = vsub.f32 %v66, %v4039
  %v4080 = vsub.f32 %v66, %v4040
  %v4081 = vsub.f32 %v66, %v4041
  %v4082 = vsub.f32 %v66, %v4042
  %v4083 = vsub.f32 %v71, %v4035
  %v4084 = vsub.f32 %v71, %v4036
  %v4085 = vsub.f32 %v71, %v4037
  %v4086 = vsub.f32 %v71, %v4038
  %v4087 = vsub.f32 %v71, %v4039
  %v4088 = vsub.f32 %v71, %v4040
  %v4089 = vsub.f32 %v71, %v4041
  %v4090 = vsub.f32 %v71, %v4042
  %v4091 = vsub.f32 %v76, %v4035
  %v4092 = vsub.f32 %v76, %v4036
  %v4093 = vsub.f32 %v76, %v4037
  %v4094 = vsub.f32 %v76, %v4038
  %v4095 = vsub.f32 %v76, %v4039
  %v4096 = vsub.f32 %v76, %v4040
  %v4097 = vsub.f32 %v76, %v4041
  %v4098 = vsub.f32 %v76, %v4042
  %v4099 = vsub.f32 %v81, %v4035
  %v4100 = vsub.f32 %v81, %v4036
  %v4101 = vsub.f32 %v81, %v4037
  %v4102 = vsub.f32 %v81, %v4038
  %v4103 = vsub.f32 %v81, %v4039
  %v4104 = vsub.f32 %v81, %v4040
  %v4105 = vsub.f32 %v81, %v4041
  %v4106 = vsub.f32 %v81, %v4042
  %v4107 = vsub.f32 %v86, %v4035
  %v4108 = vsub.f32 %v86, %v4036
  %v4109 = vsub.f32 %v86, %v4037
  %v4110 = vsub.f32 %v86, %v4038
  %v4111 = vsub.f32 %v86, %v4039
  %v4112 = vsub.f32 %v86, %v4040
  %v4113 = vsub.f32 %v86, %v4041
  %v4114 = vsub.f32 %v86, %v4042
  %v4115 = vsub.f32 %v91, %v4035
  %v4116 = vsub.f32 %v91, %v4036
  %v4117 = vsub.f32 %v91, %v4037
  %v4118 = vsub.f32 %v91, %v4038
  %v4119 = vsub.f32 %v91, %v4039
  %v4120 = vsub.f32 %v91, %v4040
  %v4121 = vsub.f32 %v91, %v4041
  %v4122 = vsub.f32 %v91, %v4042
  %v4123 = vsub.f32 %v96, %v4035
  %v4124 = vsub.f32 %v96, %v4036
  %v4125 = vsub.f32 %v96, %v4037
  %v4126 = vsub.f32 %v96, %v4038
  %v4127 = vsub.f32 %v96, %v4039
  %v4128 = vsub.f32 %v96, %v4040
  %v4129 = vsub.f32 %v96, %v4041
  %v4130 = vsub.f32 %v96, %v4042
  %v4131 = vsub.f32 %v101, %v4035
  %v4132 = vsub.f32 %v101, %v4036
  %v4133 = vsub.f32 %v101, %v4037
  %v4134 = vsub.f32 %v101, %v4038
  %v4135 = vsub.f32 %v101, %v4039
  %v4136 = vsub.f32 %v101, %v4040
  %v4137 = vsub.f32 %v101, %v4041
  %v4138 = vsub.f32 %v101, %v4042
  %v4139 = vsub.f32 %v106, %v4035
  %v4140 = vsub.f32 %v106, %v4036
  %v4141 = vsub.f32 %v106, %v4037
  %v4142 = vsub.f32 %v106, %v4038
  %v4143 = vsub.f32 %v106, %v4039
  %v4144 = vsub.f32 %v106, %v4040
  %v4145 = vsub.f32 %v106, %v4041
  %v4146 = vsub.f32 %v106, %v4042
  %v4147 = vsub.f32 %v111, %v4035
  %v4148 = vsub.f32 %v111, %v4036
  %v4149 = vsub.f32 %v111, %v4037
  %v4150 = vsub.f32 %v111, %v4038
  %v4151 = vsub.f32 %v111, %v4039
  %v4152 = vsub.f32 %v111, %v4040
  %v4153 = vsub.f32 %v111, %v4041
  %v4154 = vsub.f32 %v111, %v4042
  %v4155 = vsub.f32 %v116, %v4035
  %v4156 = vsub.f32 %v116, %v4036
  %v4157 = vsub.f32 %v116, %v4037
  %v4158 = vsub.f32 %v116, %v4038
  %v4159 = vsub.f32 %v116, %v4039
  %v4160 = vsub.f32 %v116, %v4040
  %v4161 = vsub.f32 %v116, %v4041
  %v4162 = vsub.f32 %v116, %v4042
  %v4163 = vsub.f32 %v121, %v4035
  %v4164 = vsub.f32 %v121, %v4036
  %v4165 = vsub.f32 %v121, %v4037
  %v4166 = vsub.f32 %v121, %v4038
  %v4167 = vsub.f32 %v121, %v4039
  %v4168 = vsub.f32 %v121, %v4040
  %v4169 = vsub.f32 %v121, %v4041
  %v4170 = vsub.f32 %v121, %v4042
  %v4171 = vperm.slane %v39, 1
  %v4172 = vperm.slane %v39, 5
  %v4173 = vperm.slane %v40, 1
  %v4174 = vperm.slane %v40, 5
  %v4175 = vperm.slane %v41, 1
  %v4176 = vperm.slane %v41, 5
  %v4177 = vperm.slane %v42, 1
  %v4178 = vperm.slane %v42, 5
  %v4187 = vperm.slane %v4171, 1
  %v4188 = vperm.slane %v4172, 1
  %v4189 = vperm.slane %v4173, 1
  %v4190 = vperm.slane %v4174, 1
  %v4191 = vperm.slane %v4175, 1
  %v4192 = vperm.slane %v4176, 1
  %v4193 = vperm.slane %v4177, 1
  %v4194 = vperm.slane %v4178, 1
  %v4195 = vsub.f32 %v281, %v4187
  %v4196 = vsub.f32 %v281, %v4188
  %v4197 = vsub.f32 %v281, %v4189
  %v4198 = vsub.f32 %v281, %v4190
  %v4199 = vsub.f32 %v281, %v4191
  %v4200 = vsub.f32 %v281, %v4192
  %v4201 = vsub.f32 %v281, %v4193
  %v4202 = vsub.f32 %v281, %v4194
  %v4203 = vsub.f32 %v285, %v4187
  %v4204 = vsub.f32 %v285, %v4188
  %v4205 = vsub.f32 %v285, %v4189
  %v4206 = vsub.f32 %v285, %v4190
  %v4207 = vsub.f32 %v285, %v4191
  %v4208 = vsub.f32 %v285, %v4192
  %v4209 = vsub.f32 %v285, %v4193
  %v4210 = vsub.f32 %v285, %v4194
  %v4211 = vsub.f32 %v289, %v4187
  %v4212 = vsub.f32 %v289, %v4188
  %v4213 = vsub.f32 %v289, %v4189
  %v4214 = vsub.f32 %v289, %v4190
  %v4215 = vsub.f32 %v289, %v4191
  %v4216 = vsub.f32 %v289, %v4192
  %v4217 = vsub.f32 %v289, %v4193
  %v4218 = vsub.f32 %v289, %v4194
  %v4219 = vsub.f32 %v293, %v4187
  %v4220 = vsub.f32 %v293, %v4188
  %v4221 = vsub.f32 %v293, %v4189
  %v4222 = vsub.f32 %v293, %v4190
  %v4223 = vsub.f32 %v293, %v4191
  %v4224 = vsub.f32 %v293, %v4192
  %v4225 = vsub.f32 %v293, %v4193
  %v4226 = vsub.f32 %v293, %v4194
  %v4227 = vsub.f32 %v297, %v4187
  %v4228 = vsub.f32 %v297, %v4188
  %v4229 = vsub.f32 %v297, %v4189
  %v4230 = vsub.f32 %v297, %v4190
  %v4231 = vsub.f32 %v297, %v4191
  %v4232 = vsub.f32 %v297, %v4192
  %v4233 = vsub.f32 %v297, %v4193
  %v4234 = vsub.f32 %v297, %v4194
  %v4235 = vsub.f32 %v301, %v4187
  %v4236 = vsub.f32 %v301, %v4188
  %v4237 = vsub.f32 %v301, %v4189
  %v4238 = vsub.f32 %v301, %v4190
  %v4239 = vsub.f32 %v301, %v4191
  %v4240 = vsub.f32 %v301, %v4192
  %v4241 = vsub.f32 %v301, %v4193
  %v4242 = vsub.f32 %v301, %v4194
  %v4243 = vsub.f32 %v305, %v4187
  %v4244 = vsub.f32 %v305, %v4188
  %v4245 = vsub.f32 %v305, %v4189
  %v4246 = vsub.f32 %v305, %v4190
  %v4247 = vsub.f32 %v305, %v4191
  %v4248 = vsub.f32 %v305, %v4192
  %v4249 = vsub.f32 %v305, %v4193
  %v4250 = vsub.f32 %v305, %v4194
  %v4251 = vsub.f32 %v309, %v4187
  %v4252 = vsub.f32 %v309, %v4188
  %v4253 = vsub.f32 %v309, %v4189
  %v4254 = vsub.f32 %v309, %v4190
  %v4255 = vsub.f32 %v309, %v4191
  %v4256 = vsub.f32 %v309, %v4192
  %v4257 = vsub.f32 %v309, %v4193
  %v4258 = vsub.f32 %v309, %v4194
  %v4259 = vsub.f32 %v313, %v4187
  %v4260 = vsub.f32 %v313, %v4188
  %v4261 = vsub.f32 %v313, %v4189
  %v4262 = vsub.f32 %v313, %v4190
  %v4263 = vsub.f32 %v313, %v4191
  %v4264 = vsub.f32 %v313, %v4192
  %v4265 = vsub.f32 %v313, %v4193
  %v4266 = vsub.f32 %v313, %v4194
  %v4267 = vsub.f32 %v317, %v4187
  %v4268 = vsub.f32 %v317, %v4188
  %v4269 = vsub.f32 %v317, %v4189
  %v4270 = vsub.f32 %v317, %v4190
  %v4271 = vsub.f32 %v317, %v4191
  %v4272 = vsub.f32 %v317, %v4192
  %v4273 = vsub.f32 %v317, %v4193
  %v4274 = vsub.f32 %v317, %v4194
  %v4275 = vsub.f32 %v321, %v4187
  %v4276 = vsub.f32 %v321, %v4188
  %v4277 = vsub.f32 %v321, %v4189
  %v4278 = vsub.f32 %v321, %v4190
  %v4279 = vsub.f32 %v321, %v4191
  %v4280 = vsub.f32 %v321, %v4192
  %v4281 = vsub.f32 %v321, %v4193
  %v4282 = vsub.f32 %v321, %v4194
  %v4283 = vsub.f32 %v325, %v4187
  %v4284 = vsub.f32 %v325, %v4188
  %v4285 = vsub.f32 %v325, %v4189
  %v4286 = vsub.f32 %v325, %v4190
  %v4287 = vsub.f32 %v325, %v4191
  %v4288 = vsub.f32 %v325, %v4192
  %v4289 = vsub.f32 %v325, %v4193
  %v4290 = vsub.f32 %v325, %v4194
  %v4291 = vsub.f32 %v329, %v4187
  %v4292 = vsub.f32 %v329, %v4188
  %v4293 = vsub.f32 %v329, %v4189
  %v4294 = vsub.f32 %v329, %v4190
  %v4295 = vsub.f32 %v329, %v4191
  %v4296 = vsub.f32 %v329, %v4192
  %v4297 = vsub.f32 %v329, %v4193
  %v4298 = vsub.f32 %v329, %v4194
  %v4299 = vsub.f32 %v333, %v4187
  %v4300 = vsub.f32 %v333, %v4188
  %v4301 = vsub.f32 %v333, %v4189
  %v4302 = vsub.f32 %v333, %v4190
  %v4303 = vsub.f32 %v333, %v4191
  %v4304 = vsub.f32 %v333, %v4192
  %v4305 = vsub.f32 %v333, %v4193
  %v4306 = vsub.f32 %v333, %v4194
  %v4307 = vsub.f32 %v337, %v4187
  %v4308 = vsub.f32 %v337, %v4188
  %v4309 = vsub.f32 %v337, %v4189
  %v4310 = vsub.f32 %v337, %v4190
  %v4311 = vsub.f32 %v337, %v4191
  %v4312 = vsub.f32 %v337, %v4192
  %v4313 = vsub.f32 %v337, %v4193
  %v4314 = vsub.f32 %v337, %v4194
  %v4315 = vsub.f32 %v341, %v4187
  %v4316 = vsub.f32 %v341, %v4188
  %v4317 = vsub.f32 %v341, %v4189
  %v4318 = vsub.f32 %v341, %v4190
  %v4319 = vsub.f32 %v341, %v4191
  %v4320 = vsub.f32 %v341, %v4192
  %v4321 = vsub.f32 %v341, %v4193
  %v4322 = vsub.f32 %v341, %v4194
  %v4323 = vperm.slane %v39, 2
  %v4324 = vperm.slane %v39, 6
  %v4325 = vperm.slane %v40, 2
  %v4326 = vperm.slane %v40, 6
  %v4327 = vperm.slane %v41, 2
  %v4328 = vperm.slane %v41, 6
  %v4329 = vperm.slane %v42, 2
  %v4330 = vperm.slane %v42, 6
  %v4339 = vperm.slane %v4323, 2
  %v4340 = vperm.slane %v4324, 2
  %v4341 = vperm.slane %v4325, 2
  %v4342 = vperm.slane %v4326, 2
  %v4343 = vperm.slane %v4327, 2
  %v4344 = vperm.slane %v4328, 2
  %v4345 = vperm.slane %v4329, 2
  %v4346 = vperm.slane %v4330, 2
  %v4347 = vsub.f32 %v497, %v4339
  %v4348 = vsub.f32 %v497, %v4340
  %v4349 = vsub.f32 %v497, %v4341
  %v4350 = vsub.f32 %v497, %v4342
  %v4351 = vsub.f32 %v497, %v4343
  %v4352 = vsub.f32 %v497, %v4344
  %v4353 = vsub.f32 %v497, %v4345
  %v4354 = vsub.f32 %v497, %v4346
  %v4355 = vsub.f32 %v501, %v4339
  %v4356 = vsub.f32 %v501, %v4340
  %v4357 = vsub.f32 %v501, %v4341
  %v4358 = vsub.f32 %v501, %v4342
  %v4359 = vsub.f32 %v501, %v4343
  %v4360 = vsub.f32 %v501, %v4344
  %v4361 = vsub.f32 %v501, %v4345
  %v4362 = vsub.f32 %v501, %v4346
  %v4363 = vsub.f32 %v505, %v4339
  %v4364 = vsub.f32 %v505, %v4340
  %v4365 = vsub.f32 %v505, %v4341
  %v4366 = vsub.f32 %v505, %v4342
  %v4367 = vsub.f32 %v505, %v4343
  %v4368 = vsub.f32 %v505, %v4344
  %v4369 = vsub.f32 %v505, %v4345
  %v4370 = vsub.f32 %v505, %v4346
  %v4371 = vsub.f32 %v509, %v4339
  %v4372 = vsub.f32 %v509, %v4340
  %v4373 = vsub.f32 %v509, %v4341
  %v4374 = vsub.f32 %v509, %v4342
  %v4375 = vsub.f32 %v509, %v4343
  %v4376 = vsub.f32 %v509, %v4344
  %v4377 = vsub.f32 %v509, %v4345
  %v4378 = vsub.f32 %v509, %v4346
  %v4379 = vsub.f32 %v513, %v4339
  %v4380 = vsub.f32 %v513, %v4340
  %v4381 = vsub.f32 %v513, %v4341
  %v4382 = vsub.f32 %v513, %v4342
  %v4383 = vsub.f32 %v513, %v4343
  %v4384 = vsub.f32 %v513, %v4344
  %v4385 = vsub.f32 %v513, %v4345
  %v4386 = vsub.f32 %v513, %v4346
  %v4387 = vsub.f32 %v517, %v4339
  %v4388 = vsub.f32 %v517, %v4340
  %v4389 = vsub.f32 %v517, %v4341
  %v4390 = vsub.f32 %v517, %v4342
  %v4391 = vsub.f32 %v517, %v4343
  %v4392 = vsub.f32 %v517, %v4344
  %v4393 = vsub.f32 %v517, %v4345
  %v4394 = vsub.f32 %v517, %v4346
  %v4395 = vsub.f32 %v521, %v4339
  %v4396 = vsub.f32 %v521, %v4340
  %v4397 = vsub.f32 %v521, %v4341
  %v4398 = vsub.f32 %v521, %v4342
  %v4399 = vsub.f32 %v521, %v4343
  %v4400 = vsub.f32 %v521, %v4344
  %v4401 = vsub.f32 %v521, %v4345
  %v4402 = vsub.f32 %v521, %v4346
  %v4403 = vsub.f32 %v525, %v4339
  %v4404 = vsub.f32 %v525, %v4340
  %v4405 = vsub.f32 %v525, %v4341
  %v4406 = vsub.f32 %v525, %v4342
  %v4407 = vsub.f32 %v525, %v4343
  %v4408 = vsub.f32 %v525, %v4344
  %v4409 = vsub.f32 %v525, %v4345
  %v4410 = vsub.f32 %v525, %v4346
  %v4411 = vsub.f32 %v529, %v4339
  %v4412 = vsub.f32 %v529, %v4340
  %v4413 = vsub.f32 %v529, %v4341
  %v4414 = vsub.f32 %v529, %v4342
  %v4415 = vsub.f32 %v529, %v4343
  %v4416 = vsub.f32 %v529, %v4344
  %v4417 = vsub.f32 %v529, %v4345
  %v4418 = vsub.f32 %v529, %v4346
  %v4419 = vsub.f32 %v533, %v4339
  %v4420 = vsub.f32 %v533, %v4340
  %v4421 = vsub.f32 %v533, %v4341
  %v4422 = vsub.f32 %v533, %v4342
  %v4423 = vsub.f32 %v533, %v4343
  %v4424 = vsub.f32 %v533, %v4344
  %v4425 = vsub.f32 %v533, %v4345
  %v4426 = vsub.f32 %v533, %v4346
  %v4427 = vsub.f32 %v537, %v4339
  %v4428 = vsub.f32 %v537, %v4340
  %v4429 = vsub.f32 %v537, %v4341
  %v4430 = vsub.f32 %v537, %v4342
  %v4431 = vsub.f32 %v537, %v4343
  %v4432 = vsub.f32 %v537, %v4344
  %v4433 = vsub.f32 %v537, %v4345
  %v4434 = vsub.f32 %v537, %v4346
  %v4435 = vsub.f32 %v541, %v4339
  %v4436 = vsub.f32 %v541, %v4340
  %v4437 = vsub.f32 %v541, %v4341
  %v4438 = vsub.f32 %v541, %v4342
  %v4439 = vsub.f32 %v541, %v4343
  %v4440 = vsub.f32 %v541, %v4344
  %v4441 = vsub.f32 %v541, %v4345
  %v4442 = vsub.f32 %v541, %v4346
  %v4443 = vsub.f32 %v545, %v4339
  %v4444 = vsub.f32 %v545, %v4340
  %v4445 = vsub.f32 %v545, %v4341
  %v4446 = vsub.f32 %v545, %v4342
  %v4447 = vsub.f32 %v545, %v4343
  %v4448 = vsub.f32 %v545, %v4344
  %v4449 = vsub.f32 %v545, %v4345
  %v4450 = vsub.f32 %v545, %v4346
  %v4451 = vsub.f32 %v549, %v4339
  %v4452 = vsub.f32 %v549, %v4340
  %v4453 = vsub.f32 %v549, %v4341
  %v4454 = vsub.f32 %v549, %v4342
  %v4455 = vsub.f32 %v549, %v4343
  %v4456 = vsub.f32 %v549, %v4344
  %v4457 = vsub.f32 %v549, %v4345
  %v4458 = vsub.f32 %v549, %v4346
  %v4459 = vsub.f32 %v553, %v4339
  %v4460 = vsub.f32 %v553, %v4340
  %v4461 = vsub.f32 %v553, %v4341
  %v4462 = vsub.f32 %v553, %v4342
  %v4463 = vsub.f32 %v553, %v4343
  %v4464 = vsub.f32 %v553, %v4344
  %v4465 = vsub.f32 %v553, %v4345
  %v4466 = vsub.f32 %v553, %v4346
  %v4467 = vsub.f32 %v557, %v4339
  %v4468 = vsub.f32 %v557, %v4340
  %v4469 = vsub.f32 %v557, %v4341
  %v4470 = vsub.f32 %v557, %v4342
  %v4471 = vsub.f32 %v557, %v4343
  %v4472 = vsub.f32 %v557, %v4344
  %v4473 = vsub.f32 %v557, %v4345
  %v4474 = vsub.f32 %v557, %v4346
  %v4475 = vmul.f32 %v4043, %v4043
  %v4476 = vmul.f32 %v4044, %v4044
  %v4477 = vmul.f32 %v4045, %v4045
  %v4478 = vmul.f32 %v4046, %v4046
  %v4479 = vmul.f32 %v4047, %v4047
  %v4480 = vmul.f32 %v4048, %v4048
  %v4481 = vmul.f32 %v4049, %v4049
  %v4482 = vmul.f32 %v4050, %v4050
  %v4483 = vmul.f32 %v4051, %v4051
  %v4484 = vmul.f32 %v4052, %v4052
  %v4485 = vmul.f32 %v4053, %v4053
  %v4486 = vmul.f32 %v4054, %v4054
  %v4487 = vmul.f32 %v4055, %v4055
  %v4488 = vmul.f32 %v4056, %v4056
  %v4489 = vmul.f32 %v4057, %v4057
  %v4490 = vmul.f32 %v4058, %v4058
  %v4491 = vmul.f32 %v4059, %v4059
  %v4492 = vmul.f32 %v4060, %v4060
  %v4493 = vmul.f32 %v4061, %v4061
  %v4494 = vmul.f32 %v4062, %v4062
  %v4495 = vmul.f32 %v4063, %v4063
  %v4496 = vmul.f32 %v4064, %v4064
  %v4497 = vmul.f32 %v4065, %v4065
  %v4498 = vmul.f32 %v4066, %v4066
  %v4499 = vmul.f32 %v4067, %v4067
  %v4500 = vmul.f32 %v4068, %v4068
  %v4501 = vmul.f32 %v4069, %v4069
  %v4502 = vmul.f32 %v4070, %v4070
  %v4503 = vmul.f32 %v4071, %v4071
  %v4504 = vmul.f32 %v4072, %v4072
  %v4505 = vmul.f32 %v4073, %v4073
  %v4506 = vmul.f32 %v4074, %v4074
  %v4507 = vmul.f32 %v4075, %v4075
  %v4508 = vmul.f32 %v4076, %v4076
  %v4509 = vmul.f32 %v4077, %v4077
  %v4510 = vmul.f32 %v4078, %v4078
  %v4511 = vmul.f32 %v4079, %v4079
  %v4512 = vmul.f32 %v4080, %v4080
  %v4513 = vmul.f32 %v4081, %v4081
  %v4514 = vmul.f32 %v4082, %v4082
  %v4515 = vmul.f32 %v4083, %v4083
  %v4516 = vmul.f32 %v4084, %v4084
  %v4517 = vmul.f32 %v4085, %v4085
  %v4518 = vmul.f32 %v4086, %v4086
  %v4519 = vmul.f32 %v4087, %v4087
  %v4520 = vmul.f32 %v4088, %v4088
  %v4521 = vmul.f32 %v4089, %v4089
  %v4522 = vmul.f32 %v4090, %v4090
  %v4523 = vmul.f32 %v4091, %v4091
  %v4524 = vmul.f32 %v4092, %v4092
  %v4525 = vmul.f32 %v4093, %v4093
  %v4526 = vmul.f32 %v4094, %v4094
  %v4527 = vmul.f32 %v4095, %v4095
  %v4528 = vmul.f32 %v4096, %v4096
  %v4529 = vmul.f32 %v4097, %v4097
  %v4530 = vmul.f32 %v4098, %v4098
  %v4531 = vmul.f32 %v4099, %v4099
  %v4532 = vmul.f32 %v4100, %v4100
  %v4533 = vmul.f32 %v4101, %v4101
  %v4534 = vmul.f32 %v4102, %v4102
  %v4535 = vmul.f32 %v4103, %v4103
  %v4536 = vmul.f32 %v4104, %v4104
  %v4537 = vmul.f32 %v4105, %v4105
  %v4538 = vmul.f32 %v4106, %v4106
  %v4539 = vmul.f32 %v4107, %v4107
  %v4540 = vmul.f32 %v4108, %v4108
  %v4541 = vmul.f32 %v4109, %v4109
  %v4542 = vmul.f32 %v4110, %v4110
  %v4543 = vmul.f32 %v4111, %v4111
  %v4544 = vmul.f32 %v4112, %v4112
  %v4545 = vmul.f32 %v4113, %v4113
  %v4546 = vmul.f32 %v4114, %v4114
  %v4547 = vmul.f32 %v4115, %v4115
  %v4548 = vmul.f32 %v4116, %v4116
  %v4549 = vmul.f32 %v4117, %v4117
  %v4550 = vmul.f32 %v4118, %v4118
  %v4551 = vmul.f32 %v4119, %v4119
  %v4552 = vmul.f32 %v4120, %v4120
  %v4553 = vmul.f32 %v4121, %v4121
  %v4554 = vmul.f32 %v4122, %v4122
  %v4555 = vmul.f32 %v4123, %v4123
  %v4556 = vmul.f32 %v4124, %v4124
  %v4557 = vmul.f32 %v4125, %v4125
  %v4558 = vmul.f32 %v4126, %v4126
  %v4559 = vmul.f32 %v4127, %v4127
  %v4560 = vmul.f32 %v4128, %v4128
  %v4561 = vmul.f32 %v4129, %v4129
  %v4562 = vmul.f32 %v4130, %v4130
  %v4563 = vmul.f32 %v4131, %v4131
  %v4564 = vmul.f32 %v4132, %v4132
  %v4565 = vmul.f32 %v4133, %v4133
  %v4566 = vmul.f32 %v4134, %v4134
  %v4567 = vmul.f32 %v4135, %v4135
  %v4568 = vmul.f32 %v4136, %v4136
  %v4569 = vmul.f32 %v4137, %v4137
  %v4570 = vmul.f32 %v4138, %v4138
  %v4571 = vmul.f32 %v4139, %v4139
  %v4572 = vmul.f32 %v4140, %v4140
  %v4573 = vmul.f32 %v4141, %v4141
  %v4574 = vmul.f32 %v4142, %v4142
  %v4575 = vmul.f32 %v4143, %v4143
  %v4576 = vmul.f32 %v4144, %v4144
  %v4577 = vmul.f32 %v4145, %v4145
  %v4578 = vmul.f32 %v4146, %v4146
  %v4579 = vmul.f32 %v4147, %v4147
  %v4580 = vmul.f32 %v4148, %v4148
  %v4581 = vmul.f32 %v4149, %v4149
  %v4582 = vmul.f32 %v4150, %v4150
  %v4583 = vmul.f32 %v4151, %v4151
  %v4584 = vmul.f32 %v4152, %v4152
  %v4585 = vmul.f32 %v4153, %v4153
  %v4586 = vmul.f32 %v4154, %v4154
  %v4587 = vmul.f32 %v4155, %v4155
  %v4588 = vmul.f32 %v4156, %v4156
  %v4589 = vmul.f32 %v4157, %v4157
  %v4590 = vmul.f32 %v4158, %v4158
  %v4591 = vmul.f32 %v4159, %v4159
  %v4592 = vmul.f32 %v4160, %v4160
  %v4593 = vmul.f32 %v4161, %v4161
  %v4594 = vmul.f32 %v4162, %v4162
  %v4595 = vmul.f32 %v4163, %v4163
  %v4596 = vmul.f32 %v4164, %v4164
  %v4597 = vmul.f32 %v4165, %v4165
  %v4598 = vmul.f32 %v4166, %v4166
  %v4599 = vmul.f32 %v4167, %v4167
  %v4600 = vmul.f32 %v4168, %v4168
  %v4601 = vmul.f32 %v4169, %v4169
  %v4602 = vmul.f32 %v4170, %v4170
  %v4603 = vmul.f32 %v4195, %v4195
  %v4604 = vmul.f32 %v4196, %v4196
  %v4605 = vmul.f32 %v4197, %v4197
  %v4606 = vmul.f32 %v4198, %v4198
  %v4607 = vmul.f32 %v4199, %v4199
  %v4608 = vmul.f32 %v4200, %v4200
  %v4609 = vmul.f32 %v4201, %v4201
  %v4610 = vmul.f32 %v4202, %v4202
  %v4611 = vmul.f32 %v4203, %v4203
  %v4612 = vmul.f32 %v4204, %v4204
  %v4613 = vmul.f32 %v4205, %v4205
  %v4614 = vmul.f32 %v4206, %v4206
  %v4615 = vmul.f32 %v4207, %v4207
  %v4616 = vmul.f32 %v4208, %v4208
  %v4617 = vmul.f32 %v4209, %v4209
  %v4618 = vmul.f32 %v4210, %v4210
  %v4619 = vmul.f32 %v4211, %v4211
  %v4620 = vmul.f32 %v4212, %v4212
  %v4621 = vmul.f32 %v4213, %v4213
  %v4622 = vmul.f32 %v4214, %v4214
  %v4623 = vmul.f32 %v4215, %v4215
  %v4624 = vmul.f32 %v4216, %v4216
  %v4625 = vmul.f32 %v4217, %v4217
  %v4626 = vmul.f32 %v4218, %v4218
  %v4627 = vmul.f32 %v4219, %v4219
  %v4628 = vmul.f32 %v4220, %v4220
  %v4629 = vmul.f32 %v4221, %v4221
  %v4630 = vmul.f32 %v4222, %v4222
  %v4631 = vmul.f32 %v4223, %v4223
  %v4632 = vmul.f32 %v4224, %v4224
  %v4633 = vmul.f32 %v4225, %v4225
  %v4634 = vmul.f32 %v4226, %v4226
  %v4635 = vmul.f32 %v4227, %v4227
  %v4636 = vmul.f32 %v4228, %v4228
  %v4637 = vmul.f32 %v4229, %v4229
  %v4638 = vmul.f32 %v4230, %v4230
  %v4639 = vmul.f32 %v4231, %v4231
  %v4640 = vmul.f32 %v4232, %v4232
  %v4641 = vmul.f32 %v4233, %v4233
  %v4642 = vmul.f32 %v4234, %v4234
  %v4643 = vmul.f32 %v4235, %v4235
  %v4644 = vmul.f32 %v4236, %v4236
  %v4645 = vmul.f32 %v4237, %v4237
  %v4646 = vmul.f32 %v4238, %v4238
  %v4647 = vmul.f32 %v4239, %v4239
  %v4648 = vmul.f32 %v4240, %v4240
  %v4649 = vmul.f32 %v4241, %v4241
  %v4650 = vmul.f32 %v4242, %v4242
  %v4651 = vmul.f32 %v4243, %v4243
  %v4652 = vmul.f32 %v4244, %v4244
  %v4653 = vmul.f32 %v4245, %v4245
  %v4654 = vmul.f32 %v4246, %v4246
  %v4655 = vmul.f32 %v4247, %v4247
  %v4656 = vmul.f32 %v4248, %v4248
  %v4657 = vmul.f32 %v4249, %v4249
  %v4658 = vmul.f32 %v4250, %v4250
  %v4659 = vmul.f32 %v4251, %v4251
  %v4660 = vmul.f32 %v4252, %v4252
  %v4661 = vmul.f32 %v4253, %v4253
  %v4662 = vmul.f32 %v4254, %v4254
  %v4663 = vmul.f32 %v4255, %v4255
  %v4664 = vmul.f32 %v4256, %v4256
  %v4665 = vmul.f32 %v4257, %v4257
  %v4666 = vmul.f32 %v4258, %v4258
  %v4667 = vmul.f32 %v4259, %v4259
  %v4668 = vmul.f32 %v4260, %v4260
  %v4669 = vmul.f32 %v4261, %v4261
  %v4670 = vmul.f32 %v4262, %v4262
  %v4671 = vmul.f32 %v4263, %v4263
  %v4672 = vmul.f32 %v4264, %v4264
  %v4673 = vmul.f32 %v4265, %v4265
  %v4674 = vmul.f32 %v4266, %v4266
  %v4675 = vmul.f32 %v4267, %v4267
  %v4676 = vmul.f32 %v4268, %v4268
  %v4677 = vmul.f32 %v4269, %v4269
  %v4678 = vmul.f32 %v4270, %v4270
  %v4679 = vmul.f32 %v4271, %v4271
  %v4680 = vmul.f32 %v4272, %v4272
  %v4681 = vmul.f32 %v4273, %v4273
  %v4682 = vmul.f32 %v4274, %v4274
  %v4683 = vmul.f32 %v4275, %v4275
  %v4684 = vmul.f32 %v4276, %v4276
  %v4685 = vmul.f32 %v4277, %v4277
  %v4686 = vmul.f32 %v4278, %v4278
  %v4687 = vmul.f32 %v4279, %v4279
  %v4688 = vmul.f32 %v4280, %v4280
  %v4689 = vmul.f32 %v4281, %v4281
  %v4690 = vmul.f32 %v4282, %v4282
  %v4691 = vmul.f32 %v4283, %v4283
  %v4692 = vmul.f32 %v4284, %v4284
  %v4693 = vmul.f32 %v4285, %v4285
  %v4694 = vmul.f32 %v4286, %v4286
  %v4695 = vmul.f32 %v4287, %v4287
  %v4696 = vmul.f32 %v4288, %v4288
  %v4697 = vmul.f32 %v4289, %v4289
  %v4698 = vmul.f32 %v4290, %v4290
  %v4699 = vmul.f32 %v4291, %v4291
  %v4700 = vmul.f32 %v4292, %v4292
  %v4701 = vmul.f32 %v4293, %v4293
  %v4702 = vmul.f32 %v4294, %v4294
  %v4703 = vmul.f32 %v4295, %v4295
  %v4704 = vmul.f32 %v4296, %v4296
  %v4705 = vmul.f32 %v4297, %v4297
  %v4706 = vmul.f32 %v4298, %v4298
  %v4707 = vmul.f32 %v4299, %v4299
  %v4708 = vmul.f32 %v4300, %v4300
  %v4709 = vmul.f32 %v4301, %v4301
  %v4710 = vmul.f32 %v4302, %v4302
  %v4711 = vmul.f32 %v4303, %v4303
  %v4712 = vmul.f32 %v4304, %v4304
  %v4713 = vmul.f32 %v4305, %v4305
  %v4714 = vmul.f32 %v4306, %v4306
  %v4715 = vmul.f32 %v4307, %v4307
  %v4716 = vmul.f32 %v4308, %v4308
  %v4717 = vmul.f32 %v4309, %v4309
  %v4718 = vmul.f32 %v4310, %v4310
  %v4719 = vmul.f32 %v4311, %v4311
  %v4720 = vmul.f32 %v4312, %v4312
  %v4721 = vmul.f32 %v4313, %v4313
  %v4722 = vmul.f32 %v4314, %v4314
  %v4723 = vmul.f32 %v4315, %v4315
  %v4724 = vmul.f32 %v4316, %v4316
  %v4725 = vmul.f32 %v4317, %v4317
  %v4726 = vmul.f32 %v4318, %v4318
  %v4727 = vmul.f32 %v4319, %v4319
  %v4728 = vmul.f32 %v4320, %v4320
  %v4729 = vmul.f32 %v4321, %v4321
  %v4730 = vmul.f32 %v4322, %v4322
  %v4731 = vadd.f32 %v4475, %v4603
  %v4732 = vadd.f32 %v4476, %v4604
  %v4733 = vadd.f32 %v4477, %v4605
  %v4734 = vadd.f32 %v4478, %v4606
  %v4735 = vadd.f32 %v4479, %v4607
  %v4736 = vadd.f32 %v4480, %v4608
  %v4737 = vadd.f32 %v4481, %v4609
  %v4738 = vadd.f32 %v4482, %v4610
  %v4739 = vadd.f32 %v4483, %v4611
  %v4740 = vadd.f32 %v4484, %v4612
  %v4741 = vadd.f32 %v4485, %v4613
  %v4742 = vadd.f32 %v4486, %v4614
  %v4743 = vadd.f32 %v4487, %v4615
  %v4744 = vadd.f32 %v4488, %v4616
  %v4745 = vadd.f32 %v4489, %v4617
  %v4746 = vadd.f32 %v4490, %v4618
  %v4747 = vadd.f32 %v4491, %v4619
  %v4748 = vadd.f32 %v4492, %v4620
  %v4749 = vadd.f32 %v4493, %v4621
  %v4750 = vadd.f32 %v4494, %v4622
  %v4751 = vadd.f32 %v4495, %v4623
  %v4752 = vadd.f32 %v4496, %v4624
  %v4753 = vadd.f32 %v4497, %v4625
  %v4754 = vadd.f32 %v4498, %v4626
  %v4755 = vadd.f32 %v4499, %v4627
  %v4756 = vadd.f32 %v4500, %v4628
  %v4757 = vadd.f32 %v4501, %v4629
  %v4758 = vadd.f32 %v4502, %v4630
  %v4759 = vadd.f32 %v4503, %v4631
  %v4760 = vadd.f32 %v4504, %v4632
  %v4761 = vadd.f32 %v4505, %v4633
  %v4762 = vadd.f32 %v4506, %v4634
  %v4763 = vadd.f32 %v4507, %v4635
  %v4764 = vadd.f32 %v4508, %v4636
  %v4765 = vadd.f32 %v4509, %v4637
  %v4766 = vadd.f32 %v4510, %v4638
  %v4767 = vadd.f32 %v4511, %v4639
  %v4768 = vadd.f32 %v4512, %v4640
  %v4769 = vadd.f32 %v4513, %v4641
  %v4770 = vadd.f32 %v4514, %v4642
  %v4771 = vadd.f32 %v4515, %v4643
  %v4772 = vadd.f32 %v4516, %v4644
  %v4773 = vadd.f32 %v4517, %v4645
  %v4774 = vadd.f32 %v4518, %v4646
  %v4775 = vadd.f32 %v4519, %v4647
  %v4776 = vadd.f32 %v4520, %v4648
  %v4777 = vadd.f32 %v4521, %v4649
  %v4778 = vadd.f32 %v4522, %v4650
  %v4779 = vadd.f32 %v4523, %v4651
  %v4780 = vadd.f32 %v4524, %v4652
  %v4781 = vadd.f32 %v4525, %v4653
  %v4782 = vadd.f32 %v4526, %v4654
  %v4783 = vadd.f32 %v4527, %v4655
  %v4784 = vadd.f32 %v4528, %v4656
  %v4785 = vadd.f32 %v4529, %v4657
  %v4786 = vadd.f32 %v4530, %v4658
  %v4787 = vadd.f32 %v4531, %v4659
  %v4788 = vadd.f32 %v4532, %v4660
  %v4789 = vadd.f32 %v4533, %v4661
  %v4790 = vadd.f32 %v4534, %v4662
  %v4791 = vadd.f32 %v4535, %v4663
  %v4792 = vadd.f32 %v4536, %v4664
  %v4793 = vadd.f32 %v4537, %v4665
  %v4794 = vadd.f32 %v4538, %v4666
  %v4795 = vadd.f32 %v4539, %v4667
  %v4796 = vadd.f32 %v4540, %v4668
  %v4797 = vadd.f32 %v4541, %v4669
  %v4798 = vadd.f32 %v4542, %v4670
  %v4799 = vadd.f32 %v4543, %v4671
  %v4800 = vadd.f32 %v4544, %v4672
  %v4801 = vadd.f32 %v4545, %v4673
  %v4802 = vadd.f32 %v4546, %v4674
  %v4803 = vadd.f32 %v4547, %v4675
  %v4804 = vadd.f32 %v4548, %v4676
  %v4805 = vadd.f32 %v4549, %v4677
  %v4806 = vadd.f32 %v4550, %v4678
  %v4807 = vadd.f32 %v4551, %v4679
  %v4808 = vadd.f32 %v4552, %v4680
  %v4809 = vadd.f32 %v4553, %v4681
  %v4810 = vadd.f32 %v4554, %v4682
  %v4811 = vadd.f32 %v4555, %v4683
  %v4812 = vadd.f32 %v4556, %v4684
  %v4813 = vadd.f32 %v4557, %v4685
  %v4814 = vadd.f32 %v4558, %v4686
  %v4815 = vadd.f32 %v4559, %v4687
  %v4816 = vadd.f32 %v4560, %v4688
  %v4817 = vadd.f32 %v4561, %v4689
  %v4818 = vadd.f32 %v4562, %v4690
  %v4819 = vadd.f32 %v4563, %v4691
  %v4820 = vadd.f32 %v4564, %v4692
  %v4821 = vadd.f32 %v4565, %v4693
  %v4822 = vadd.f32 %v4566, %v4694
  %v4823 = vadd.f32 %v4567, %v4695
  %v4824 = vadd.f32 %v4568, %v4696
  %v4825 = vadd.f32 %v4569, %v4697
  %v4826 = vadd.f32 %v4570, %v4698
  %v4827 = vadd.f32 %v4571, %v4699
  %v4828 = vadd.f32 %v4572, %v4700
  %v4829 = vadd.f32 %v4573, %v4701
  %v4830 = vadd.f32 %v4574, %v4702
  %v4831 = vadd.f32 %v4575, %v4703
  %v4832 = vadd.f32 %v4576, %v4704
  %v4833 = vadd.f32 %v4577, %v4705
  %v4834 = vadd.f32 %v4578, %v4706
  %v4835 = vadd.f32 %v4579, %v4707
  %v4836 = vadd.f32 %v4580, %v4708
  %v4837 = vadd.f32 %v4581, %v4709
  %v4838 = vadd.f32 %v4582, %v4710
  %v4839 = vadd.f32 %v4583, %v4711
  %v4840 = vadd.f32 %v4584, %v4712
  %v4841 = vadd.f32 %v4585, %v4713
  %v4842 = vadd.f32 %v4586, %v4714
  %v4843 = vadd.f32 %v4587, %v4715
  %v4844 = vadd.f32 %v4588, %v4716
  %v4845 = vadd.f32 %v4589, %v4717
  %v4846 = vadd.f32 %v4590, %v4718
  %v4847 = vadd.f32 %v4591, %v4719
  %v4848 = vadd.f32 %v4592, %v4720
  %v4849 = vadd.f32 %v4593, %v4721
  %v4850 = vadd.f32 %v4594, %v4722
  %v4851 = vadd.f32 %v4595, %v4723
  %v4852 = vadd.f32 %v4596, %v4724
  %v4853 = vadd.f32 %v4597, %v4725
  %v4854 = vadd.f32 %v4598, %v4726
  %v4855 = vadd.f32 %v4599, %v4727
  %v4856 = vadd.f32 %v4600, %v4728
  %v4857 = vadd.f32 %v4601, %v4729
  %v4858 = vadd.f32 %v4602, %v4730
  %v4859 = vmul.f32 %v4347, %v4347
  %v4860 = vmul.f32 %v4348, %v4348
  %v4861 = vmul.f32 %v4349, %v4349
  %v4862 = vmul.f32 %v4350, %v4350
  %v4863 = vmul.f32 %v4351, %v4351
  %v4864 = vmul.f32 %v4352, %v4352
  %v4865 = vmul.f32 %v4353, %v4353
  %v4866 = vmul.f32 %v4354, %v4354
  %v4867 = vmul.f32 %v4355, %v4355
  %v4868 = vmul.f32 %v4356, %v4356
  %v4869 = vmul.f32 %v4357, %v4357
  %v4870 = vmul.f32 %v4358, %v4358
  %v4871 = vmul.f32 %v4359, %v4359
  %v4872 = vmul.f32 %v4360, %v4360
  %v4873 = vmul.f32 %v4361, %v4361
  %v4874 = vmul.f32 %v4362, %v4362
  %v4875 = vmul.f32 %v4363, %v4363
  %v4876 = vmul.f32 %v4364, %v4364
  %v4877 = vmul.f32 %v4365, %v4365
  %v4878 = vmul.f32 %v4366, %v4366
  %v4879 = vmul.f32 %v4367, %v4367
  %v4880 = vmul.f32 %v4368, %v4368
  %v4881 = vmul.f32 %v4369, %v4369
  %v4882 = vmul.f32 %v4370, %v4370
  %v4883 = vmul.f32 %v4371, %v4371
  %v4884 = vmul.f32 %v4372, %v4372
  %v4885 = vmul.f32 %v4373, %v4373
  %v4886 = vmul.f32 %v4374, %v4374
  %v4887 = vmul.f32 %v4375, %v4375
  %v4888 = vmul.f32 %v4376, %v4376
  %v4889 = vmul.f32 %v4377, %v4377
  %v4890 = vmul.f32 %v4378, %v4378
  %v4891 = vmul.f32 %v4379, %v4379
  %v4892 = vmul.f32 %v4380, %v4380
  %v4893 = vmul.f32 %v4381, %v4381
  %v4894 = vmul.f32 %v4382, %v4382
  %v4895 = vmul.f32 %v4383, %v4383
  %v4896 = vmul.f32 %v4384, %v4384
  %v4897 = vmul.f32 %v4385, %v4385
  %v4898 = vmul.f32 %v4386, %v4386
  %v4899 = vmul.f32 %v4387, %v4387
  %v4900 = vmul.f32 %v4388, %v4388
  %v4901 = vmul.f32 %v4389, %v4389
  %v4902 = vmul.f32 %v4390, %v4390
  %v4903 = vmul.f32 %v4391, %v4391
  %v4904 = vmul.f32 %v4392, %v4392
  %v4905 = vmul.f32 %v4393, %v4393
  %v4906 = vmul.f32 %v4394, %v4394
  %v4907 = vmul.f32 %v4395, %v4395
  %v4908 = vmul.f32 %v4396, %v4396
  %v4909 = vmul.f32 %v4397, %v4397
  %v4910 = vmul.f32 %v4398, %v4398
  %v4911 = vmul.f32 %v4399, %v4399
  %v4912 = vmul.f32 %v4400, %v4400
  %v4913 = vmul.f32 %v4401, %v4401
  %v4914 = vmul.f32 %v4402, %v4402
  %v4915 = vmul.f32 %v4403, %v4403
  %v4916 = vmul.f32 %v4404, %v4404
  %v4917 = vmul.f32 %v4405, %v4405
  %v4918 = vmul.f32 %v4406, %v4406
  %v4919 = vmul.f32 %v4407, %v4407
  %v4920 = vmul.f32 %v4408, %v4408
  %v4921 = vmul.f32 %v4409, %v4409
  %v4922 = vmul.f32 %v4410, %v4410
  %v4923 = vmul.f32 %v4411, %v4411
  %v4924 = vmul.f32 %v4412, %v4412
  %v4925 = vmul.f32 %v4413, %v4413
  %v4926 = vmul.f32 %v4414, %v4414
  %v4927 = vmul.f32 %v4415, %v4415
  %v4928 = vmul.f32 %v4416, %v4416
  %v4929 = vmul.f32 %v4417, %v4417
  %v4930 = vmul.f32 %v4418, %v4418
  %v4931 = vmul.f32 %v4419, %v4419
  %v4932 = vmul.f32 %v4420, %v4420
  %v4933 = vmul.f32 %v4421, %v4421
  %v4934 = vmul.f32 %v4422, %v4422
  %v4935 = vmul.f32 %v4423, %v4423
  %v4936 = vmul.f32 %v4424, %v4424
  %v4937 = vmul.f32 %v4425, %v4425
  %v4938 = vmul.f32 %v4426, %v4426
  %v4939 = vmul.f32 %v4427, %v4427
  %v4940 = vmul.f32 %v4428, %v4428
  %v4941 = vmul.f32 %v4429, %v4429
  %v4942 = vmul.f32 %v4430, %v4430
  %v4943 = vmul.f32 %v4431, %v4431
  %v4944 = vmul.f32 %v4432, %v4432
  %v4945 = vmul.f32 %v4433, %v4433
  %v4946 = vmul.f32 %v4434, %v4434
  %v4947 = vmul.f32 %v4435, %v4435
  %v4948 = vmul.f32 %v4436, %v4436
  %v4949 = vmul.f32 %v4437, %v4437
  %v4950 = vmul.f32 %v4438, %v4438
  %v4951 = vmul.f32 %v4439, %v4439
  %v4952 = vmul.f32 %v4440, %v4440
  %v4953 = vmul.f32 %v4441, %v4441
  %v4954 = vmul.f32 %v4442, %v4442
  %v4955 = vmul.f32 %v4443, %v4443
  %v4956 = vmul.f32 %v4444, %v4444
  %v4957 = vmul.f32 %v4445, %v4445
  %v4958 = vmul.f32 %v4446, %v4446
  %v4959 = vmul.f32 %v4447, %v4447
  %v4960 = vmul.f32 %v4448, %v4448
  %v4961 = vmul.f32 %v4449, %v4449
  %v4962 = vmul.f32 %v4450, %v4450
  %v4963 = vmul.f32 %v4451, %v4451
  %v4964 = vmul.f32 %v4452, %v4452
  %v4965 = vmul.f32 %v4453, %v4453
  %v4966 = vmul.f32 %v4454, %v4454
  %v4967 = vmul.f32 %v4455, %v4455
  %v4968 = vmul.f32 %v4456, %v4456
  %v4969 = vmul.f32 %v4457, %v4457
  %v4970 = vmul.f32 %v4458, %v4458
  %v4971 = vmul.f32 %v4459, %v4459
  %v4972 = vmul.f32 %v4460, %v4460
  %v4973 = vmul.f32 %v4461, %v4461
  %v4974 = vmul.f32 %v4462, %v4462
  %v4975 = vmul.f32 %v4463, %v4463
  %v4976 = vmul.f32 %v4464, %v4464
  %v4977 = vmul.f32 %v4465, %v4465
  %v4978 = vmul.f32 %v4466, %v4466
  %v4979 = vmul.f32 %v4467, %v4467
  %v4980 = vmul.f32 %v4468, %v4468
  %v4981 = vmul.f32 %v4469, %v4469
  %v4982 = vmul.f32 %v4470, %v4470
  %v4983 = vmul.f32 %v4471, %v4471
  %v4984 = vmul.f32 %v4472, %v4472
  %v4985 = vmul.f32 %v4473, %v4473
  %v4986 = vmul.f32 %v4474, %v4474
  %v4987 = vadd.f32 %v4731, %v4859
  %v4988 = vadd.f32 %v4732, %v4860
  %v4989 = vadd.f32 %v4733, %v4861
  %v4990 = vadd.f32 %v4734, %v4862
  %v4991 = vadd.f32 %v4735, %v4863
  %v4992 = vadd.f32 %v4736, %v4864
  %v4993 = vadd.f32 %v4737, %v4865
  %v4994 = vadd.f32 %v4738, %v4866
  %v4995 = vadd.f32 %v4739, %v4867
  %v4996 = vadd.f32 %v4740, %v4868
  %v4997 = vadd.f32 %v4741, %v4869
  %v4998 = vadd.f32 %v4742, %v4870
  %v4999 = vadd.f32 %v4743, %v4871
  %v5000 = vadd.f32 %v4744, %v4872
  %v5001 = vadd.f32 %v4745, %v4873
  %v5002 = vadd.f32 %v4746, %v4874
  %v5003 = vadd.f32 %v4747, %v4875
  %v5004 = vadd.f32 %v4748, %v4876
  %v5005 = vadd.f32 %v4749, %v4877
  %v5006 = vadd.f32 %v4750, %v4878
  %v5007 = vadd.f32 %v4751, %v4879
  %v5008 = vadd.f32 %v4752, %v4880
  %v5009 = vadd.f32 %v4753, %v4881
  %v5010 = vadd.f32 %v4754, %v4882
  %v5011 = vadd.f32 %v4755, %v4883
  %v5012 = vadd.f32 %v4756, %v4884
  %v5013 = vadd.f32 %v4757, %v4885
  %v5014 = vadd.f32 %v4758, %v4886
  %v5015 = vadd.f32 %v4759, %v4887
  %v5016 = vadd.f32 %v4760, %v4888
  %v5017 = vadd.f32 %v4761, %v4889
  %v5018 = vadd.f32 %v4762, %v4890
  %v5019 = vadd.f32 %v4763, %v4891
  %v5020 = vadd.f32 %v4764, %v4892
  %v5021 = vadd.f32 %v4765, %v4893
  %v5022 = vadd.f32 %v4766, %v4894
  %v5023 = vadd.f32 %v4767, %v4895
  %v5024 = vadd.f32 %v4768, %v4896
  %v5025 = vadd.f32 %v4769, %v4897
  %v5026 = vadd.f32 %v4770, %v4898
  %v5027 = vadd.f32 %v4771, %v4899
  %v5028 = vadd.f32 %v4772, %v4900
  %v5029 = vadd.f32 %v4773, %v4901
  %v5030 = vadd.f32 %v4774, %v4902
  %v5031 = vadd.f32 %v4775, %v4903
  %v5032 = vadd.f32 %v4776, %v4904
  %v5033 = vadd.f32 %v4777, %v4905
  %v5034 = vadd.f32 %v4778, %v4906
  %v5035 = vadd.f32 %v4779, %v4907
  %v5036 = vadd.f32 %v4780, %v4908
  %v5037 = vadd.f32 %v4781, %v4909
  %v5038 = vadd.f32 %v4782, %v4910
  %v5039 = vadd.f32 %v4783, %v4911
  %v5040 = vadd.f32 %v4784, %v4912
  %v5041 = vadd.f32 %v4785, %v4913
  %v5042 = vadd.f32 %v4786, %v4914
  %v5043 = vadd.f32 %v4787, %v4915
  %v5044 = vadd.f32 %v4788, %v4916
  %v5045 = vadd.f32 %v4789, %v4917
  %v5046 = vadd.f32 %v4790, %v4918
  %v5047 = vadd.f32 %v4791, %v4919
  %v5048 = vadd.f32 %v4792, %v4920
  %v5049 = vadd.f32 %v4793, %v4921
  %v5050 = vadd.f32 %v4794, %v4922
  %v5051 = vadd.f32 %v4795, %v4923
  %v5052 = vadd.f32 %v4796, %v4924
  %v5053 = vadd.f32 %v4797, %v4925
  %v5054 = vadd.f32 %v4798, %v4926
  %v5055 = vadd.f32 %v4799, %v4927
  %v5056 = vadd.f32 %v4800, %v4928
  %v5057 = vadd.f32 %v4801, %v4929
  %v5058 = vadd.f32 %v4802, %v4930
  %v5059 = vadd.f32 %v4803, %v4931
  %v5060 = vadd.f32 %v4804, %v4932
  %v5061 = vadd.f32 %v4805, %v4933
  %v5062 = vadd.f32 %v4806, %v4934
  %v5063 = vadd.f32 %v4807, %v4935
  %v5064 = vadd.f32 %v4808, %v4936
  %v5065 = vadd.f32 %v4809, %v4937
  %v5066 = vadd.f32 %v4810, %v4938
  %v5067 = vadd.f32 %v4811, %v4939
  %v5068 = vadd.f32 %v4812, %v4940
  %v5069 = vadd.f32 %v4813, %v4941
  %v5070 = vadd.f32 %v4814, %v4942
  %v5071 = vadd.f32 %v4815, %v4943
  %v5072 = vadd.f32 %v4816, %v4944
  %v5073 = vadd.f32 %v4817, %v4945
  %v5074 = vadd.f32 %v4818, %v4946
  %v5075 = vadd.f32 %v4819, %v4947
  %v5076 = vadd.f32 %v4820, %v4948
  %v5077 = vadd.f32 %v4821, %v4949
  %v5078 = vadd.f32 %v4822, %v4950
  %v5079 = vadd.f32 %v4823, %v4951
  %v5080 = vadd.f32 %v4824, %v4952
  %v5081 = vadd.f32 %v4825, %v4953
  %v5082 = vadd.f32 %v4826, %v4954
  %v5083 = vadd.f32 %v4827, %v4955
  %v5084 = vadd.f32 %v4828, %v4956
  %v5085 = vadd.f32 %v4829, %v4957
  %v5086 = vadd.f32 %v4830, %v4958
  %v5087 = vadd.f32 %v4831, %v4959
  %v5088 = vadd.f32 %v4832, %v4960
  %v5089 = vadd.f32 %v4833, %v4961
  %v5090 = vadd.f32 %v4834, %v4962
  %v5091 = vadd.f32 %v4835, %v4963
  %v5092 = vadd.f32 %v4836, %v4964
  %v5093 = vadd.f32 %v4837, %v4965
  %v5094 = vadd.f32 %v4838, %v4966
  %v5095 = vadd.f32 %v4839, %v4967
  %v5096 = vadd.f32 %v4840, %v4968
  %v5097 = vadd.f32 %v4841, %v4969
  %v5098 = vadd.f32 %v4842, %v4970
  %v5099 = vadd.f32 %v4843, %v4971
  %v5100 = vadd.f32 %v4844, %v4972
  %v5101 = vadd.f32 %v4845, %v4973
  %v5102 = vadd.f32 %v4846, %v4974
  %v5103 = vadd.f32 %v4847, %v4975
  %v5104 = vadd.f32 %v4848, %v4976
  %v5105 = vadd.f32 %v4849, %v4977
  %v5106 = vadd.f32 %v4850, %v4978
  %v5107 = vadd.f32 %v4851, %v4979
  %v5108 = vadd.f32 %v4852, %v4980
  %v5109 = vadd.f32 %v4853, %v4981
  %v5110 = vadd.f32 %v4854, %v4982
  %v5111 = vadd.f32 %v4855, %v4983
  %v5112 = vadd.f32 %v4856, %v4984
  %v5113 = vadd.f32 %v4857, %v4985
  %v5114 = vadd.f32 %v4858, %v4986
  %v5115 = vmin.f32 %v4987, %v4988
  %v5116 = vmin.f32 %v5115, %v4989
  %v5117 = vmin.f32 %v5116, %v4990
  %v5118 = vmin.f32 %v5117, %v4991
  %v5119 = vmin.f32 %v5118, %v4992
  %v5120 = vmin.f32 %v5119, %v4993
  %v5121 = vmin.f32 %v5120, %v4994
  %5122 = vmin.xlane.f32.xlu0 %v5121
  %v5123 = vpop.xlane.xlu0 %5122
  %v5124 = vmin.f32 %v4995, %v4996
  %v5125 = vmin.f32 %v5124, %v4997
  %v5126 = vmin.f32 %v5125, %v4998
  %v5127 = vmin.f32 %v5126, %v4999
  %v5128 = vmin.f32 %v5127, %v5000
  %v5129 = vmin.f32 %v5128, %v5001
  %v5130 = vmin.f32 %v5129, %v5002
  %5131 = vmin.xlane.f32.xlu0 %v5130
  %v5132 = vpop.xlane.xlu0 %5131
  %v5133 = vmin.f32 %v5003, %v5004
  %v5134 = vmin.f32 %v5133, %v5005
  %v5135 = vmin.f32 %v5134, %v5006
  %v5136 = vmin.f32 %v5135, %v5007
  %v5137 = vmin.f32 %v5136, %v5008
  %v5138 = vmin.f32 %v5137, %v5009
  %v5139 = vmin.f32 %v5138, %v5010
  %5140 = vmin.xlane.f32.xlu0 %v5139
  %v5141 = vpop.xlane.xlu0 %5140
  %v5142 = vmin.f32 %v5011, %v5012
  %v5143 = vmin.f32 %v5142, %v5013
  %v5144 = vmin.f32 %v5143, %v5014
  %v5145 = vmin.f32 %v5144, %v5015
  %v5146 = vmin.f32 %v5145, %v5016
  %v5147 = vmin.f32 %v5146, %v5017
  %v5148 = vmin.f32 %v5147, %v5018
  %5149 = vmin.xlane.f32.xlu0 %v5148
  %v5150 = vpop.xlane.xlu0 %5149
  %v5151 = vmin.f32 %v5019, %v5020
  %v5152 = vmin.f32 %v5151, %v5021
  %v5153 = vmin.f32 %v5152, %v5022
  %v5154 = vmin.f32 %v5153, %v5023
  %v5155 = vmin.f32 %v5154, %v5024
  %v5156 = vmin.f32 %v5155, %v5025
  %v5157 = vmin.f32 %v5156, %v5026
  %5158 = vmin.xlane.f32.xlu0 %v5157
  %v5159 = vpop.xlane.xlu0 %5158
  %v5160 = vmin.f32 %v5027, %v5028
  %v5161 = vmin.f32 %v5160, %v5029
  %v5162 = vmin.f32 %v5161, %v5030
  %v5163 = vmin.f32 %v5162, %v5031
  %v5164 = vmin.f32 %v5163, %v5032
  %v5165 = vmin.f32 %v5164, %v5033
  %v5166 = vmin.f32 %v5165, %v5034
  %5167 = vmin.xlane.f32.xlu0 %v5166
  %v5168 = vpop.xlane.xlu0 %5167
  %v5169 = vmin.f32 %v5035, %v5036
  %v5170 = vmin.f32 %v5169, %v5037
  %v5171 = vmin.f32 %v5170, %v5038
  %v5172 = vmin.f32 %v5171, %v5039
  %v5173 = vmin.f32 %v5172, %v5040
  %v5174 = vmin.f32 %v5173, %v5041
  %v5175 = vmin.f32 %v5174, %v5042
  %5176 = vmin.xlane.f32.xlu0 %v5175
  %v5177 = vpop.xlane.xlu0 %5176
  %v5178 = vmin.f32 %v5043, %v5044
  %v5179 = vmin.f32 %v5178, %v5045
  %v5180 = vmin.f32 %v5179, %v5046
  %v5181 = vmin.f32 %v5180, %v5047
  %v5182 = vmin.f32 %v5181, %v5048
  %v5183 = vmin.f32 %v5182, %v5049
  %v5184 = vmin.f32 %v5183, %v5050
  %5185 = vmin.xlane.f32.xlu0 %v5184
  %v5186 = vpop.xlane.xlu0 %5185
  %v5187 = vmin.f32 %v5051, %v5052
  %v5188 = vmin.f32 %v5187, %v5053
  %v5189 = vmin.f32 %v5188, %v5054
  %v5190 = vmin.f32 %v5189, %v5055
  %v5191 = vmin.f32 %v5190, %v5056
  %v5192 = vmin.f32 %v5191, %v5057
  %v5193 = vmin.f32 %v5192, %v5058
  %5194 = vmin.xlane.f32.xlu0 %v5193
  %v5195 = vpop.xlane.xlu0 %5194
  %v5196 = vmin.f32 %v5059, %v5060
  %v5197 = vmin.f32 %v5196, %v5061
  %v5198 = vmin.f32 %v5197, %v5062
  %v5199 = vmin.f32 %v5198, %v5063
  %v5200 = vmin.f32 %v5199, %v5064
  %v5201 = vmin.f32 %v5200, %v5065
  %v5202 = vmin.f32 %v5201, %v5066
  %5203 = vmin.xlane.f32.xlu0 %v5202
  %v5204 = vpop.xlane.xlu0 %5203
  %v5205 = vmin.f32 %v5067, %v5068
  %v5206 = vmin.f32 %v5205, %v5069
  %v5207 = vmin.f32 %v5206, %v5070
  %v5208 = vmin.f32 %v5207, %v5071
  %v5209 = vmin.f32 %v5208, %v5072
  %v5210 = vmin.f32 %v5209, %v5073
  %v5211 = vmin.f32 %v5210, %v5074
  %5212 = vmin.xlane.f32.xlu0 %v5211
  %v5213 = vpop.xlane.xlu0 %5212
  %v5214 = vmin.f32 %v5075, %v5076
  %v5215 = vmin.f32 %v5214, %v5077
  %v5216 = vmin.f32 %v5215, %v5078
  %v5217 = vmin.f32 %v5216, %v5079
  %v5218 = vmin.f32 %v5217, %v5080
  %v5219 = vmin.f32 %v5218, %v5081
  %v5220 = vmin.f32 %v5219, %v5082
  %5221 = vmin.xlane.f32.xlu0 %v5220
  %v5222 = vpop.xlane.xlu0 %5221
  %v5223 = vmin.f32 %v5083, %v5084
  %v5224 = vmin.f32 %v5223, %v5085
  %v5225 = vmin.f32 %v5224, %v5086
  %v5226 = vmin.f32 %v5225, %v5087
  %v5227 = vmin.f32 %v5226, %v5088
  %v5228 = vmin.f32 %v5227, %v5089
  %v5229 = vmin.f32 %v5228, %v5090
  %5230 = vmin.xlane.f32.xlu0 %v5229
  %v5231 = vpop.xlane.xlu0 %5230
  %v5232 = vmin.f32 %v5091, %v5092
  %v5233 = vmin.f32 %v5232, %v5093
  %v5234 = vmin.f32 %v5233, %v5094
  %v5235 = vmin.f32 %v5234, %v5095
  %v5236 = vmin.f32 %v5235, %v5096
  %v5237 = vmin.f32 %v5236, %v5097
  %v5238 = vmin.f32 %v5237, %v5098
  %5239 = vmin.xlane.f32.xlu0 %v5238
  %v5240 = vpop.xlane.xlu0 %5239
  %v5241 = vmin.f32 %v5099, %v5100
  %v5242 = vmin.f32 %v5241, %v5101
  %v5243 = vmin.f32 %v5242, %v5102
  %v5244 = vmin.f32 %v5243, %v5103
  %v5245 = vmin.f32 %v5244, %v5104
  %v5246 = vmin.f32 %v5245, %v5105
  %v5247 = vmin.f32 %v5246, %v5106
  %5248 = vmin.xlane.f32.xlu0 %v5247
  %v5249 = vpop.xlane.xlu0 %5248
  %v5250 = vmin.f32 %v5107, %v5108
  %v5251 = vmin.f32 %v5250, %v5109
  %v5252 = vmin.f32 %v5251, %v5110
  %v5253 = vmin.f32 %v5252, %v5111
  %v5254 = vmin.f32 %v5253, %v5112
  %v5255 = vmin.f32 %v5254, %v5113
  %v5256 = vmin.f32 %v5255, %v5114
  %5257 = vmin.xlane.f32.xlu0 %v5256
  %v5258 = vpop.xlane.xlu0 %5257
  %v5259 = vmin.f32 %v3999, %v5123
  %v5260 = vmin.f32 %v4000, %v5132
  %v5261 = vmin.f32 %v4001, %v5141
  %v5262 = vmin.f32 %v4002, %v5150
  %v5263 = vmin.f32 %v4003, %v5159
  %v5264 = vmin.f32 %v4004, %v5168
  %v5265 = vmin.f32 %v4005, %v5177
  %v5266 = vmin.f32 %v4006, %v5186
  %v5267 = vmin.f32 %v4007, %v5195
  %v5268 = vmin.f32 %v4008, %v5204
  %v5269 = vmin.f32 %v4009, %v5213
  %v5270 = vmin.f32 %v4010, %v5222
  %v5271 = vmin.f32 %v4011, %v5231
  %v5272 = vmin.f32 %v4012, %v5240
  %v5273 = vmin.f32 %v4013, %v5249
  %v5274 = vmin.f32 %v4014, %v5258
  %vm5275 = vcmask 7168
  %5276 = vst.msk [vmem:[%s2] sm:$0xff] %vm5275, %v5259
  %5277 = vst.msk [vmem:[%s2 + $0x8] sm:$0xff] %vm5275, %v5260
  %5278 = vst.msk [vmem:[%s2 + $0x10] sm:$0xff] %vm5275, %v5261
  %5279 = vst.msk [vmem:[%s2 + $0x18] sm:$0xff] %vm5275, %v5262
  %5280 = vst.msk [vmem:[%s2 + $0x20] sm:$0xff] %vm5275, %v5263
  %5281 = vst.msk [vmem:[%s2 + $0x28] sm:$0xff] %vm5275, %v5264
  %5282 = vst.msk [vmem:[%s2 + $0x30] sm:$0xff] %vm5275, %v5265
  %5283 = vst.msk [vmem:[%s2 + $0x38] sm:$0xff] %vm5275, %v5266
  %5284 = vst.msk [vmem:[%s2 + $0x40] sm:$0xff] %vm5275, %v5267
  %5285 = vst.msk [vmem:[%s2 + $0x48] sm:$0xff] %vm5275, %v5268
  %5286 = vst.msk [vmem:[%s2 + $0x50] sm:$0xff] %vm5275, %v5269
  %5287 = vst.msk [vmem:[%s2 + $0x58] sm:$0xff] %vm5275, %v5270
  %5288 = vst.msk [vmem:[%s2 + $0x60] sm:$0xff] %vm5275, %v5271
  %5289 = vst.msk [vmem:[%s2 + $0x68] sm:$0xff] %vm5275, %v5272
  %5290 = vst.msk [vmem:[%s2 + $0x70] sm:$0xff] %vm5275, %v5273
  %5291 = vst.msk [vmem:[%s2 + $0x78] sm:$0xff] %vm5275, %v5274
  // Predicated region
  $region10: #{body.6} parent=0 // pred_check
    _
  $region11: #{body.6} parent=0 // pred_check_branch
    %5293 = sbr.rel (0) target = $region13
  $region12: #{body.6} parent=0 // pred_region
    _
  $region13: #{body.6} parent=0 // pred_fallthru
    _
  // Predicated region
  $region14: #{body.6} parent=0 // pred_check
    _
  $region15: #{body.6} parent=0 // pred_check_branch
    %5295 = sbr.rel (0) target = $region17
  $region16: #{body.6} parent=0 // pred_region
    _
  $region17: #{body.6} parent=0 // pred_fallthru
    _

</llo_original>
